<compile_context>
chip_gen: v7x
topology: tpu7x:2x2x1
jax: 0.10.0
libtpu: 0.0.40
codegen_flags: <defaults>
</compile_context>

<pallas_src>
import functools

import jax
import jax.numpy as jnp
from jax import lax
from jax.experimental import pallas as pl
from jax.experimental.pallas import tpu as pltpu

# ---- small synthetic config (GPT2-like) ----
PREFIX_SIZE = 64      # CLIP feature size (module default is 512; small here)
N_EMBD = 32           # embedding_size (wte.weight.shape[1])
N_HEAD = 4
HEAD_DIM = N_EMBD // N_HEAD
N_LAYER = 2
VOCAB = 128
N_POS = 16
LN_EPS = 1e-5

MATMUL_DTYPE = jnp.bfloat16   # MXU input dtype; accumulation stays f32
VOCAB_TILE = 128              # lm_head vocab tile (lane-dense). Keep <=4096 on v7x
                              # (64 MiB VMEM) at real DeCap sizes.


def _round_up(x, m):
    return ((x + m - 1) // m) * m


# ----------------------- in-kernel helpers (f32 math, bf16 MXU inputs) -----------------------

def _ln(x, g, b):
    mean = jnp.mean(x, axis=-1, keepdims=True)
    xc = x - mean
    var = jnp.mean(xc * xc, axis=-1, keepdims=True)
    return xc * lax.rsqrt(var + LN_EPS) * g + b


def _gelu_new(x):
    # GPT-2 "gelu_new" (tanh approximation), f32
    c = jnp.float32(0.7978845608028654)  # sqrt(2/pi)
    return 0.5 * x * (1.0 + jnp.tanh(c * (x + 0.044715 * x * x * x)))


def _mm(a, b):
    return jnp.dot(a.astype(MATMUL_DTYPE), b.astype(MATMUL_DTYPE),
                   preferred_element_type=jnp.float32)


def _mm_tb(a, b):
    # a @ b.T without materialising any transpose (contract last dims)
    return lax.dot_general(a.astype(MATMUL_DTYPE), b.astype(MATMUL_DTYPE),
                           (((1,), (1,)), ((), ())),
                           preferred_element_type=jnp.float32)


# ----------------------- Pallas kernels -----------------------

def _clip_proj_kernel(x_ref, w_ref, b_ref, o_ref):
    o_ref[...] = (_mm(x_ref[...], w_ref[...])
                  + b_ref[...].astype(jnp.float32)).astype(o_ref.dtype)


def clip_project(x, w, b):
    """clip_project MLP == single Linear:  (B, PREFIX) @ (PREFIX, D) + b."""
    M, K = x.shape
    N = w.shape[1]
    return pl.pallas_call(
        _clip_proj_kernel,
        out_shape=jax.ShapeDtypeStruct((M, N), jnp.float32),
        grid=(1,),
        in_specs=[pl.BlockSpec((M, K), lambda i: (0, 0)),
                  pl.BlockSpec((K, N), lambda i: (0, 0)),
                  pl.BlockSpec((1, N), lambda i: (0, 0))],
        out_specs=pl.BlockSpec((M, N), lambda i: (0, 0)),
    )(x, w, b.reshape(1, N))


def _gpt2_block_kernel(h_ref, ln1_g_ref, ln1_b_ref,
                       wq_ref, wk_ref, wv_ref, bq_ref, bk_ref, bv_ref,
                       pwh_ref, proj_b_ref,
                       ln2_g_ref, ln2_b_ref, fc_w_ref, fc_b_ref,
                       mproj_w_ref, mproj_b_ref,
                       o_ref, *, n_head, head_dim):
    """One full pre-LN GPT-2 block for one batch element, fully fused."""
    x = h_ref[0].astype(jnp.float32)                          # (Tp, D)
    Tp, D = x.shape
    scale = jnp.float32(1.0 / float(head_dim) ** 0.5)

    # ---- LN1 -> per-head QKV -> causal attention -> out proj -> residual ----
    a_in = _ln(x, ln1_g_ref[...].astype(jnp.float32), ln1_b_ref[...].astype(jnp.float32))
    a_lo = a_in.astype(MATMUL_DTYPE)

    qi = lax.broadcasted_iota(jnp.int32, (Tp, Tp), 0)
    ki = lax.broadcasted_iota(jnp.int32, (Tp, Tp), 1)
    causal = ki <= qi

    attn_out = jnp.zeros((Tp, D), jnp.float32)
    for hh in range(n_head):                                  # static unroll over heads
        qh = (_mm(a_lo, wq_ref[hh]) + bq_ref[hh]) * scale     # scale folded into q
        kh = _mm(a_lo, wk_ref[hh]) + bk_ref[hh]
        vh = _mm(a_lo, wv_ref[hh]) + bv_ref[hh]
        s = _mm_tb(qh, kh)                                    # (Tp, Tp) f32
        s = jnp.where(causal, s, jnp.float32(-1e30))          # causal mask
        s = s - jnp.max(s, axis=-1, keepdims=True)
        p = jnp.exp(s)
        p = p * pl.reciprocal(jnp.sum(p, axis=-1, keepdims=True), approx=True)
        oh = _mm(p, vh)                                       # (Tp, Dh)
        # concat-over-heads followed by c_proj  ==  sum_h oh @ proj_w[rows of head h]
        attn_out = attn_out + _mm(oh, pwh_ref[hh])
    h1 = x + attn_out + proj_b_ref[...].astype(jnp.float32)   # residual fused in-kernel

    # ---- LN2 -> fc -> gelu_new -> proj -> residual ----
    m_in = _ln(h1, ln2_g_ref[...].astype(jnp.float32), ln2_b_ref[...].astype(jnp.float32))
    m = _gelu_new(_mm(m_in, fc_w_ref[...]) + fc_b_ref[...].astype(jnp.float32))
    m = _mm(m, mproj_w_ref[...]) + mproj_b_ref[...].astype(jnp.float32)
    o_ref[0] = (h1 + m).astype(o_ref.dtype)


def gpt2_block(h, blk):
    """h: (B, Tp, D) f32 residual stream -> (B, Tp, D). One pallas_call per layer."""
    B, Tp, D = h.shape
    H, dh = N_HEAD, HEAD_DIM

    # Reorganise fused c_attn / c_proj weights into per-head layouts.  These are
    # tiny weight-only reshapes (KBs) — no activation transposes, and they let the
    # kernel index heads on a leading axis instead of lane-slicing activations.
    w3 = blk["attn_w"].reshape(D, 3, H, dh).transpose(1, 2, 0, 3)   # (3, H, D, dh)
    b3 = blk["attn_b"].reshape(3, H, 1, dh)                         # (3, H, 1, dh)
    pwh = blk["proj_w"].reshape(H, dh, D)                           # (H, dh, D)

    hspec = pl.BlockSpec((1, Tp, D), lambda i: (i, 0, 0))

    def wspec(shape):
        if len(shape) == 2:
            return pl.BlockSpec(shape, lambda i: (0, 0))
        return pl.BlockSpec(shape, lambda i: (0, 0, 0))

    in_specs = [
        hspec,
        wspec((1, D)), wspec((1, D)),                      # ln1 g/b
        wspec((H, D, dh)), wspec((H, D, dh)), wspec((H, D, dh)),   # wq/wk/wv
        wspec((H, 1, dh)), wspec((H, 1, dh)), wspec((H, 1, dh)),   # bq/bk/bv
        wspec((H, dh, D)), wspec((1, D)),                  # proj_w (per head), proj_b
        wspec((1, D)), wspec((1, D)),                      # ln2 g/b
        wspec((D, 4 * D)), wspec((1, 4 * D)),              # fc w/b
        wspec((4 * D, D)), wspec((1, D)),                  # mproj w/b
    ]
    return pl.pallas_call(
        functools.partial(_gpt2_block_kernel, n_head=H, head_dim=dh),
        out_shape=jax.ShapeDtypeStruct((B, Tp, D), jnp.float32),
        grid=(B,),
        in_specs=in_specs,
        out_specs=hspec,
        compiler_params=pltpu.CompilerParams(dimension_semantics=("parallel",)),
    )(h,
      blk["ln1_g"].reshape(1, D), blk["ln1_b"].reshape(1, D),
      w3[0], w3[1], w3[2],
      b3[0], b3[1], b3[2],
      pwh, blk["proj_b"].reshape(1, D),
      blk["ln2_g"].reshape(1, D), blk["ln2_b"].reshape(1, D),
      blk["fc_w"], blk["fc_b"].reshape(1, 4 * D),
      blk["mproj_w"], blk["mproj_b"].reshape(1, D))


def _final_lm_head_kernel(h_ref, g_ref, b_ref, wte_ref, o_ref):
    hf = _ln(h_ref[0].astype(jnp.float32),
             g_ref[...].astype(jnp.float32), b_ref[...].astype(jnp.float32))
    # tied lm_head (no bias): logits = hf @ wte.T, contracting wte's last dim
    # directly so no transposed copy of wte is ever materialised.
    o_ref[0] = _mm_tb(hf, wte_ref[...]).astype(o_ref.dtype)


def final_ln_lm_head(h, g, b, wte, *, vocab_tile=VOCAB_TILE):
    B, Tp, D = h.shape
    V = wte.shape[0]
    tv = min(vocab_tile, V)
    assert V % tv == 0
    return pl.pallas_call(
        _final_lm_head_kernel,
        out_shape=jax.ShapeDtypeStruct((B, Tp, V), jnp.float32),
        grid=(B, V // tv),
        in_specs=[pl.BlockSpec((1, Tp, D), lambda i, j: (i, 0, 0)),
                  pl.BlockSpec((1, D), lambda i, j: (0, 0)),
                  pl.BlockSpec((1, D), lambda i, j: (0, 0)),
                  pl.BlockSpec((tv, D), lambda i, j: (j, 0))],
        out_specs=pl.BlockSpec((1, Tp, tv), lambda i, j: (i, 0, j)),
        compiler_params=pltpu.CompilerParams(
            dimension_semantics=("parallel", "parallel")),
    )(h, g.reshape(1, D), b.reshape(1, D), wte)


# ----------------------- parameters (deterministic, synthetic) -----------------------

def init_params(key):
    keys = iter(jax.random.split(key, 8 + 8 * N_LAYER))

    def nrm(shape, std=0.02):
        return (jax.random.normal(next(keys), shape, jnp.float32) * std).astype(jnp.float32)

    params = {
        "wte": nrm((VOCAB, N_EMBD)),
        "wpe": nrm((N_POS, N_EMBD), std=0.01),
        # clip_project: MLP((prefix_size, embedding_size)) == single Linear
        "clip_w": nrm((PREFIX_SIZE, N_EMBD)),
        "clip_b": jnp.zeros((N_EMBD,), jnp.float32),
        "lnf_g": jnp.ones((N_EMBD,), jnp.float32),
        "lnf_b": jnp.zeros((N_EMBD,), jnp.float32),
        "blocks": [],
    }
    for _ in range(N_LAYER):
        params["blocks"].append(dict(
            ln1_g=jnp.ones((N_EMBD,), jnp.float32), ln1_b=jnp.zeros((N_EMBD,), jnp.float32),
            attn_w=nrm((N_EMBD, 3 * N_EMBD)), attn_b=jnp.zeros((3 * N_EMBD,), jnp.float32),
            proj_w=nrm((N_EMBD, N_EMBD)), proj_b=jnp.zeros((N_EMBD,), jnp.float32),
            ln2_g=jnp.ones((N_EMBD,), jnp.float32), ln2_b=jnp.zeros((N_EMBD,), jnp.float32),
            fc_w=nrm((N_EMBD, 4 * N_EMBD)), fc_b=jnp.zeros((4 * N_EMBD,), jnp.float32),
            mproj_w=nrm((4 * N_EMBD, N_EMBD)), mproj_b=jnp.zeros((N_EMBD,), jnp.float32),
        ))
    return params


# ----------------------- DeCap forward -----------------------

def decap_forward(params, clip_features, tokens):
    """clip_features: (B, PREFIX) f32; tokens: (B, T_tok) i32 -> logits (B, T_tok+1, VOCAB)."""
    B, t_tok = tokens.shape
    T = t_tok + 1
    assert T <= N_POS
    Tp = max(8, _round_up(T, 8))   # sublane-aligned padded sequence (pad rows are inert:
                                   # causal mask keeps them out of real rows' attention)

    # clip_project (single Linear) -> (B, D)
    emb_clip = clip_project(clip_features, params["clip_w"], params["clip_b"])

    # wte(tokens): embedding gather kept as JAX glue (no rectangular-block equivalent)
    emb_text = jnp.take(params["wte"], tokens, axis=0)                     # (B, t_tok, D)

    # cat([clip, text], dim=1) + positional embeddings, then pad seq to Tp (cheap glue)
    h = jnp.concatenate([emb_clip[:, None, :], emb_text], axis=1)          # (B, T, D)
    h = h + params["wpe"][:T][None, :, :]
    h = jnp.pad(h, ((0, 0), (0, Tp - T), (0, 0)))                          # (B, Tp, D)

    # one fused Pallas kernel per transformer layer
    for blk in params["blocks"]:
        h = gpt2_block(h, blk)

    # fused final LayerNorm + tied lm_head (vocab-tiled, lane-dense output)
    logits = final_ln_lm_head(h, params["lnf_g"], params["lnf_b"], params["wte"])
    return logits[:, :T, :]


# ----------------------- driver -----------------------

if __name__ == "__main__":
    key = jax.random.PRNGKey(0)
    k_params, k_clip, k_tok = jax.random.split(key, 3)

    params = init_params(k_params)

    B, T_TOK = 2, 8
    clip_features = jax.random.normal(k_clip, (B, PREFIX_SIZE), jnp.float32)
    tokens = jax.random.randint(k_tok, (B, T_TOK), 0, VOCAB, dtype=jnp.int32)

    logits = jax.jit(decap_forward)(params, clip_features, tokens)
    logits = jax.block_until_ready(logits)

    assert logits.shape == (B, T_TOK + 1, VOCAB)
    assert bool(jnp.all(jnp.isfinite(logits)))
    print("KERNEL_OK")
</pallas_src>

<mosaic_0001>
module attributes {stable_mosaic.version = 11 : i64} {
  func.func @_clip_proj_kernel(%arg0: i32, %arg1: memref<2x64xf32, #tpu.memory_space<vmem>>, %arg2: memref<64x32xf32, #tpu.memory_space<vmem>>, %arg3: memref<1x32xf32, #tpu.memory_space<vmem>>, %arg4: memref<2x32xf32, #tpu.memory_space<vmem>>) attributes {dimension_semantics = [#tpu.dimension_semantics<arbitrary>], iteration_bounds = array<i64: 1>, scalar_prefetch = 0 : i64, scratch_operands = 0 : i64, tpu.core_type = #tpu.core_type<tc>, window_params = [{pipeline_mode = #tpu.pipeline_mode<synchronous>, transform_indices = @transform_0, window_bounds = array<i64: 2, 64>}, {pipeline_mode = #tpu.pipeline_mode<synchronous>, transform_indices = @transform_1, window_bounds = array<i64: 64, 32>}, {pipeline_mode = #tpu.pipeline_mode<synchronous>, transform_indices = @transform_2, window_bounds = array<i64: 1, 32>}, {pipeline_mode = #tpu.pipeline_mode<synchronous>, transform_indices = @transform_3, window_bounds = array<i64: 2, 32>}]} {
    %c0 = arith.constant 0 : index
    %c0_0 = arith.constant 0 : index
    %0 = vector.load %arg1[%c0, %c0_0] : memref<2x64xf32, #tpu.memory_space<vmem>>, vector<2x64xf32>
    %c0_1 = arith.constant 0 : index
    %c0_2 = arith.constant 0 : index
    %1 = vector.load %arg2[%c0_1, %c0_2] : memref<64x32xf32, #tpu.memory_space<vmem>>, vector<64x32xf32>
    %2 = arith.truncf %0 : vector<2x64xf32> to vector<2x64xbf16>
    %3 = arith.truncf %1 : vector<64x32xf32> to vector<64x32xbf16>
    %cst = arith.constant dense<0.000000e+00> : vector<2x32xf32>
    %4 = tpu.matmul %2, %3, %cst {dimension_numbers = #tpu.dot_dimension_numbers<[1], [0], [0], [1], [0, 0, 1, 1], [], []>} : vector<2x64xbf16>, vector<64x32xbf16>, vector<2x32xf32> -> vector<2x32xf32>
    %c0_3 = arith.constant 0 : index
    %c0_4 = arith.constant 0 : index
    %5 = vector.load %arg3[%c0_3, %c0_4] : memref<1x32xf32, #tpu.memory_space<vmem>>, vector<1x32xf32>
    %6 = vector.broadcast %5 : vector<1x32xf32> to vector<2x32xf32>
    %7 = arith.addf %4, %6 : vector<2x32xf32>
    %c0_5 = arith.constant 0 : index
    %c0_6 = arith.constant 0 : index
    %8 = vector.load %arg4[%c0_5, %c0_6] : memref<2x32xf32, #tpu.memory_space<vmem>>, vector<2x32xf32>
    tpu.vector_store %arg4[%c0_5, %c0_6], %7 {strides = array<i32>} : memref<2x32xf32, #tpu.memory_space<vmem>>, vector<2x32xf32>,
    return
  }
  func.func @transform_0(%arg0: i32) -> (i32, i32) {
    %c0_i32 = arith.constant 0 : i32
    %c0_i32_0 = arith.constant 0 : i32
    %c0_i32_1 = arith.constant 0 : i32
    return %c0_i32, %c0_i32_0 : i32, i32
  }
  func.func @transform_1(%arg0: i32) -> (i32, i32) {
    %c0_i32 = arith.constant 0 : i32
    %c0_i32_0 = arith.constant 0 : i32
    %c0_i32_1 = arith.constant 0 : i32
    return %c0_i32, %c0_i32_0 : i32, i32
  }
  func.func @transform_2(%arg0: i32) -> (i32, i32) {
    %c0_i32 = arith.constant 0 : i32
    %c0_i32_0 = arith.constant 0 : i32
    %c0_i32_1 = arith.constant 0 : i32
    return %c0_i32, %c0_i32_0 : i32, i32
  }
  func.func @transform_3(%arg0: i32) -> (i32, i32) {
    %c0_i32 = arith.constant 0 : i32
    %c0_i32_0 = arith.constant 0 : i32
    %c0_i32_1 = arith.constant 0 : i32
    return %c0_i32, %c0_i32_0 : i32, i32
  }
}

module attributes {stable_mosaic.version = 11 : i64} {
  func.func @_final_lm_head_kernel(%arg0: i32, %arg1: i32, %arg2: memref<1x16x32xf32, #tpu.memory_space<vmem>>, %arg3: memref<1x32xf32, #tpu.memory_space<vmem>>, %arg4: memref<1x32xf32, #tpu.memory_space<vmem>>, %arg5: memref<128x32xf32, #tpu.memory_space<vmem>>, %arg6: memref<1x16x128xf32, #tpu.memory_space<vmem>>) attributes {dimension_semantics = [#tpu.dimension_semantics<parallel>, #tpu.dimension_semantics<parallel>], iteration_bounds = array<i64: 2, 1>, scalar_prefetch = 0 : i64, scratch_operands = 0 : i64, tpu.core_type = #tpu.core_type<tc>, window_params = [{transform_indices = @transform_0, window_bounds = array<i64: 1, 16, 32>}, {pipeline_mode = #tpu.pipeline_mode<synchronous>, transform_indices = @transform_1, window_bounds = array<i64: 1, 32>}, {pipeline_mode = #tpu.pipeline_mode<synchronous>, transform_indices = @transform_2, window_bounds = array<i64: 1, 32>}, {transform_indices = @transform_3, window_bounds = array<i64: 128, 32>}, {transform_indices = @transform_4, window_bounds = array<i64: 1, 16, 128>}]} {
    %c0 = arith.constant 0 : index
    %c0_0 = arith.constant 0 : index
    %c0_1 = arith.constant 0 : index
    %0 = vector.load %arg2[%c0, %c0_0, %c0_1] : memref<1x16x32xf32, #tpu.memory_space<vmem>>, vector<1x16x32xf32>
    %1 = vector.shape_cast %0 : vector<1x16x32xf32> to vector<16x32xf32>
    %c0_2 = arith.constant 0 : index
    %c0_3 = arith.constant 0 : index
    %2 = vector.load %arg3[%c0_2, %c0_3] : memref<1x32xf32, #tpu.memory_space<vmem>>, vector<1x32xf32>
    %c0_4 = arith.constant 0 : index
    %c0_5 = arith.constant 0 : index
    %3 = vector.load %arg4[%c0_4, %c0_5] : memref<1x32xf32, #tpu.memory_space<vmem>>, vector<1x32xf32>
    %cst = arith.constant dense<0.000000e+00> : vector<16xf32>
    %4 = vector.multi_reduction <add>, %1, %cst [1] : vector<16x32xf32> to vector<16xf32>
    %5 = vector.shape_cast %4 : vector<16xf32> to vector<16x1xf32>
    %cst_6 = arith.constant 3.200000e+01 : f32
    %6 = vector.broadcast %cst_6 : f32 to vector<16x1xf32>
    %7 = arith.divf %5, %6 : vector<16x1xf32>
    %8 = vector.broadcast %7 : vector<16x1xf32> to vector<16x32xf32>
    %9 = arith.subf %1, %8 : vector<16x32xf32>
    %10 = arith.mulf %9, %9 : vector<16x32xf32>
    %cst_7 = arith.constant dense<0.000000e+00> : vector<16xf32>
    %11 = vector.multi_reduction <add>, %10, %cst_7 [1] : vector<16x32xf32> to vector<16xf32>
    %12 = vector.shape_cast %11 : vector<16xf32> to vector<16x1xf32>
    %cst_8 = arith.constant 3.200000e+01 : f32
    %13 = vector.broadcast %cst_8 : f32 to vector<16x1xf32>
    %14 = arith.divf %12, %13 : vector<16x1xf32>
    %cst_9 = arith.constant 9.99999974E-6 : f32
    %15 = vector.broadcast %cst_9 : f32 to vector<16x1xf32>
    %16 = arith.addf %14, %15 : vector<16x1xf32>
    %17 = math.rsqrt %16 : vector<16x1xf32>
    %18 = vector.broadcast %17 : vector<16x1xf32> to vector<16x32xf32>
    %19 = arith.mulf %9, %18 : vector<16x32xf32>
    %20 = vector.broadcast %2 : vector<1x32xf32> to vector<16x32xf32>
    %21 = arith.mulf %19, %20 : vector<16x32xf32>
    %22 = vector.broadcast %3 : vector<1x32xf32> to vector<16x32xf32>
    %23 = arith.addf %21, %22 : vector<16x32xf32>
    %c0_10 = arith.constant 0 : index
    %c0_11 = arith.constant 0 : index
    %24 = vector.load %arg5[%c0_10, %c0_11] : memref<128x32xf32, #tpu.memory_space<vmem>>, vector<128x32xf32>
    %25 = arith.truncf %23 : vector<16x32xf32> to vector<16x32xbf16>
    %26 = arith.truncf %24 : vector<128x32xf32> to vector<128x32xbf16>
    %cst_12 = arith.constant dense<0.000000e+00> : vector<16x128xf32>
    %27 = tpu.matmul %25, %26, %cst_12 {dimension_numbers = #tpu.dot_dimension_numbers<[1], [1], [0], [0], [0, 0, 1, 0], [], []>} : vector<16x32xbf16>, vector<128x32xbf16>, vector<16x128xf32> -> vector<16x128xf32>
    %c0_13 = arith.constant 0 : index
    %c0_14 = arith.constant 0 : index
    %c0_15 = arith.constant 0 : index
    %28 = vector.load %arg6[%c0_13, %c0_14, %c0_15] : memref<1x16x128xf32, #tpu.memory_space<vmem>>, vector<1x16x128xf32>
    %29 = vector.shape_cast %28 : vector<1x16x128xf32> to vector<16x128xf32>
    %30 = vector.shape_cast %27 : vector<16x128xf32> to vector<1x16x128xf32>
    tpu.vector_store %arg6[%c0_13, %c0_14, %c0_15], %30 {strides = array<i32>} : memref<1x16x128xf32, #tpu.memory_space<vmem>>, vector<1x16x128xf32>,
    return
  }
  func.func @transform_0(%arg0: i32, %arg1: i32) -> (i32, i32, i32) {
    %c0_i32 = arith.constant 0 : i32
    %c0_i32_0 = arith.constant 0 : i32
    %c0_i32_1 = arith.constant 0 : i32
    return %arg0, %c0_i32, %c0_i32_0 : i32, i32, i32
  }
  func.func @transform_1(%arg0: i32, %arg1: i32) -> (i32, i32) {
    %c0_i32 = arith.constant 0 : i32
    %c0_i32_0 = arith.constant 0 : i32
    %c0_i32_1 = arith.constant 0 : i32
    return %c0_i32, %c0_i32_0 : i32, i32
  }
  func.func @transform_2(%arg0: i32, %arg1: i32) -> (i32, i32) {
    %c0_i32 = arith.constant 0 : i32
    %c0_i32_0 = arith.constant 0 : i32
    %c0_i32_1 = arith.constant 0 : i32
    return %c0_i32, %c0_i32_0 : i32, i32
  }
  func.func @transform_3(%arg0: i32, %arg1: i32) -> (i32, i32) {
    %c0_i32 = arith.constant 0 : i32
    %c0_i32_0 = arith.constant 0 : i32
    return %arg1, %c0_i32 : i32, i32
  }
  func.func @transform_4(%arg0: i32, %arg1: i32) -> (i32, i32, i32) {
    %c0_i32 = arith.constant 0 : i32
    %c0_i32_0 = arith.constant 0 : i32
    return %arg0, %c0_i32, %arg1 : i32, i32, i32
  }
}

module attributes {stable_mosaic.version = 11 : i64} {
  func.func @_gpt2_block_kernel(%arg0: i32, %arg1: memref<1x16x32xf32, #tpu.memory_space<vmem>>, %arg2: memref<1x32xf32, #tpu.memory_space<vmem>>, %arg3: memref<1x32xf32, #tpu.memory_space<vmem>>, %arg4: memref<4x32x8xf32, #tpu.memory_space<vmem>>, %arg5: memref<4x32x8xf32, #tpu.memory_space<vmem>>, %arg6: memref<4x32x8xf32, #tpu.memory_space<vmem>>, %arg7: memref<4x1x8xf32, #tpu.memory_space<vmem>>, %arg8: memref<4x1x8xf32, #tpu.memory_space<vmem>>, %arg9: memref<4x1x8xf32, #tpu.memory_space<vmem>>, %arg10: memref<4x8x32xf32, #tpu.memory_space<vmem>>, %arg11: memref<1x32xf32, #tpu.memory_space<vmem>>, %arg12: memref<1x32xf32, #tpu.memory_space<vmem>>, %arg13: memref<1x32xf32, #tpu.memory_space<vmem>>, %arg14: memref<32x128xf32, #tpu.memory_space<vmem>>, %arg15: memref<1x128xf32, #tpu.memory_space<vmem>>, %arg16: memref<128x32xf32, #tpu.memory_space<vmem>>, %arg17: memref<1x32xf32, #tpu.memory_space<vmem>>, %arg18: memref<1x16x32xf32, #tpu.memory_space<vmem>>) attributes {dimension_semantics = [#tpu.dimension_semantics<parallel>], iteration_bounds = array<i64: 2>, scalar_prefetch = 0 : i64, scratch_operands = 0 : i64, tpu.core_type = #tpu.core_type<tc>, window_params = [{transform_indices = @transform_0, window_bounds = array<i64: 1, 16, 32>}, {pipeline_mode = #tpu.pipeline_mode<synchronous>, transform_indices = @transform_1, window_bounds = array<i64: 1, 32>}, {pipeline_mode = #tpu.pipeline_mode<synchronous>, transform_indices = @transform_2, window_bounds = array<i64: 1, 32>}, {pipeline_mode = #tpu.pipeline_mode<synchronous>, transform_indices = @transform_3, window_bounds = array<i64: 4, 32, 8>}, {pipeline_mode = #tpu.pipeline_mode<synchronous>, transform_indices = @transform_4, window_bounds = array<i64: 4, 32, 8>}, {pipeline_mode = #tpu.pipeline_mode<synchronous>, transform_indices = @transform_5, window_bounds = array<i64: 4, 32, 8>}, {pipeline_mode = #tpu.pipeline_mode<synchronous>, transform_indices = @transform_6, window_bounds = array<i64: 4, 1, 8>}, {pipeline_mode = #tpu.pipeline_mode<synchronous>, transform_indices = @transform_7, window_bounds = array<i64: 4, 1, 8>}, {pipeline_mode = #tpu.pipeline_mode<synchronous>, transform_indices = @transform_8, window_bounds = array<i64: 4, 1, 8>}, {pipeline_mode = #tpu.pipeline_mode<synchronous>, transform_indices = @transform_9, window_bounds = array<i64: 4, 8, 32>}, {pipeline_mode = #tpu.pipeline_mode<synchronous>, transform_indices = @transform_10, window_bounds = array<i64: 1, 32>}, {pipeline_mode = #tpu.pipeline_mode<synchronous>, transform_indices = @transform_11, window_bounds = array<i64: 1, 32>}, {pipeline_mode = #tpu.pipeline_mode<synchronous>, transform_indices = @transform_12, window_bounds = array<i64: 1, 32>}, {pipeline_mode = #tpu.pipeline_mode<synchronous>, transform_indices = @transform_13, window_bounds = array<i64: 32, 128>}, {pipeline_mode = #tpu.pipeline_mode<synchronous>, transform_indices = @transform_14, window_bounds = array<i64: 1, 128>}, {pipeline_mode = #tpu.pipeline_mode<synchronous>, transform_indices = @transform_15, window_bounds = array<i64: 128, 32>}, {pipeline_mode = #tpu.pipeline_mode<synchronous>, transform_indices = @transform_16, window_bounds = array<i64: 1, 32>}, {transform_indices = @transform_17, window_bounds = array<i64: 1, 16, 32>}]} {
    %c0 = arith.constant 0 : index
    %c0_0 = arith.constant 0 : index
    %c0_1 = arith.constant 0 : index
    %0 = vector.load %arg1[%c0, %c0_0, %c0_1] : memref<1x16x32xf32, #tpu.memory_space<vmem>>, vector<1x16x32xf32>
    %1 = vector.shape_cast %0 : vector<1x16x32xf32> to vector<16x32xf32>
    %c0_2 = arith.constant 0 : index
    %c0_3 = arith.constant 0 : index
    %2 = vector.load %arg2[%c0_2, %c0_3] : memref<1x32xf32, #tpu.memory_space<vmem>>, vector<1x32xf32>
    %c0_4 = arith.constant 0 : index
    %c0_5 = arith.constant 0 : index
    %3 = vector.load %arg3[%c0_4, %c0_5] : memref<1x32xf32, #tpu.memory_space<vmem>>, vector<1x32xf32>
    %cst = arith.constant dense<0.000000e+00> : vector<16xf32>
    %4 = vector.multi_reduction <add>, %1, %cst [1] : vector<16x32xf32> to vector<16xf32>
    %5 = vector.shape_cast %4 : vector<16xf32> to vector<16x1xf32>
    %cst_6 = arith.constant 3.200000e+01 : f32
    %6 = vector.broadcast %cst_6 : f32 to vector<16x1xf32>
    %7 = arith.divf %5, %6 : vector<16x1xf32>
    %8 = vector.broadcast %7 : vector<16x1xf32> to vector<16x32xf32>
    %9 = arith.subf %1, %8 : vector<16x32xf32>
    %10 = arith.mulf %9, %9 : vector<16x32xf32>
    %cst_7 = arith.constant dense<0.000000e+00> : vector<16xf32>
    %11 = vector.multi_reduction <add>, %10, %cst_7 [1] : vector<16x32xf32> to vector<16xf32>
    %12 = vector.shape_cast %11 : vector<16xf32> to vector<16x1xf32>
    %cst_8 = arith.constant 3.200000e+01 : f32
    %13 = vector.broadcast %cst_8 : f32 to vector<16x1xf32>
    %14 = arith.divf %12, %13 : vector<16x1xf32>
    %cst_9 = arith.constant 9.99999974E-6 : f32
    %15 = vector.broadcast %cst_9 : f32 to vector<16x1xf32>
    %16 = arith.addf %14, %15 : vector<16x1xf32>
    %17 = math.rsqrt %16 : vector<16x1xf32>
    %18 = vector.broadcast %17 : vector<16x1xf32> to vector<16x32xf32>
    %19 = arith.mulf %9, %18 : vector<16x32xf32>
    %20 = vector.broadcast %2 : vector<1x32xf32> to vector<16x32xf32>
    %21 = arith.mulf %19, %20 : vector<16x32xf32>
    %22 = vector.broadcast %3 : vector<1x32xf32> to vector<16x32xf32>
    %23 = arith.addf %21, %22 : vector<16x32xf32>
    %24 = arith.truncf %23 : vector<16x32xf32> to vector<16x32xbf16>
    %25 = tpu.iota {dimensions = array<i32: 0>} : vector<16x16xi32>
    %26 = tpu.iota {dimensions = array<i32: 1>} : vector<16x16xi32>
    %27 = arith.cmpi sle, %26, %25 : vector<16x16xi32>
    %cst_10 = arith.constant 0.000000e+00 : f32
    %28 = vector.broadcast %cst_10 : f32 to vector<16x32xf32>
    %c0_11 = arith.constant 0 : index
    %c0_12 = arith.constant 0 : index
    %c0_13 = arith.constant 0 : index
    %29 = vector.load %arg4[%c0_11, %c0_12, %c0_13] : memref<4x32x8xf32, #tpu.memory_space<vmem>>, vector<1x32x8xf32>
    %30 = vector.shape_cast %29 : vector<1x32x8xf32> to vector<32x8xf32>
    %31 = arith.truncf %30 : vector<32x8xf32> to vector<32x8xbf16>
    %cst_14 = arith.constant dense<0.000000e+00> : vector<16x8xf32>
    %32 = tpu.matmul %24, %31, %cst_14 {dimension_numbers = #tpu.dot_dimension_numbers<[1], [0], [0], [1], [0, 0, 1, 1], [], []>} : vector<16x32xbf16>, vector<32x8xbf16>, vector<16x8xf32> -> vector<16x8xf32>
    %c0_15 = arith.constant 0 : index
    %c0_16 = arith.constant 0 : index
    %c0_17 = arith.constant 0 : index
    %33 = vector.load %arg7[%c0_15, %c0_16, %c0_17] : memref<4x1x8xf32, #tpu.memory_space<vmem>>, vector<1x1x8xf32>
    %34 = vector.shape_cast %33 : vector<1x1x8xf32> to vector<1x8xf32>
    %35 = vector.broadcast %34 : vector<1x8xf32> to vector<16x8xf32>
    %36 = arith.addf %32, %35 : vector<16x8xf32>
    %cst_18 = arith.constant 0.353553385 : f32
    %37 = vector.broadcast %cst_18 : f32 to vector<16x8xf32>
    %38 = arith.mulf %36, %37 : vector<16x8xf32>
    %c0_19 = arith.constant 0 : index
    %c0_20 = arith.constant 0 : index
    %c0_21 = arith.constant 0 : index
    %39 = vector.load %arg5[%c0_19, %c0_20, %c0_21] : memref<4x32x8xf32, #tpu.memory_space<vmem>>, vector<1x32x8xf32>
    %40 = vector.shape_cast %39 : vector<1x32x8xf32> to vector<32x8xf32>
    %41 = arith.truncf %40 : vector<32x8xf32> to vector<32x8xbf16>
    %cst_22 = arith.constant dense<0.000000e+00> : vector<16x8xf32>
    %42 = tpu.matmul %24, %41, %cst_22 {dimension_numbers = #tpu.dot_dimension_numbers<[1], [0], [0], [1], [0, 0, 1, 1], [], []>} : vector<16x32xbf16>, vector<32x8xbf16>, vector<16x8xf32> -> vector<16x8xf32>
    %c0_23 = arith.constant 0 : index
    %c0_24 = arith.constant 0 : index
    %c0_25 = arith.constant 0 : index
    %43 = vector.load %arg8[%c0_23, %c0_24, %c0_25] : memref<4x1x8xf32, #tpu.memory_space<vmem>>, vector<1x1x8xf32>
    %44 = vector.shape_cast %43 : vector<1x1x8xf32> to vector<1x8xf32>
    %45 = vector.broadcast %44 : vector<1x8xf32> to vector<16x8xf32>
    %46 = arith.addf %42, %45 : vector<16x8xf32>
    %c0_26 = arith.constant 0 : index
    %c0_27 = arith.constant 0 : index
    %c0_28 = arith.constant 0 : index
    %47 = vector.load %arg6[%c0_26, %c0_27, %c0_28] : memref<4x32x8xf32, #tpu.memory_space<vmem>>, vector<1x32x8xf32>
    %48 = vector.shape_cast %47 : vector<1x32x8xf32> to vector<32x8xf32>
    %49 = arith.truncf %48 : vector<32x8xf32> to vector<32x8xbf16>
    %cst_29 = arith.constant dense<0.000000e+00> : vector<16x8xf32>
    %50 = tpu.matmul %24, %49, %cst_29 {dimension_numbers = #tpu.dot_dimension_numbers<[1], [0], [0], [1], [0, 0, 1, 1], [], []>} : vector<16x32xbf16>, vector<32x8xbf16>, vector<16x8xf32> -> vector<16x8xf32>
    %c0_30 = arith.constant 0 : index
    %c0_31 = arith.constant 0 : index
    %c0_32 = arith.constant 0 : index
    %51 = vector.load %arg9[%c0_30, %c0_31, %c0_32] : memref<4x1x8xf32, #tpu.memory_space<vmem>>, vector<1x1x8xf32>
    %52 = vector.shape_cast %51 : vector<1x1x8xf32> to vector<1x8xf32>
    %53 = vector.broadcast %52 : vector<1x8xf32> to vector<16x8xf32>
    %54 = arith.addf %50, %53 : vector<16x8xf32>
    %55 = arith.truncf %38 : vector<16x8xf32> to vector<16x8xbf16>
    %56 = arith.truncf %46 : vector<16x8xf32> to vector<16x8xbf16>
    %cst_33 = arith.constant dense<0.000000e+00> : vector<16x16xf32>
    %57 = tpu.matmul %55, %56, %cst_33 {dimension_numbers = #tpu.dot_dimension_numbers<[1], [1], [0], [0], [0, 0, 1, 0], [], []>} : vector<16x8xbf16>, vector<16x8xbf16>, vector<16x16xf32> -> vector<16x16xf32>
    %cst_34 = arith.constant -1.000000e+30 : f32
    %58 = vector.broadcast %cst_34 : f32 to vector<16x16xf32>
    %59 = arith.select %27, %57, %58 : vector<16x16xi1>, vector<16x16xf32>
    %cst_35 = arith.constant dense<0xFF800000> : vector<16xf32>
    %60 = vector.multi_reduction <maximumf>, %59, %cst_35 [1] : vector<16x16xf32> to vector<16xf32>
    %61 = vector.shape_cast %60 : vector<16xf32> to vector<16x1xf32>
    %62 = vector.broadcast %61 : vector<16x1xf32> to vector<16x16xf32>
    %63 = arith.subf %59, %62 : vector<16x16xf32>
    %64 = math.exp %63 : vector<16x16xf32>
    %cst_36 = arith.constant dense<0.000000e+00> : vector<16xf32>
    %65 = vector.multi_reduction <add>, %64, %cst_36 [1] : vector<16x16xf32> to vector<16xf32>
    %66 = vector.shape_cast %65 : vector<16xf32> to vector<16x1xf32>
    %67 = tpu.reciprocal %66 {approx = true} : vector<16x1xf32> -> vector<16x1xf32>
    %68 = vector.broadcast %67 : vector<16x1xf32> to vector<16x16xf32>
    %69 = arith.mulf %64, %68 : vector<16x16xf32>
    %70 = arith.truncf %69 : vector<16x16xf32> to vector<16x16xbf16>
    %71 = arith.truncf %54 : vector<16x8xf32> to vector<16x8xbf16>
    %cst_37 = arith.constant dense<0.000000e+00> : vector<16x8xf32>
    %72 = tpu.matmul %70, %71, %cst_37 {dimension_numbers = #tpu.dot_dimension_numbers<[1], [0], [0], [1], [0, 0, 1, 1], [], []>} : vector<16x16xbf16>, vector<16x8xbf16>, vector<16x8xf32> -> vector<16x8xf32>
    %c0_38 = arith.constant 0 : index
    %c0_39 = arith.constant 0 : index
    %c0_40 = arith.constant 0 : index
    %73 = vector.load %arg10[%c0_38, %c0_39, %c0_40] : memref<4x8x32xf32, #tpu.memory_space<vmem>>, vector<1x8x32xf32>
    %74 = vector.shape_cast %73 : vector<1x8x32xf32> to vector<8x32xf32>
    %75 = arith.truncf %72 : vector<16x8xf32> to vector<16x8xbf16>
    %76 = arith.truncf %74 : vector<8x32xf32> to vector<8x32xbf16>
    %cst_41 = arith.constant dense<0.000000e+00> : vector<16x32xf32>
    %77 = tpu.matmul %75, %76, %cst_41 {dimension_numbers = #tpu.dot_dimension_numbers<[1], [0], [0], [1], [0, 0, 1, 1], [], []>} : vector<16x8xbf16>, vector<8x32xbf16>, vector<16x32xf32> -> vector<16x32xf32>
    %78 = arith.addf %28, %77 : vector<16x32xf32>
    %c1 = arith.constant 1 : index
    %c0_42 = arith.constant 0 : index
    %c0_43 = arith.constant 0 : index
    %79 = vector.load %arg4[%c1, %c0_42, %c0_43] : memref<4x32x8xf32, #tpu.memory_space<vmem>>, vector<1x32x8xf32>
    %80 = vector.shape_cast %79 : vector<1x32x8xf32> to vector<32x8xf32>
    %81 = arith.truncf %80 : vector<32x8xf32> to vector<32x8xbf16>
    %cst_44 = arith.constant dense<0.000000e+00> : vector<16x8xf32>
    %82 = tpu.matmul %24, %81, %cst_44 {dimension_numbers = #tpu.dot_dimension_numbers<[1], [0], [0], [1], [0, 0, 1, 1], [], []>} : vector<16x32xbf16>, vector<32x8xbf16>, vector<16x8xf32> -> vector<16x8xf32>
    %c1_45 = arith.constant 1 : index
    %c0_46 = arith.constant 0 : index
    %c0_47 = arith.constant 0 : index
    %83 = vector.load %arg7[%c1_45, %c0_46, %c0_47] : memref<4x1x8xf32, #tpu.memory_space<vmem>>, vector<1x1x8xf32>
    %84 = vector.shape_cast %83 : vector<1x1x8xf32> to vector<1x8xf32>
    %85 = vector.broadcast %84 : vector<1x8xf32> to vector<16x8xf32>
    %86 = arith.addf %82, %85 : vector<16x8xf32>
    %cst_48 = arith.constant 0.353553385 : f32
    %87 = vector.broadcast %cst_48 : f32 to vector<16x8xf32>
    %88 = arith.mulf %86, %87 : vector<16x8xf32>
    %c1_49 = arith.constant 1 : index
    %c0_50 = arith.constant 0 : index
    %c0_51 = arith.constant 0 : index
    %89 = vector.load %arg5[%c1_49, %c0_50, %c0_51] : memref<4x32x8xf32, #tpu.memory_space<vmem>>, vector<1x32x8xf32>
    %90 = vector.shape_cast %89 : vector<1x32x8xf32> to vector<32x8xf32>
    %91 = arith.truncf %90 : vector<32x8xf32> to vector<32x8xbf16>
    %cst_52 = arith.constant dense<0.000000e+00> : vector<16x8xf32>
    %92 = tpu.matmul %24, %91, %cst_52 {dimension_numbers = #tpu.dot_dimension_numbers<[1], [0], [0], [1], [0, 0, 1, 1], [], []>} : vector<16x32xbf16>, vector<32x8xbf16>, vector<16x8xf32> -> vector<16x8xf32>
    %c1_53 = arith.constant 1 : index
    %c0_54 = arith.constant 0 : index
    %c0_55 = arith.constant 0 : index
    %93 = vector.load %arg8[%c1_53, %c0_54, %c0_55] : memref<4x1x8xf32, #tpu.memory_space<vmem>>, vector<1x1x8xf32>
    %94 = vector.shape_cast %93 : vector<1x1x8xf32> to vector<1x8xf32>
    %95 = vector.broadcast %94 : vector<1x8xf32> to vector<16x8xf32>
    %96 = arith.addf %92, %95 : vector<16x8xf32>
    %c1_56 = arith.constant 1 : index
    %c0_57 = arith.constant 0 : index
    %c0_58 = arith.constant 0 : index
    %97 = vector.load %arg6[%c1_56, %c0_57, %c0_58] : memref<4x32x8xf32, #tpu.memory_space<vmem>>, vector<1x32x8xf32>
    %98 = vector.shape_cast %97 : vector<1x32x8xf32> to vector<32x8xf32>
    %99 = arith.truncf %98 : vector<32x8xf32> to vector<32x8xbf16>
    %cst_59 = arith.constant dense<0.000000e+00> : vector<16x8xf32>
    %100 = tpu.matmul %24, %99, %cst_59 {dimension_numbers = #tpu.dot_dimension_numbers<[1], [0], [0], [1], [0, 0, 1, 1], [], []>} : vector<16x32xbf16>, vector<32x8xbf16>, vector<16x8xf32> -> vector<16x8xf32>
    %c1_60 = arith.constant 1 : index
    %c0_61 = arith.constant 0 : index
    %c0_62 = arith.constant 0 : index
    %101 = vector.load %arg9[%c1_60, %c0_61, %c0_62] : memref<4x1x8xf32, #tpu.memory_space<vmem>>, vector<1x1x8xf32>
    %102 = vector.shape_cast %101 : vector<1x1x8xf32> to vector<1x8xf32>
    %103 = vector.broadcast %102 : vector<1x8xf32> to vector<16x8xf32>
    %104 = arith.addf %100, %103 : vector<16x8xf32>
    %105 = arith.truncf %88 : vector<16x8xf32> to vector<16x8xbf16>
    %106 = arith.truncf %96 : vector<16x8xf32> to vector<16x8xbf16>
    %cst_63 = arith.constant dense<0.000000e+00> : vector<16x16xf32>
    %107 = tpu.matmul %105, %106, %cst_63 {dimension_numbers = #tpu.dot_dimension_numbers<[1], [1], [0], [0], [0, 0, 1, 0], [], []>} : vector<16x8xbf16>, vector<16x8xbf16>, vector<16x16xf32> -> vector<16x16xf32>
    %cst_64 = arith.constant -1.000000e+30 : f32
    %108 = vector.broadcast %cst_64 : f32 to vector<16x16xf32>
    %109 = arith.select %27, %107, %108 : vector<16x16xi1>, vector<16x16xf32>
    %cst_65 = arith.constant dense<0xFF800000> : vector<16xf32>
    %110 = vector.multi_reduction <maximumf>, %109, %cst_65 [1] : vector<16x16xf32> to vector<16xf32>
    %111 = vector.shape_cast %110 : vector<16xf32> to vector<16x1xf32>
    %112 = vector.broadcast %111 : vector<16x1xf32> to vector<16x16xf32>
    %113 = arith.subf %109, %112 : vector<16x16xf32>
    %114 = math.exp %113 : vector<16x16xf32>
    %cst_66 = arith.constant dense<0.000000e+00> : vector<16xf32>
    %115 = vector.multi_reduction <add>, %114, %cst_66 [1] : vector<16x16xf32> to vector<16xf32>
    %116 = vector.shape_cast %115 : vector<16xf32> to vector<16x1xf32>
    %117 = tpu.reciprocal %116 {approx = true} : vector<16x1xf32> -> vector<16x1xf32>
    %118 = vector.broadcast %117 : vector<16x1xf32> to vector<16x16xf32>
    %119 = arith.mulf %114, %118 : vector<16x16xf32>
    %120 = arith.truncf %119 : vector<16x16xf32> to vector<16x16xbf16>
    %121 = arith.truncf %104 : vector<16x8xf32> to vector<16x8xbf16>
    %cst_67 = arith.constant dense<0.000000e+00> : vector<16x8xf32>
    %122 = tpu.matmul %120, %121, %cst_67 {dimension_numbers = #tpu.dot_dimension_numbers<[1], [0], [0], [1], [0, 0, 1, 1], [], []>} : vector<16x16xbf16>, vector<16x8xbf16>, vector<16x8xf32> -> vector<16x8xf32>
    %c1_68 = arith.constant 1 : index
    %c0_69 = arith.constant 0 : index
    %c0_70 = arith.constant 0 : index
    %123 = vector.load %arg10[%c1_68, %c0_69, %c0_70] : memref<4x8x32xf32, #tpu.memory_space<vmem>>, vector<1x8x32xf32>
    %124 = vector.shape_cast %123 : vector<1x8x32xf32> to vector<8x32xf32>
    %125 = arith.truncf %122 : vector<16x8xf32> to vector<16x8xbf16>
    %126 = arith.truncf %124 : vector<8x32xf32> to vector<8x32xbf16>
    %cst_71 = arith.constant dense<0.000000e+00> : vector<16x32xf32>
    %127 = tpu.matmul %125, %126, %cst_71 {dimension_numbers = #tpu.dot_dimension_numbers<[1], [0], [0], [1], [0, 0, 1, 1], [], []>} : vector<16x8xbf16>, vector<8x32xbf16>, vector<16x32xf32> -> vector<16x32xf32>
    %128 = arith.addf %78, %127 : vector<16x32xf32>
    %c2 = arith.constant 2 : index
    %c0_72 = arith.constant 0 : index
    %c0_73 = arith.constant 0 : index
    %129 = vector.load %arg4[%c2, %c0_72, %c0_73] : memref<4x32x8xf32, #tpu.memory_space<vmem>>, vector<1x32x8xf32>
    %130 = vector.shape_cast %129 : vector<1x32x8xf32> to vector<32x8xf32>
    %131 = arith.truncf %130 : vector<32x8xf32> to vector<32x8xbf16>
    %cst_74 = arith.constant dense<0.000000e+00> : vector<16x8xf32>
    %132 = tpu.matmul %24, %131, %cst_74 {dimension_numbers = #tpu.dot_dimension_numbers<[1], [0], [0], [1], [0, 0, 1, 1], [], []>} : vector<16x32xbf16>, vector<32x8xbf16>, vector<16x8xf32> -> vector<16x8xf32>
    %c2_75 = arith.constant 2 : index
    %c0_76 = arith.constant 0 : index
    %c0_77 = arith.constant 0 : index
    %133 = vector.load %arg7[%c2_75, %c0_76, %c0_77] : memref<4x1x8xf32, #tpu.memory_space<vmem>>, vector<1x1x8xf32>
    %134 = vector.shape_cast %133 : vector<1x1x8xf32> to vector<1x8xf32>
    %135 = vector.broadcast %134 : vector<1x8xf32> to vector<16x8xf32>
    %136 = arith.addf %132, %135 : vector<16x8xf32>
    %cst_78 = arith.constant 0.353553385 : f32
    %137 = vector.broadcast %cst_78 : f32 to vector<16x8xf32>
    %138 = arith.mulf %136, %137 : vector<16x8xf32>
    %c2_79 = arith.constant 2 : index
    %c0_80 = arith.constant 0 : index
    %c0_81 = arith.constant 0 : index
    %139 = vector.load %arg5[%c2_79, %c0_80, %c0_81] : memref<4x32x8xf32, #tpu.memory_space<vmem>>, vector<1x32x8xf32>
    %140 = vector.shape_cast %139 : vector<1x32x8xf32> to vector<32x8xf32>
    %141 = arith.truncf %140 : vector<32x8xf32> to vector<32x8xbf16>
    %cst_82 = arith.constant dense<0.000000e+00> : vector<16x8xf32>
    %142 = tpu.matmul %24, %141, %cst_82 {dimension_numbers = #tpu.dot_dimension_numbers<[1], [0], [0], [1], [0, 0, 1, 1], [], []>} : vector<16x32xbf16>, vector<32x8xbf16>, vector<16x8xf32> -> vector<16x8xf32>
    %c2_83 = arith.constant 2 : index
    %c0_84 = arith.constant 0 : index
    %c0_85 = arith.constant 0 : index
    %143 = vector.load %arg8[%c2_83, %c0_84, %c0_85] : memref<4x1x8xf32, #tpu.memory_space<vmem>>, vector<1x1x8xf32>
    %144 = vector.shape_cast %143 : vector<1x1x8xf32> to vector<1x8xf32>
    %145 = vector.broadcast %144 : vector<1x8xf32> to vector<16x8xf32>
    %146 = arith.addf %142, %145 : vector<16x8xf32>
    %c2_86 = arith.constant 2 : index
    %c0_87 = arith.constant 0 : index
    %c0_88 = arith.constant 0 : index
    %147 = vector.load %arg6[%c2_86, %c0_87, %c0_88] : memref<4x32x8xf32, #tpu.memory_space<vmem>>, vector<1x32x8xf32>
    %148 = vector.shape_cast %147 : vector<1x32x8xf32> to vector<32x8xf32>
    %149 = arith.truncf %148 : vector<32x8xf32> to vector<32x8xbf16>
    %cst_89 = arith.constant dense<0.000000e+00> : vector<16x8xf32>
    %150 = tpu.matmul %24, %149, %cst_89 {dimension_numbers = #tpu.dot_dimension_numbers<[1], [0], [0], [1], [0, 0, 1, 1], [], []>} : vector<16x32xbf16>, vector<32x8xbf16>, vector<16x8xf32> -> vector<16x8xf32>
    %c2_90 = arith.constant 2 : index
    %c0_91 = arith.constant 0 : index
    %c0_92 = arith.constant 0 : index
    %151 = vector.load %arg9[%c2_90, %c0_91, %c0_92] : memref<4x1x8xf32, #tpu.memory_space<vmem>>, vector<1x1x8xf32>
    %152 = vector.shape_cast %151 : vector<1x1x8xf32> to vector<1x8xf32>
    %153 = vector.broadcast %152 : vector<1x8xf32> to vector<16x8xf32>
    %154 = arith.addf %150, %153 : vector<16x8xf32>
    %155 = arith.truncf %138 : vector<16x8xf32> to vector<16x8xbf16>
    %156 = arith.truncf %146 : vector<16x8xf32> to vector<16x8xbf16>
    %cst_93 = arith.constant dense<0.000000e+00> : vector<16x16xf32>
    %157 = tpu.matmul %155, %156, %cst_93 {dimension_numbers = #tpu.dot_dimension_numbers<[1], [1], [0], [0], [0, 0, 1, 0], [], []>} : vector<16x8xbf16>, vector<16x8xbf16>, vector<16x16xf32> -> vector<16x16xf32>
    %cst_94 = arith.constant -1.000000e+30 : f32
    %158 = vector.broadcast %cst_94 : f32 to vector<16x16xf32>
    %159 = arith.select %27, %157, %158 : vector<16x16xi1>, vector<16x16xf32>
    %cst_95 = arith.constant dense<0xFF800000> : vector<16xf32>
    %160 = vector.multi_reduction <maximumf>, %159, %cst_95 [1] : vector<16x16xf32> to vector<16xf32>
    %161 = vector.shape_cast %160 : vector<16xf32> to vector<16x1xf32>
    %162 = vector.broadcast %161 : vector<16x1xf32> to vector<16x16xf32>
    %163 = arith.subf %159, %162 : vector<16x16xf32>
    %164 = math.exp %163 : vector<16x16xf32>
    %cst_96 = arith.constant dense<0.000000e+00> : vector<16xf32>
    %165 = vector.multi_reduction <add>, %164, %cst_96 [1] : vector<16x16xf32> to vector<16xf32>
    %166 = vector.shape_cast %165 : vector<16xf32> to vector<16x1xf32>
    %167 = tpu.reciprocal %166 {approx = true} : vector<16x1xf32> -> vector<16x1xf32>
    %168 = vector.broadcast %167 : vector<16x1xf32> to vector<16x16xf32>
    %169 = arith.mulf %164, %168 : vector<16x16xf32>
    %170 = arith.truncf %169 : vector<16x16xf32> to vector<16x16xbf16>
    %171 = arith.truncf %154 : vector<16x8xf32> to vector<16x8xbf16>
    %cst_97 = arith.constant dense<0.000000e+00> : vector<16x8xf32>
    %172 = tpu.matmul %170, %171, %cst_97 {dimension_numbers = #tpu.dot_dimension_numbers<[1], [0], [0], [1], [0, 0, 1, 1], [], []>} : vector<16x16xbf16>, vector<16x8xbf16>, vector<16x8xf32> -> vector<16x8xf32>
    %c2_98 = arith.constant 2 : index
    %c0_99 = arith.constant 0 : index
    %c0_100 = arith.constant 0 : index
    %173 = vector.load %arg10[%c2_98, %c0_99, %c0_100] : memref<4x8x32xf32, #tpu.memory_space<vmem>>, vector<1x8x32xf32>
    %174 = vector.shape_cast %173 : vector<1x8x32xf32> to vector<8x32xf32>
    %175 = arith.truncf %172 : vector<16x8xf32> to vector<16x8xbf16>
    %176 = arith.truncf %174 : vector<8x32xf32> to vector<8x32xbf16>
    %cst_101 = arith.constant dense<0.000000e+00> : vector<16x32xf32>
    %177 = tpu.matmul %175, %176, %cst_101 {dimension_numbers = #tpu.dot_dimension_numbers<[1], [0], [0], [1], [0, 0, 1, 1], [], []>} : vector<16x8xbf16>, vector<8x32xbf16>, vector<16x32xf32> -> vector<16x32xf32>
    %178 = arith.addf %128, %177 : vector<16x32xf32>
    %c3 = arith.constant 3 : index
    %c0_102 = arith.constant 0 : index
    %c0_103 = arith.constant 0 : index
    %179 = vector.load %arg4[%c3, %c0_102, %c0_103] : memref<4x32x8xf32, #tpu.memory_space<vmem>>, vector<1x32x8xf32>
    %180 = vector.shape_cast %179 : vector<1x32x8xf32> to vector<32x8xf32>
    %181 = arith.truncf %180 : vector<32x8xf32> to vector<32x8xbf16>
    %cst_104 = arith.constant dense<0.000000e+00> : vector<16x8xf32>
    %182 = tpu.matmul %24, %181, %cst_104 {dimension_numbers = #tpu.dot_dimension_numbers<[1], [0], [0], [1], [0, 0, 1, 1], [], []>} : vector<16x32xbf16>, vector<32x8xbf16>, vector<16x8xf32> -> vector<16x8xf32>
    %c3_105 = arith.constant 3 : index
    %c0_106 = arith.constant 0 : index
    %c0_107 = arith.constant 0 : index
    %183 = vector.load %arg7[%c3_105, %c0_106, %c0_107] : memref<4x1x8xf32, #tpu.memory_space<vmem>>, vector<1x1x8xf32>
    %184 = vector.shape_cast %183 : vector<1x1x8xf32> to vector<1x8xf32>
    %185 = vector.broadcast %184 : vector<1x8xf32> to vector<16x8xf32>
    %186 = arith.addf %182, %185 : vector<16x8xf32>
    %cst_108 = arith.constant 0.353553385 : f32
    %187 = vector.broadcast %cst_108 : f32 to vector<16x8xf32>
    %188 = arith.mulf %186, %187 : vector<16x8xf32>
    %c3_109 = arith.constant 3 : index
    %c0_110 = arith.constant 0 : index
    %c0_111 = arith.constant 0 : index
    %189 = vector.load %arg5[%c3_109, %c0_110, %c0_111] : memref<4x32x8xf32, #tpu.memory_space<vmem>>, vector<1x32x8xf32>
    %190 = vector.shape_cast %189 : vector<1x32x8xf32> to vector<32x8xf32>
    %191 = arith.truncf %190 : vector<32x8xf32> to vector<32x8xbf16>
    %cst_112 = arith.constant dense<0.000000e+00> : vector<16x8xf32>
    %192 = tpu.matmul %24, %191, %cst_112 {dimension_numbers = #tpu.dot_dimension_numbers<[1], [0], [0], [1], [0, 0, 1, 1], [], []>} : vector<16x32xbf16>, vector<32x8xbf16>, vector<16x8xf32> -> vector<16x8xf32>
    %c3_113 = arith.constant 3 : index
    %c0_114 = arith.constant 0 : index
    %c0_115 = arith.constant 0 : index
    %193 = vector.load %arg8[%c3_113, %c0_114, %c0_115] : memref<4x1x8xf32, #tpu.memory_space<vmem>>, vector<1x1x8xf32>
    %194 = vector.shape_cast %193 : vector<1x1x8xf32> to vector<1x8xf32>
    %195 = vector.broadcast %194 : vector<1x8xf32> to vector<16x8xf32>
    %196 = arith.addf %192, %195 : vector<16x8xf32>
    %c3_116 = arith.constant 3 : index
    %c0_117 = arith.constant 0 : index
    %c0_118 = arith.constant 0 : index
    %197 = vector.load %arg6[%c3_116, %c0_117, %c0_118] : memref<4x32x8xf32, #tpu.memory_space<vmem>>, vector<1x32x8xf32>
    %198 = vector.shape_cast %197 : vector<1x32x8xf32> to vector<32x8xf32>
    %199 = arith.truncf %198 : vector<32x8xf32> to vector<32x8xbf16>
    %cst_119 = arith.constant dense<0.000000e+00> : vector<16x8xf32>
    %200 = tpu.matmul %24, %199, %cst_119 {dimension_numbers = #tpu.dot_dimension_numbers<[1], [0], [0], [1], [0, 0, 1, 1], [], []>} : vector<16x32xbf16>, vector<32x8xbf16>, vector<16x8xf32> -> vector<16x8xf32>
    %c3_120 = arith.constant 3 : index
    %c0_121 = arith.constant 0 : index
    %c0_122 = arith.constant 0 : index
    %201 = vector.load %arg9[%c3_120, %c0_121, %c0_122] : memref<4x1x8xf32, #tpu.memory_space<vmem>>, vector<1x1x8xf32>
    %202 = vector.shape_cast %201 : vector<1x1x8xf32> to vector<1x8xf32>
    %203 = vector.broadcast %202 : vector<1x8xf32> to vector<16x8xf32>
    %204 = arith.addf %200, %203 : vector<16x8xf32>
    %205 = arith.truncf %188 : vector<16x8xf32> to vector<16x8xbf16>
    %206 = arith.truncf %196 : vector<16x8xf32> to vector<16x8xbf16>
    %cst_123 = arith.constant dense<0.000000e+00> : vector<16x16xf32>
    %207 = tpu.matmul %205, %206, %cst_123 {dimension_numbers = #tpu.dot_dimension_numbers<[1], [1], [0], [0], [0, 0, 1, 0], [], []>} : vector<16x8xbf16>, vector<16x8xbf16>, vector<16x16xf32> -> vector<16x16xf32>
    %cst_124 = arith.constant -1.000000e+30 : f32
    %208 = vector.broadcast %cst_124 : f32 to vector<16x16xf32>
    %209 = arith.select %27, %207, %208 : vector<16x16xi1>, vector<16x16xf32>
    %cst_125 = arith.constant dense<0xFF800000> : vector<16xf32>
    %210 = vector.multi_reduction <maximumf>, %209, %cst_125 [1] : vector<16x16xf32> to vector<16xf32>
    %211 = vector.shape_cast %210 : vector<16xf32> to vector<16x1xf32>
    %212 = vector.broadcast %211 : vector<16x1xf32> to vector<16x16xf32>
    %213 = arith.subf %209, %212 : vector<16x16xf32>
    %214 = math.exp %213 : vector<16x16xf32>
    %cst_126 = arith.constant dense<0.000000e+00> : vector<16xf32>
    %215 = vector.multi_reduction <add>, %214, %cst_126 [1] : vector<16x16xf32> to vector<16xf32>
    %216 = vector.shape_cast %215 : vector<16xf32> to vector<16x1xf32>
    %217 = tpu.reciprocal %216 {approx = true} : vector<16x1xf32> -> vector<16x1xf32>
    %218 = vector.broadcast %217 : vector<16x1xf32> to vector<16x16xf32>
    %219 = arith.mulf %214, %218 : vector<16x16xf32>
    %220 = arith.truncf %219 : vector<16x16xf32> to vector<16x16xbf16>
    %221 = arith.truncf %204 : vector<16x8xf32> to vector<16x8xbf16>
    %cst_127 = arith.constant dense<0.000000e+00> : vector<16x8xf32>
    %222 = tpu.matmul %220, %221, %cst_127 {dimension_numbers = #tpu.dot_dimension_numbers<[1], [0], [0], [1], [0, 0, 1, 1], [], []>} : vector<16x16xbf16>, vector<16x8xbf16>, vector<16x8xf32> -> vector<16x8xf32>
    %c3_128 = arith.constant 3 : index
    %c0_129 = arith.constant 0 : index
    %c0_130 = arith.constant 0 : index
    %223 = vector.load %arg10[%c3_128, %c0_129, %c0_130] : memref<4x8x32xf32, #tpu.memory_space<vmem>>, vector<1x8x32xf32>
    %224 = vector.shape_cast %223 : vector<1x8x32xf32> to vector<8x32xf32>
    %225 = arith.truncf %222 : vector<16x8xf32> to vector<16x8xbf16>
    %226 = arith.truncf %224 : vector<8x32xf32> to vector<8x32xbf16>
    %cst_131 = arith.constant dense<0.000000e+00> : vector<16x32xf32>
    %227 = tpu.matmul %225, %226, %cst_131 {dimension_numbers = #tpu.dot_dimension_numbers<[1], [0], [0], [1], [0, 0, 1, 1], [], []>} : vector<16x8xbf16>, vector<8x32xbf16>, vector<16x32xf32> -> vector<16x32xf32>
    %228 = arith.addf %178, %227 : vector<16x32xf32>
    %229 = arith.addf %1, %228 : vector<16x32xf32>
    %c0_132 = arith.constant 0 : index
    %c0_133 = arith.constant 0 : index
    %230 = vector.load %arg11[%c0_132, %c0_133] : memref<1x32xf32, #tpu.memory_space<vmem>>, vector<1x32xf32>
    %231 = vector.broadcast %230 : vector<1x32xf32> to vector<16x32xf32>
    %232 = arith.addf %229, %231 : vector<16x32xf32>
    %c0_134 = arith.constant 0 : index
    %c0_135 = arith.constant 0 : index
    %233 = vector.load %arg12[%c0_134, %c0_135] : memref<1x32xf32, #tpu.memory_space<vmem>>, vector<1x32xf32>
    %c0_136 = arith.constant 0 : index
    %c0_137 = arith.constant 0 : index
    %234 = vector.load %arg13[%c0_136, %c0_137] : memref<1x32xf32, #tpu.memory_space<vmem>>, vector<1x32xf32>
    %cst_138 = arith.constant dense<0.000000e+00> : vector<16xf32>
    %235 = vector.multi_reduction <add>, %232, %cst_138 [1] : vector<16x32xf32> to vector<16xf32>
    %236 = vector.shape_cast %235 : vector<16xf32> to vector<16x1xf32>
    %cst_139 = arith.constant 3.200000e+01 : f32
    %237 = vector.broadcast %cst_139 : f32 to vector<16x1xf32>
    %238 = arith.divf %236, %237 : vector<16x1xf32>
    %239 = vector.broadcast %238 : vector<16x1xf32> to vector<16x32xf32>
    %240 = arith.subf %232, %239 : vector<16x32xf32>
    %241 = arith.mulf %240, %240 : vector<16x32xf32>
    %cst_140 = arith.constant dense<0.000000e+00> : vector<16xf32>
    %242 = vector.multi_reduction <add>, %241, %cst_140 [1] : vector<16x32xf32> to vector<16xf32>
    %243 = vector.shape_cast %242 : vector<16xf32> to vector<16x1xf32>
    %cst_141 = arith.constant 3.200000e+01 : f32
    %244 = vector.broadcast %cst_141 : f32 to vector<16x1xf32>
    %245 = arith.divf %243, %244 : vector<16x1xf32>
    %cst_142 = arith.constant 9.99999974E-6 : f32
    %246 = vector.broadcast %cst_142 : f32 to vector<16x1xf32>
    %247 = arith.addf %245, %246 : vector<16x1xf32>
    %248 = math.rsqrt %247 : vector<16x1xf32>
    %249 = vector.broadcast %248 : vector<16x1xf32> to vector<16x32xf32>
    %250 = arith.mulf %240, %249 : vector<16x32xf32>
    %251 = vector.broadcast %233 : vector<1x32xf32> to vector<16x32xf32>
    %252 = arith.mulf %250, %251 : vector<16x32xf32>
    %253 = vector.broadcast %234 : vector<1x32xf32> to vector<16x32xf32>
    %254 = arith.addf %252, %253 : vector<16x32xf32>
    %c0_143 = arith.constant 0 : index
    %c0_144 = arith.constant 0 : index
    %255 = vector.load %arg14[%c0_143, %c0_144] : memref<32x128xf32, #tpu.memory_space<vmem>>, vector<32x128xf32>
    %256 = arith.truncf %254 : vector<16x32xf32> to vector<16x32xbf16>
    %257 = arith.truncf %255 : vector<32x128xf32> to vector<32x128xbf16>
    %cst_145 = arith.constant dense<0.000000e+00> : vector<16x128xf32>
    %258 = tpu.matmul %256, %257, %cst_145 {dimension_numbers = #tpu.dot_dimension_numbers<[1], [0], [0], [1], [0, 0, 1, 1], [], []>} : vector<16x32xbf16>, vector<32x128xbf16>, vector<16x128xf32> -> vector<16x128xf32>
    %c0_146 = arith.constant 0 : index
    %c0_147 = arith.constant 0 : index
    %259 = vector.load %arg15[%c0_146, %c0_147] : memref<1x128xf32, #tpu.memory_space<vmem>>, vector<1x128xf32>
    %260 = vector.broadcast %259 : vector<1x128xf32> to vector<16x128xf32>
    %261 = arith.addf %258, %260 : vector<16x128xf32>
    %cst_148 = arith.constant 5.000000e-01 : f32
    %262 = vector.broadcast %cst_148 : f32 to vector<16x128xf32>
    %263 = arith.mulf %262, %261 : vector<16x128xf32>
    %cst_149 = arith.constant 4.471500e-02 : f32
    %264 = vector.broadcast %cst_149 : f32 to vector<16x128xf32>
    %265 = arith.mulf %264, %261 : vector<16x128xf32>
    %266 = arith.mulf %265, %261 : vector<16x128xf32>
    %267 = arith.mulf %266, %261 : vector<16x128xf32>
    %268 = arith.addf %261, %267 : vector<16x128xf32>
    %cst_150 = arith.constant 0.797884583 : f32
    %269 = vector.broadcast %cst_150 : f32 to vector<16x128xf32>
    %270 = arith.mulf %269, %268 : vector<16x128xf32>
    %271 = math.tanh %270 : vector<16x128xf32>
    %cst_151 = arith.constant 1.000000e+00 : f32
    %272 = vector.broadcast %cst_151 : f32 to vector<16x128xf32>
    %273 = arith.addf %272, %271 : vector<16x128xf32>
    %274 = arith.mulf %263, %273 : vector<16x128xf32>
    %c0_152 = arith.constant 0 : index
    %c0_153 = arith.constant 0 : index
    %275 = vector.load %arg16[%c0_152, %c0_153] : memref<128x32xf32, #tpu.memory_space<vmem>>, vector<128x32xf32>
    %276 = arith.truncf %274 : vector<16x128xf32> to vector<16x128xbf16>
    %277 = arith.truncf %275 : vector<128x32xf32> to vector<128x32xbf16>
    %cst_154 = arith.constant dense<0.000000e+00> : vector<16x32xf32>
    %278 = tpu.matmul %276, %277, %cst_154 {dimension_numbers = #tpu.dot_dimension_numbers<[1], [0], [0], [1], [0, 0, 1, 1], [], []>} : vector<16x128xbf16>, vector<128x32xbf16>, vector<16x32xf32> -> vector<16x32xf32>
    %c0_155 = arith.constant 0 : index
    %c0_156 = arith.constant 0 : index
    %279 = vector.load %arg17[%c0_155, %c0_156] : memref<1x32xf32, #tpu.memory_space<vmem>>, vector<1x32xf32>
    %280 = vector.broadcast %279 : vector<1x32xf32> to vector<16x32xf32>
    %281 = arith.addf %278, %280 : vector<16x32xf32>
    %282 = arith.addf %232, %281 : vector<16x32xf32>
    %c0_157 = arith.constant 0 : index
    %c0_158 = arith.constant 0 : index
    %c0_159 = arith.constant 0 : index
    %283 = vector.load %arg18[%c0_157, %c0_158, %c0_159] : memref<1x16x32xf32, #tpu.memory_space<vmem>>, vector<1x16x32xf32>
    %284 = vector.shape_cast %283 : vector<1x16x32xf32> to vector<16x32xf32>
    %285 = vector.shape_cast %282 : vector<16x32xf32> to vector<1x16x32xf32>
    tpu.vector_store %arg18[%c0_157, %c0_158, %c0_159], %285 {strides = array<i32>} : memref<1x16x32xf32, #tpu.memory_space<vmem>>, vector<1x16x32xf32>,
    return
  }
  func.func @transform_0(%arg0: i32) -> (i32, i32, i32) {
    %c0_i32 = arith.constant 0 : i32
    %c0_i32_0 = arith.constant 0 : i32
    %c0_i32_1 = arith.constant 0 : i32
    return %arg0, %c0_i32, %c0_i32_0 : i32, i32, i32
  }
  func.func @transform_1(%arg0: i32) -> (i32, i32) {
    %c0_i32 = arith.constant 0 : i32
    %c0_i32_0 = arith.constant 0 : i32
    %c0_i32_1 = arith.constant 0 : i32
    return %c0_i32, %c0_i32_0 : i32, i32
  }
  func.func @transform_2(%arg0: i32) -> (i32, i32) {
    %c0_i32 = arith.constant 0 : i32
    %c0_i32_0 = arith.constant 0 : i32
    %c0_i32_1 = arith.constant 0 : i32
    return %c0_i32, %c0_i32_0 : i32, i32
  }
  func.func @transform_3(%arg0: i32) -> (i32, i32, i32) {
    %c0_i32 = arith.constant 0 : i32
    %c0_i32_0 = arith.constant 0 : i32
    %c0_i32_1 = arith.constant 0 : i32
    %c0_i32_2 = arith.constant 0 : i32
    return %c0_i32, %c0_i32_0, %c0_i32_1 : i32, i32, i32
  }
  func.func @transform_4(%arg0: i32) -> (i32, i32, i32) {
    %c0_i32 = arith.constant 0 : i32
    %c0_i32_0 = arith.constant 0 : i32
    %c0_i32_1 = arith.constant 0 : i32
    %c0_i32_2 = arith.constant 0 : i32
    return %c0_i32, %c0_i32_0, %c0_i32_1 : i32, i32, i32
  }
  func.func @transform_5(%arg0: i32) -> (i32, i32, i32) {
    %c0_i32 = arith.constant 0 : i32
    %c0_i32_0 = arith.constant 0 : i32
    %c0_i32_1 = arith.constant 0 : i32
    %c0_i32_2 = arith.constant 0 : i32
    return %c0_i32, %c0_i32_0, %c0_i32_1 : i32, i32, i32
  }
  func.func @transform_6(%arg0: i32) -> (i32, i32, i32) {
    %c0_i32 = arith.constant 0 : i32
    %c0_i32_0 = arith.constant 0 : i32
    %c0_i32_1 = arith.constant 0 : i32
    %c0_i32_2 = arith.constant 0 : i32
    return %c0_i32, %c0_i32_0, %c0_i32_1 : i32, i32, i32
  }
  func.func @transform_7(%arg0: i32) -> (i32, i32, i32) {
    %c0_i32 = arith.constant 0 : i32
    %c0_i32_0 = arith.constant 0 : i32
    %c0_i32_1 = arith.constant 0 : i32
    %c0_i32_2 = arith.constant 0 : i32
    return %c0_i32, %c0_i32_0, %c0_i32_1 : i32, i32, i32
  }
  func.func @transform_8(%arg0: i32) -> (i32, i32, i32) {
    %c0_i32 = arith.constant 0 : i32
    %c0_i32_0 = arith.constant 0 : i32
    %c0_i32_1 = arith.constant 0 : i32
    %c0_i32_2 = arith.constant 0 : i32
    return %c0_i32, %c0_i32_0, %c0_i32_1 : i32, i32, i32
  }
  func.func @transform_9(%arg0: i32) -> (i32, i32, i32) {
    %c0_i32 = arith.constant 0 : i32
    %c0_i32_0 = arith.constant 0 : i32
    %c0_i32_1 = arith.constant 0 : i32
    %c0_i32_2 = arith.constant 0 : i32
    return %c0_i32, %c0_i32_0, %c0_i32_1 : i32, i32, i32
  }
  func.func @transform_10(%arg0: i32) -> (i32, i32) {
    %c0_i32 = arith.constant 0 : i32
    %c0_i32_0 = arith.constant 0 : i32
    %c0_i32_1 = arith.constant 0 : i32
    return %c0_i32, %c0_i32_0 : i32, i32
  }
  func.func @transform_11(%arg0: i32) -> (i32, i32) {
    %c0_i32 = arith.constant 0 : i32
    %c0_i32_0 = arith.constant 0 : i32
    %c0_i32_1 = arith.constant 0 : i32
    return %c0_i32, %c0_i32_0 : i32, i32
  }
  func.func @transform_12(%arg0: i32) -> (i32, i32) {
    %c0_i32 = arith.constant 0 : i32
    %c0_i32_0 = arith.constant 0 : i32
    %c0_i32_1 = arith.constant 0 : i32
    return %c0_i32, %c0_i32_0 : i32, i32
  }
  func.func @transform_13(%arg0: i32) -> (i32, i32) {
    %c0_i32 = arith.constant 0 : i32
    %c0_i32_0 = arith.constant 0 : i32
    %c0_i32_1 = arith.constant 0 : i32
    return %c0_i32, %c0_i32_0 : i32, i32
  }
  func.func @transform_14(%arg0: i32) -> (i32, i32) {
    %c0_i32 = arith.constant 0 : i32
    %c0_i32_0 = arith.constant 0 : i32
    %c0_i32_1 = arith.constant 0 : i32
    return %c0_i32, %c0_i32_0 : i32, i32
  }
  func.func @transform_15(%arg0: i32) -> (i32, i32) {
    %c0_i32 = arith.constant 0 : i32
    %c0_i32_0 = arith.constant 0 : i32
    %c0_i32_1 = arith.constant 0 : i32
    return %c0_i32, %c0_i32_0 : i32, i32
  }
  func.func @transform_16(%arg0: i32) -> (i32, i32) {
    %c0_i32 = arith.constant 0 : i32
    %c0_i32_0 = arith.constant 0 : i32
    %c0_i32_1 = arith.constant 0 : i32
    return %c0_i32, %c0_i32_0 : i32, i32
  }
  func.func @transform_17(%arg0: i32) -> (i32, i32, i32) {
    %c0_i32 = arith.constant 0 : i32
    %c0_i32_0 = arith.constant 0 : i32
    %c0_i32_1 = arith.constant 0 : i32
    return %arg0, %c0_i32, %c0_i32_0 : i32, i32, i32
  }
}

</mosaic_0001>

<llo_original>
// kernel: decap_forward.7
$region0: #{decap_forward.7}
  #allocation0 [shape = 'u32[]', space=smem, size = 0x4, offset = 0x4, fixed_abs, tag = 'smem constant byte address 0x4 - core index']
  #allocation1 [shape = 'u32[144,128]{1,0:T(1,128)}', space=vmem, size = 0x12000, scoped, tag = 'internal scratch']
  %s0 = inlined_call_operand.vmem [shape: f32[2,16,32], index: 0, kind: input, shape index: {}]
  %s1 = inlined_call_operand.vmem [shape: f32[1,32], index: 1, kind: input, shape index: {}]
  %s2 = inlined_call_operand.vmem [shape: f32[1,32], index: 2, kind: input, shape index: {}]
  %s3 = inlined_call_operand.vmem [shape: f32[128,32], index: 3, kind: input, shape index: {}]
  %s4 = inlined_call_operand.vmem [shape: f32[2,16,128], index: 4, kind: output, shape index: {}]
  %s5 = sld [smem:[#allocation0]]
  $region49: #{decap_forward.7} parent=0
    _
  %s7 = ssub.s32 1, %s5
  %s8 = scalar_select 0, %s7, %s5
  loop: start=0, step=1, limit=4
  $region2: #{decap_forward.7} parent=0 // loop_pre_header
    _
  $region3: #{decap_forward.7} parent=0 // loop_header
    %s10 = sphi 0, %s14
    %p11 = scmp.ge.s32.totalorder %s10, 4
    %s17 = sphi 0, %s29
    %s18 = sphi 0, %s25
    %s19 = sphi 0, %s17
    %s20 = sphi 0, %s18
    %s21 = sphi 0, %s19
    %s22 = sphi 0, %s20
    %s32 = sphi 0, %s34
    %s35 = sphi 0, %s32
    %s36 = sphi 0, %s35
    %s52 = sphi 0, %s36
    %s56 = sphi 0, %s56
    %s58 = sphi 0, %s56
    %s59 = sphi 0, %s58
    %s73 = sphi 0, %s59
    %s77 = sphi 0, %s77
    %s79 = sphi 0, %s77
    %s80 = sphi 0, %s79
    %s94 = sphi 0, %s80
    %s100 = sphi 0, %s102
    %s103 = sphi 0, %s100
    %s104 = sphi 0, %s103
    %s120 = sphi 0, %s104
    %s128 = sphi 0, %s130
    %s131 = sphi 0, %s128
    %s132 = sphi 0, %s131
    %s148 = sphi 0, %s132
  $region4: #{decap_forward.7} parent=0 // loop_header_branch
    %13 = sbr.rel (%p11) target = $region8
  $region5: #{decap_forward.7} parent=0 // loop_body
    %s15 = ssub.s32 %s10, 1
    %s16 = ssub.s32 %s10, 2
    %s23 = sadd.s32 1, %s18
    %p24 = scmp.ge.s32.totalorder %s23, 1
    %s25 = scalar_select %p24, 0, %s23
    %s26 = sadd.s32 1, %s17
    %s27 = scalar_select %p24, %s26, %s17
    %p28 = scmp.ge.s32.totalorder %s27, 2
    %s29 = scalar_select %p28, 0, %s27
    %s30 = ssub.s32 %s17, %s29
    %p31 = scmp.eq.s32.totalorder %s30, 0
    %s33 = sadd.s32 %s32, 1
    %s34 = scalar_select %p31, %s32, %s33
    %p37 = pneg %p31
    %p38 = scmp.eq.s32.totalorder %s10, 1
    %p39 = por %p37, %p38
    %p40 = scmp.ne.s32.totalorder %s32, %s35
    %p41 = scmp.eq.s32.totalorder %s10, 0
    %p42 = por %p40, %p41
    %p43 = scmp.ne.s32.totalorder %s32, %s35
    %p44 = scmp.eq.s32.totalorder %s15, 1
    %p45 = por %p43, %p44
    %p46 = scmp.ne.s32.totalorder %s35, %s36
    %p47 = scmp.eq.s32.totalorder %s15, 0
    %p48 = por %p46, %p47
    %p49 = scmp.ne.s32.totalorder %s35, %s36
    %p50 = scmp.eq.s32.totalorder %s16, 1
    %p51 = por %p49, %p50
    %p53 = scmp.ne.s32.totalorder %s36, %s52
    %p54 = scmp.eq.s32.totalorder %s16, 0
    %p55 = por %p53, %p54
    %s57 = sadd.s32 %s56, 1
    %p60 = scmp.eq.s32.totalorder %s10, 1
    %p61 = scmp.ne.s32.totalorder %s56, %s58
    %p62 = scmp.eq.s32.totalorder %s10, 0
    %p63 = por %p61, %p62
    %p64 = scmp.ne.s32.totalorder %s56, %s58
    %p65 = scmp.eq.s32.totalorder %s15, 1
    %p66 = por %p64, %p65
    %p67 = scmp.ne.s32.totalorder %s58, %s59
    %p68 = scmp.eq.s32.totalorder %s15, 0
    %p69 = por %p67, %p68
    %p70 = scmp.ne.s32.totalorder %s58, %s59
    %p71 = scmp.eq.s32.totalorder %s16, 1
    %p72 = por %p70, %p71
    %p74 = scmp.ne.s32.totalorder %s59, %s73
    %p75 = scmp.eq.s32.totalorder %s16, 0
    %p76 = por %p74, %p75
    %s78 = sadd.s32 %s77, 1
    %p81 = scmp.eq.s32.totalorder %s10, 1
    %p82 = scmp.ne.s32.totalorder %s77, %s79
    %p83 = scmp.eq.s32.totalorder %s10, 0
    %p84 = por %p82, %p83
    %p85 = scmp.ne.s32.totalorder %s77, %s79
    %p86 = scmp.eq.s32.totalorder %s15, 1
    %p87 = por %p85, %p86
    %p88 = scmp.ne.s32.totalorder %s79, %s80
    %p89 = scmp.eq.s32.totalorder %s15, 0
    %p90 = por %p88, %p89
    %p91 = scmp.ne.s32.totalorder %s79, %s80
    %p92 = scmp.eq.s32.totalorder %s16, 1
    %p93 = por %p91, %p92
    %p95 = scmp.ne.s32.totalorder %s80, %s94
    %p96 = scmp.eq.s32.totalorder %s16, 0
    %p97 = por %p95, %p96
    %s98 = ssub.s32 %s18, %s25
    %p99 = scmp.eq.s32.totalorder %s98, 0
    %s101 = sadd.s32 %s100, 1
    %s102 = scalar_select %p99, %s100, %s101
    %p105 = pneg %p99
    %p106 = scmp.eq.s32.totalorder %s10, 1
    %p107 = por %p105, %p106
    %p108 = scmp.ne.s32.totalorder %s100, %s103
    %p109 = scmp.eq.s32.totalorder %s10, 0
    %p110 = por %p108, %p109
    %p111 = scmp.ne.s32.totalorder %s100, %s103
    %p112 = scmp.eq.s32.totalorder %s15, 1
    %p113 = por %p111, %p112
    %p114 = scmp.ne.s32.totalorder %s103, %s104
    %p115 = scmp.eq.s32.totalorder %s15, 0
    %p116 = por %p114, %p115
    %p117 = scmp.ne.s32.totalorder %s103, %s104
    %p118 = scmp.eq.s32.totalorder %s16, 1
    %p119 = por %p117, %p118
    %p121 = scmp.ne.s32.totalorder %s104, %s120
    %p122 = scmp.eq.s32.totalorder %s16, 0
    %p123 = por %p121, %p122
    %s124 = ssub.s32 %s17, %s29
    %s125 = ssub.s32 %s18, %s25
    %s126 = sor.u32 %s124, %s125
    %p127 = scmp.eq.s32.totalorder %s126, 0
    %s129 = sadd.s32 %s128, 1
    %s130 = scalar_select %p127, %s128, %s129
    %p133 = pneg %p127
    %p134 = scmp.eq.s32.totalorder %s10, 1
    %p135 = por %p133, %p134
    %p136 = scmp.ne.s32.totalorder %s128, %s131
    %p137 = scmp.eq.s32.totalorder %s10, 0
    %p138 = por %p136, %p137
    %p139 = scmp.ne.s32.totalorder %s128, %s131
    %p140 = scmp.eq.s32.totalorder %s15, 1
    %p141 = por %p139, %p140
    %p142 = scmp.ne.s32.totalorder %s131, %s132
    %p143 = scmp.eq.s32.totalorder %s15, 0
    %p144 = por %p142, %p143
    %p145 = scmp.ne.s32.totalorder %s131, %s132
    %p146 = scmp.eq.s32.totalorder %s16, 1
    %p147 = por %p145, %p146
    %p149 = scmp.ne.s32.totalorder %s132, %s148
    %p150 = scmp.eq.s32.totalorder %s16, 0
    %p151 = por %p149, %p150
    %p152 = scmp.le.s32.totalorder 1, %s10
    %p153 = scmp.lt.s32.totalorder %s10, 3
    %p154 = pnand %p152, %p153
    %p155 = pneg %p154
    // Predicated region
    $region9: #{decap_forward.7} parent=5 // pred_check
      _
    $region10: #{decap_forward.7} parent=5 // pred_check_branch
      %157 = sbr.rel (%p154) target = $region12
    $region11: #{decap_forward.7} parent=5 // pred_region
      %s158 = ssub.s32 %s10, 1
      // Predicated region
      $region13: #{decap_forward.7} parent=11 // pred_check
        %p159 = pneg %p69
      $region14: #{decap_forward.7} parent=11 // pred_check_branch
        %161 = sbr.rel (%p159) target = $region16
      $region15: #{decap_forward.7} parent=11 // pred_region
        _
      $region16: #{decap_forward.7} parent=11 // pred_fallthru
        _
      // Predicated region
      $region17: #{decap_forward.7} parent=11 // pred_check
        %p162 = pneg %p90
      $region18: #{decap_forward.7} parent=11 // pred_check_branch
        %164 = sbr.rel (%p162) target = $region20
      $region19: #{decap_forward.7} parent=11 // pred_region
        _
      $region20: #{decap_forward.7} parent=11 // pred_fallthru
        _
      // Predicated region
      $region21: #{decap_forward.7} parent=11 // pred_check
        %p165 = pneg %p116
      $region22: #{decap_forward.7} parent=11 // pred_check_branch
        %167 = sbr.rel (%p165) target = $region24
      $region23: #{decap_forward.7} parent=11 // pred_region
        %s168 = smul.u32 16, %s20
        %p169 = scmp.lt.s32.totalorder %s168, 15
        %s170 = scalar_select %p169, %s168, 15
        %s171 = smul.addr %s170, 8
        %s172 = scalar_lea.vmem %s3, %s171
        %s173 = smul.u32 16, %s20
      $region24: #{decap_forward.7} parent=11 // pred_fallthru
        _
    $region12: #{decap_forward.7} parent=5 // pred_fallthru
      _
    %p174 = scmp.lt.s32.totalorder %s10, 2
    // Predicated region
    $region25: #{decap_forward.7} parent=5 // pred_check
      %p175 = pneg %p174
    $region26: #{decap_forward.7} parent=5 // pred_check_branch
      %177 = sbr.rel (%p175) target = $region28
    $region27: #{decap_forward.7} parent=5 // pred_region
      // Predicated region
      $region29: #{decap_forward.7} parent=27 // pred_check
        %p178 = pneg %p42
      $region30: #{decap_forward.7} parent=27 // pred_check_branch
        %180 = sbr.rel (%p178) target = $region32
      $region31: #{decap_forward.7} parent=27 // pred_region
        %p181 = scmp.lt.s32.totalorder %s17, 1
        %s182 = scalar_select %p181, %s17, 1
        %s183 = smul.addr %s182, 2
        %s184 = smul.addr %s183, 8
        %s185 = scalar_lea.vmem %s0, %s184
      $region32: #{decap_forward.7} parent=27 // pred_fallthru
        _
    $region28: #{decap_forward.7} parent=5 // pred_fallthru
      _
    %p186 = scmp.le.s32.totalorder 1, %s10
    %p187 = scmp.lt.s32.totalorder %s10, 3
    %p188 = pnand %p186, %p187
    %p189 = pneg %p188
    // Predicated region
    $region33: #{decap_forward.7} parent=5 // pred_check
      _
    $region34: #{decap_forward.7} parent=5 // pred_check_branch
      %191 = sbr.rel (%p188) target = $region36
    $region35: #{decap_forward.7} parent=5 // pred_region
      %s192 = ssub.s32 %s10, 1
      %p193 = scmp.lt.s32.totalorder %s19, 1
      %s194 = scalar_select %p193, %s19, 1
      %s195 = smul.addr %s194, 2
      %s196 = smul.addr %s195, 8
      %s197 = scalar_lea.vmem %s0, %s196
      %p198 = pneg %p48
      %p199 = pneg %p45
      %p200 = pneg %p69
      %p201 = pneg %p66
      %p202 = pneg %p90
      %p203 = pneg %p87
      %s204 = smul.u32 16, %s20
      %p205 = scmp.lt.s32.totalorder %s204, 15
      %s206 = scalar_select %p205, %s204, 15
      %s207 = smul.addr %s206, 8
      %s208 = scalar_lea.vmem %s3, %s207
      %p209 = pneg %p116
      %p210 = pneg %p113
      %p211 = pneg %p144
      %p212 = pneg %p141
      %p213 = scmp.lt.s32.totalorder %s19, 1
      %s214 = scalar_select %p213, %s19, 1
      %p215 = scmp.lt.s32.totalorder %s20, 0
      %s216 = scalar_select %p215, %s20, 0
      %s217 = smul.addr %s214, 2
      %s218 = sadd.s32 %s216, %s217
      %s219 = smul.addr %s218, 8
      %s220 = scalar_lea.vmem %s4, %s219
      %p221 = scmp.lt.s32.totalorder %s19, 1
      %s222 = scalar_select %p221, %s19, 1
      %s223 = smul.addr %s222, 2
      %s224 = smul.addr %s223, 8
      %s225 = scalar_lea.vmem %s0, %s224
      %s226 = smul.u32 16, %s20
      %p227 = scmp.lt.s32.totalorder %s226, 15
      %s228 = scalar_select %p227, %s226, 15
      %s229 = smul.addr %s228, 8
      %s230 = scalar_lea.vmem %s3, %s229
      %s231 = smul.u32 16, %s20
      %p232 = scmp.lt.s32.totalorder %s19, 1
      %s233 = scalar_select %p232, %s19, 1
      %p234 = scmp.lt.s32.totalorder %s20, 0
      %s235 = scalar_select %p234, %s20, 0
      %s236 = smul.addr %s233, 2
      %s237 = sadd.s32 %s235, %s236
      %s238 = smul.addr %s237, 8
      %s239 = scalar_lea.vmem %s4, %s238
      %v241 = vld [vmem:[%s225] sm:$0xff]
      %v242 = vld [vmem:[%s225 + $0x8] sm:$0xff]
      %v243 = vld [vmem:[%s1] sm:$0x1]
      %v244 = vld [vmem:[%s2] sm:$0x1]
      %vm245 = vcmask 261120
      %v246 = vsel %vm245, %v241, 0.0
      %247 = vadd.xlane.f32.xlu0 %v246
      %v248 = vpop.xlane.xlu0 %247
      %v249 = vsel %vm245, %v242, 0.0
      %250 = vadd.xlane.f32.xlu0 %v249
      %v251 = vpop.xlane.xlu0 %250
      %v252 = vrcp.pop 32.0
      %v253 = vmul.f32 %v248, %v252
      %v254 = vmul.f32 %v251, %v252
      %v255 = vsub.f32 %v241, %v253
      %v256 = vsub.f32 %v242, %v254
      %v257 = vmul.f32 %v255, %v255
      %v258 = vmul.f32 %v256, %v256
      %v259 = vsel %vm245, %v257, 0.0
      %260 = vadd.xlane.f32.xlu0 %v259
      %v261 = vpop.xlane.xlu0 %260
      %v262 = vsel %vm245, %v258, 0.0
      %263 = vadd.xlane.f32.xlu0 %v262
      %v264 = vpop.xlane.xlu0 %263
      %v265 = vmul.f32 %v261, %v252
      %v266 = vmul.f32 %v264, %v252
      %v267 = vadd.f32 %v265, 1e-05
      %v268 = vadd.f32 %v266, 1e-05
      %v269 = vrsqrt.pop %v267
      %v270 = vrsqrt.pop %v268
      %v271 = vmul.f32 %v255, %v269
      %v272 = vmul.f32 %v256, %v270
      %v274 = vlaneseq
      %v275 = vshrl.u32 %v274, 7
      %v276 = vsub.s32 0, %v275
      %v277 = vrot.slane %v243, %v276
      %v279 = vmul.f32 %v271, %v277
      %v280 = vmul.f32 %v272, %v277
      %v282 = vlaneseq
      %v283 = vshrl.u32 %v282, 7
      %v284 = vsub.s32 0, %v283
      %v285 = vrot.slane %v244, %v284
      %v287 = vadd.f32 %v279, %v285
      %v288 = vadd.f32 %v280, %v285
      %v289 = vld [vmem:[%s230] sm:$0xff]
      %v290 = vld [vmem:[%s230 + $0x8] sm:$0xff]
      %v291 = vld [vmem:[%s230 + $0x10] sm:$0xff]
      %v292 = vld [vmem:[%s230 + $0x18] sm:$0xff]
      %v293 = vld [vmem:[%s230 + $0x20] sm:$0xff]
      %v294 = vld [vmem:[%s230 + $0x28] sm:$0xff]
      %v295 = vld [vmem:[%s230 + $0x30] sm:$0xff]
      %v296 = vld [vmem:[%s230 + $0x38] sm:$0xff]
      %v297 = vld [vmem:[%s230 + $0x40] sm:$0xff]
      %v298 = vld [vmem:[%s230 + $0x48] sm:$0xff]
      %v299 = vld [vmem:[%s230 + $0x50] sm:$0xff]
      %v300 = vld [vmem:[%s230 + $0x58] sm:$0xff]
      %v301 = vld [vmem:[%s230 + $0x60] sm:$0xff]
      %v302 = vld [vmem:[%s230 + $0x68] sm:$0xff]
      %v303 = vld [vmem:[%s230 + $0x70] sm:$0xff]
      %v304 = vld [vmem:[%s230 + $0x78] sm:$0xff]
      %v305 = vpack.c.bf16 %v288, %v287
      %v306 = vpack.c.bf16 %v290, %v289
      %v307 = vpack.c.bf16 %v292, %v291
      %v308 = vpack.c.bf16 %v294, %v293
      %v309 = vpack.c.bf16 %v296, %v295
      %v310 = vpack.c.bf16 %v298, %v297
      %v311 = vpack.c.bf16 %v300, %v299
      %v312 = vpack.c.bf16 %v302, %v301
      %v313 = vpack.c.bf16 %v304, %v303
      %v315 = vsel %vm245, %v305, 0
      %v318 = vsel %vm245, %v306, 0
      %v321 = vsel %vm245, %v307, 0
      %v324 = vsel %vm245, %v308, 0
      %v327 = vsel %vm245, %v309, 0
      %v330 = vsel %vm245, %v310, 0
      %v333 = vsel %vm245, %v311, 0
      %v336 = vsel %vm245, %v312, 0
      %v339 = vsel %vm245, %v313, 0
      %341 = vmatprep.subr.bf16.mxu0 0
      %342 = vmatpush1.bf16.xpose.msra.mxu0 %v318
      %343 = vmatprep.subr.bf16.mxu0 0
      %344 = vmatpush1.bf16.xpose.msra.mxu0 %v321
      %345 = vmatprep.subr.bf16.mxu0 0
      %346 = vmatpush1.bf16.xpose.msra.mxu0 %v324
      %347 = vmatprep.subr.bf16.mxu0 0
      %348 = vmatpush1.bf16.xpose.msra.mxu0 %v327
      %349 = vmatprep.subr.bf16.mxu0 0
      %350 = vmatpush1.bf16.xpose.msra.mxu0 %v330
      %351 = vmatprep.subr.bf16.mxu0 0
      %352 = vmatpush1.bf16.xpose.msra.mxu0 %v333
      %353 = vmatprep.subr.bf16.mxu0 0
      %354 = vmatpush1.bf16.xpose.msra.mxu0 %v336
      %355 = vmatprep.subr.bf16.mxu0 0
      %356 = vmatpush1.bf16.xpose.msra.mxu0 %v339
      %357 = vmatprep.subr.bf16.mxu0 0
      %358 = vmatpush1.bf16.xpose.msra.mxu0 0
      %359 = vmatprep.subr.bf16.mxu0 0
      %360 = vmatpush1.bf16.xpose.msra.mxu0 0
      %361 = vmatprep.subr.bf16.mxu0 0
      %362 = vmatpush1.bf16.xpose.msra.mxu0 0
      %363 = vmatprep.subr.bf16.mxu0 0
      %364 = vmatpush1.bf16.xpose.msra.mxu0 0
      %365 = vmatprep.subr.bf16.mxu0 0
      %366 = vmatpush1.bf16.xpose.msra.mxu0 0
      %367 = vmatprep.subr.bf16.mxu0 0
      %368 = vmatpush1.bf16.xpose.msra.mxu0 0
      %369 = vmatprep.subr.bf16.mxu0 0
      %370 = vmatpush1.bf16.xpose.msra.mxu0 0
      %371 = vmatprep.subr.bf16.mxu0 0
      %372 = vmatpush1.bf16.xpose.msra.mxu0 0
      %373 = vmatprep.mubr.bf16.mxu0 0
      %374 = vmatmul.mubr.bf16.gmra.mrb[0].mxu0 %v315
      %v375 = vpop.f32.mrb[0].mxu0
      %v376 = vadd.f32 0.0, %v375
      %v377 = vpop.f32.mrb[0].mxu0
      %v378 = vpop.f32.mrb[0].mxu0
      %v379 = vadd.f32 0.0, %v378
      %v380 = vpop.f32.mrb[0].mxu0
      %381 = vdwg.mxu0
      %382 = vst [vmem:[%s239] sm:$0xff] %v376
      %383 = vst [vmem:[%s239 + $0x8] sm:$0xff] %v379
      %p384 = scmp.lt.s32.totalorder %s19, 1
      %s385 = scalar_select %p384, %s19, 1
      %p386 = scmp.lt.s32.totalorder %s20, 0
      %s387 = scalar_select %p386, %s20, 0
      %s388 = smul.addr %s385, 2
      %s389 = sadd.s32 %s387, %s388
      %s390 = smul.addr %s389, 8
      %s391 = scalar_lea.vmem %s4, %s390
      // Predicated region
      $region37: #{decap_forward.7} parent=35 // pred_check
        %p392 = pneg %p141
      $region38: #{decap_forward.7} parent=35 // pred_check_branch
        %394 = sbr.rel (%p392) target = $region40
      $region39: #{decap_forward.7} parent=35 // pred_region
        _
      $region40: #{decap_forward.7} parent=35 // pred_fallthru
        _
    $region36: #{decap_forward.7} parent=5 // pred_fallthru
      _
    %p395 = scmp.le.s32.totalorder 2, %s10
    // Predicated region
    $region41: #{decap_forward.7} parent=5 // pred_check
      %p396 = pneg %p395
    $region42: #{decap_forward.7} parent=5 // pred_check_branch
      %398 = sbr.rel (%p396) target = $region44
    $region43: #{decap_forward.7} parent=5 // pred_region
      %s399 = ssub.s32 %s10, 2
      // Predicated region
      $region45: #{decap_forward.7} parent=43 // pred_check
        %p400 = pneg %p147
      $region46: #{decap_forward.7} parent=43 // pred_check_branch
        %402 = sbr.rel (%p400) target = $region48
      $region47: #{decap_forward.7} parent=43 // pred_region
        %p403 = scmp.lt.s32.totalorder %s21, 1
        %s404 = scalar_select %p403, %s21, 1
        %p405 = scmp.lt.s32.totalorder %s22, 0
        %s406 = scalar_select %p405, %s22, 0
        %s407 = smul.addr %s404, 2
        %s408 = sadd.s32 %s406, %s407
        %s409 = smul.addr %s408, 8
        %s410 = scalar_lea.vmem %s4, %s409
      $region48: #{decap_forward.7} parent=43 // pred_fallthru
        _
    $region44: #{decap_forward.7} parent=5 // pred_fallthru
      _
  $region6: #{decap_forward.7} parent=0 // loop_footer
    %s14 = sadd.s32 1, %s10
  $region7: #{decap_forward.7} parent=0 // loop_footer_branch
    %9 = sbr.rel target = $region3
  $region8: #{decap_forward.7} parent=0 // loop_exit
    _

// kernel: decap_forward.4
$region0: #{decap_forward.4}
  #allocation0 [shape = 'u32[]', space=smem, size = 0x4, offset = 0x4, fixed_abs, tag = 'smem constant byte address 0x4 - core index']
  #allocation1 [shape = 'u32[144,128]{1,0:T(1,128)}', space=vmem, size = 0x12000, scoped, tag = 'internal scratch']
  %s0 = inlined_call_operand.vmem [shape: f32[2,64], index: 0, kind: input, shape index: {}]
  %s1 = inlined_call_operand.vmem [shape: f32[64,32], index: 1, kind: input, shape index: {}]
  %s2 = inlined_call_operand.vmem [shape: f32[1,32], index: 2, kind: input, shape index: {}]
  %s3 = inlined_call_operand.vmem [shape: f32[2,32], index: 3, kind: output, shape index: {}]
  %s4 = sld [smem:[#allocation0]]
  $region22: #{decap_forward.4} parent=0
    _
  %s6 = ssub.s32 1, %s4
  %s7 = scalar_select 0, %s6, %s4
  // Predicated region
  $region2: #{decap_forward.4} parent=0 // pred_check
    _
  $region3: #{decap_forward.4} parent=0 // pred_check_branch
    %9 = sbr.rel (0) target = $region5
  $region4: #{decap_forward.4} parent=0 // pred_region
    _
  $region5: #{decap_forward.4} parent=0 // pred_fallthru
    _
  // Predicated region
  $region6: #{decap_forward.4} parent=0 // pred_check
    _
  $region7: #{decap_forward.4} parent=0 // pred_check_branch
    %11 = sbr.rel (0) target = $region9
  $region8: #{decap_forward.4} parent=0 // pred_region
    _
  $region9: #{decap_forward.4} parent=0 // pred_fallthru
    _
  // Predicated region
  $region10: #{decap_forward.4} parent=0 // pred_check
    _
  $region11: #{decap_forward.4} parent=0 // pred_check_branch
    %13 = sbr.rel (0) target = $region13
  $region12: #{decap_forward.4} parent=0 // pred_region
    _
  $region13: #{decap_forward.4} parent=0 // pred_fallthru
    _
  %v15 = vld [vmem:[%s0] sm:$0x3]
  %v16 = vld [vmem:[%s1] sm:$0xff]
  %v17 = vld [vmem:[%s1 + $0x8] sm:$0xff]
  %v18 = vld [vmem:[%s1 + $0x10] sm:$0xff]
  %v19 = vld [vmem:[%s1 + $0x18] sm:$0xff]
  %v20 = vld [vmem:[%s1 + $0x20] sm:$0xff]
  %v21 = vld [vmem:[%s1 + $0x28] sm:$0xff]
  %v22 = vld [vmem:[%s1 + $0x30] sm:$0xff]
  %v23 = vld [vmem:[%s1 + $0x38] sm:$0xff]
  %v24 = vpack.c.bf16 %v15, %v15
  %v25 = vpack.c.bf16 %v17, %v16
  %v26 = vpack.c.bf16 %v19, %v18
  %v27 = vpack.c.bf16 %v21, %v20
  %v28 = vpack.c.bf16 %v23, %v22
  %v29 = vld [vmem:[%s2] sm:$0x1]
  %v31 = vlaneseq
  %v32 = vshrl.u32 %v31, 7
  %v33 = vsub.s32 0, %v32
  %v34 = vrot.slane %v29, %v33
  %vm36 = vcmask 523264
  %v38 = vsel %vm36, %v24, 0
  %40 = vmatprep.subr.bf16.mxu0 0
  %41 = vmatpush1.bf16.msra.mxu0 %v25
  %42 = vmatprep.subr.bf16.mxu0 0
  %43 = vmatpush1.bf16.msra.mxu0 %v26
  %44 = vmatprep.subr.bf16.mxu0 0
  %45 = vmatpush1.bf16.msra.mxu0 %v27
  %46 = vmatprep.subr.bf16.mxu0 0
  %47 = vmatpush1.bf16.msra.mxu0 %v28
  %48 = vmatprep.subr.bf16.mxu0 0
  %49 = vmatpush1.bf16.msra.mxu0 0
  %50 = vmatprep.subr.bf16.mxu0 0
  %51 = vmatpush1.bf16.msra.mxu0 0
  %52 = vmatprep.subr.bf16.mxu0 0
  %53 = vmatpush1.bf16.msra.mxu0 0
  %54 = vmatprep.subr.bf16.mxu0 0
  %55 = vmatpush1.bf16.msra.mxu0 0
  %56 = vmatprep.subr.bf16.mxu0 0
  %57 = vmatpush1.bf16.msra.mxu0 0
  %58 = vmatprep.subr.bf16.mxu0 0
  %59 = vmatpush1.bf16.msra.mxu0 0
  %60 = vmatprep.subr.bf16.mxu0 0
  %61 = vmatpush1.bf16.msra.mxu0 0
  %62 = vmatprep.subr.bf16.mxu0 0
  %63 = vmatpush1.bf16.msra.mxu0 0
  %64 = vmatprep.subr.bf16.mxu0 0
  %65 = vmatpush1.bf16.msra.mxu0 0
  %66 = vmatprep.subr.bf16.mxu0 0
  %67 = vmatpush1.bf16.msra.mxu0 0
  %68 = vmatprep.subr.bf16.mxu0 0
  %69 = vmatpush1.bf16.msra.mxu0 0
  %70 = vmatprep.subr.bf16.mxu0 0
  %71 = vmatpush1.bf16.msra.mxu0 0
  %72 = vmatprep.mubr.bf16.mxu0 0
  %73 = vmatmul.mubr.bf16.gmra.mrb[0].mxu0 %v38
  %v74 = vpop.f32.mrb[0].mxu0
  %v75 = vadd.f32 %v34, %v74
  %v76 = vpop.f32.mrb[0].mxu0
  %v77 = vpop.f32.mrb[0].mxu0
  %v78 = vpop.f32.mrb[0].mxu0
  %79 = vdwg.mxu0
  %vm80 = vcmask 254976
  %81 = vst.msk [vmem:[%s3] sm:$0x3] %vm80, %v75
  // Predicated region
  $region14: #{decap_forward.4} parent=0 // pred_check
    _
  $region15: #{decap_forward.4} parent=0 // pred_check_branch
    %83 = sbr.rel (0) target = $region17
  $region16: #{decap_forward.4} parent=0 // pred_region
    _
  $region17: #{decap_forward.4} parent=0 // pred_fallthru
    _
  // Predicated region
  $region18: #{decap_forward.4} parent=0 // pred_check
    _
  $region19: #{decap_forward.4} parent=0 // pred_check_branch
    %85 = sbr.rel (0) target = $region21
  $region20: #{decap_forward.4} parent=0 // pred_region
    _
  $region21: #{decap_forward.4} parent=0 // pred_fallthru
    _

// kernel: decap_forward.5
$region0: #{decap_forward.5}
  #allocation0 [shape = 'u32[]', space=smem, size = 0x4, offset = 0x4, fixed_abs, tag = 'smem constant byte address 0x4 - core index']
  #allocation1 [shape = 'u32[144,128]{1,0:T(1,128)}', space=vmem, size = 0x12000, scoped, tag = 'internal scratch']
  %s0 = inlined_call_operand.vmem [shape: f32[2,16,32], index: 0, kind: input, shape index: {}]
  %s1 = inlined_call_operand.vmem [shape: f32[1,32], index: 1, kind: input, shape index: {}]
  %s2 = inlined_call_operand.vmem [shape: f32[1,32], index: 2, kind: input, shape index: {}]
  %s3 = inlined_call_operand.vmem [shape: f32[4,32,8], index: 3, kind: input, shape index: {}]
  %s4 = inlined_call_operand.vmem [shape: f32[4,32,8], index: 4, kind: input, shape index: {}]
  %s5 = inlined_call_operand.vmem [shape: f32[4,32,8], index: 5, kind: input, shape index: {}]
  %s6 = inlined_call_operand.vmem [shape: f32[4,1,8], index: 6, kind: input, shape index: {}]
  %s7 = inlined_call_operand.vmem [shape: f32[4,1,8], index: 7, kind: input, shape index: {}]
  %s8 = inlined_call_operand.vmem [shape: f32[4,1,8], index: 8, kind: input, shape index: {}]
  %s9 = inlined_call_operand.vmem [shape: f32[4,8,32], index: 9, kind: input, shape index: {}]
  %s10 = inlined_call_operand.vmem [shape: f32[1,32], index: 10, kind: input, shape index: {}]
  %s11 = inlined_call_operand.vmem [shape: f32[1,32], index: 11, kind: input, shape index: {}]
  %s12 = inlined_call_operand.vmem [shape: f32[1,32], index: 12, kind: input, shape index: {}]
  %s13 = inlined_call_operand.vmem [shape: f32[32,128], index: 13, kind: input, shape index: {}]
  %s14 = inlined_call_operand.vmem [shape: f32[1,128], index: 14, kind: input, shape index: {}]
  %s15 = inlined_call_operand.vmem [shape: f32[128,32], index: 15, kind: input, shape index: {}]
  %s16 = inlined_call_operand.vmem [shape: f32[1,32], index: 16, kind: input, shape index: {}]
  %s17 = inlined_call_operand.vmem [shape: f32[2,16,32], index: 17, kind: output, shape index: {}]
  %s18 = sld [smem:[#allocation0]]
  $region101: #{decap_forward.5} parent=0
    _
  %s20 = ssub.s32 1, %s18
  %s21 = scalar_select 0, %s20, %s18
  loop: start=0, step=1, limit=4
  $region2: #{decap_forward.5} parent=0 // loop_pre_header
    _
  $region3: #{decap_forward.5} parent=0 // loop_header
    %s23 = sphi 0, %s27
    %p24 = scmp.ge.s32.totalorder %s23, 4
    %s33 = sphi 0, %s35
    %s36 = sphi 0, %s33
    %s37 = sphi 0, %s36
    %s53 = sphi 0, %s37
    %s57 = sphi 0, %s57
    %s59 = sphi 0, %s57
    %s60 = sphi 0, %s59
    %s74 = sphi 0, %s60
    %s78 = sphi 0, %s78
    %s80 = sphi 0, %s78
    %s81 = sphi 0, %s80
    %s95 = sphi 0, %s81
    %s99 = sphi 0, %s99
    %s101 = sphi 0, %s99
    %s102 = sphi 0, %s101
    %s116 = sphi 0, %s102
    %s120 = sphi 0, %s120
    %s122 = sphi 0, %s120
    %s123 = sphi 0, %s122
    %s137 = sphi 0, %s123
    %s141 = sphi 0, %s141
    %s143 = sphi 0, %s141
    %s144 = sphi 0, %s143
    %s158 = sphi 0, %s144
    %s162 = sphi 0, %s162
    %s164 = sphi 0, %s162
    %s165 = sphi 0, %s164
    %s179 = sphi 0, %s165
    %s183 = sphi 0, %s183
    %s185 = sphi 0, %s183
    %s186 = sphi 0, %s185
    %s200 = sphi 0, %s186
    %s204 = sphi 0, %s204
    %s206 = sphi 0, %s204
    %s207 = sphi 0, %s206
    %s221 = sphi 0, %s207
    %s225 = sphi 0, %s225
    %s227 = sphi 0, %s225
    %s228 = sphi 0, %s227
    %s242 = sphi 0, %s228
    %s246 = sphi 0, %s246
    %s248 = sphi 0, %s246
    %s249 = sphi 0, %s248
    %s263 = sphi 0, %s249
    %s267 = sphi 0, %s267
    %s269 = sphi 0, %s267
    %s270 = sphi 0, %s269
    %s284 = sphi 0, %s270
    %s288 = sphi 0, %s288
    %s290 = sphi 0, %s288
    %s291 = sphi 0, %s290
    %s305 = sphi 0, %s291
    %s309 = sphi 0, %s309
    %s311 = sphi 0, %s309
    %s312 = sphi 0, %s311
    %s326 = sphi 0, %s312
    %s330 = sphi 0, %s330
    %s332 = sphi 0, %s330
    %s333 = sphi 0, %s332
    %s347 = sphi 0, %s333
    %s351 = sphi 0, %s351
    %s353 = sphi 0, %s351
    %s354 = sphi 0, %s353
    %s368 = sphi 0, %s354
    %s372 = sphi 0, %s372
    %s374 = sphi 0, %s372
    %s375 = sphi 0, %s374
    %s389 = sphi 0, %s375
    %s395 = sphi 0, %s397
    %s398 = sphi 0, %s395
    %s399 = sphi 0, %s398
    %s415 = sphi 0, %s399
  $region4: #{decap_forward.5} parent=0 // loop_header_branch
    %26 = sbr.rel (%p24) target = $region8
  $region5: #{decap_forward.5} parent=0 // loop_body
    %s28 = ssub.s32 %s23, 1
    %s29 = ssub.s32 %s23, 2
    %s30 = sadd.s32 %s23, 1
    %s31 = ssub.s32 %s23, %s30
    %p32 = scmp.eq.s32.totalorder %s31, 0
    %s34 = sadd.s32 %s33, 1
    %s35 = scalar_select %p32, %s33, %s34
    %p38 = pneg %p32
    %p39 = scmp.eq.s32.totalorder %s23, 1
    %p40 = por %p38, %p39
    %p41 = scmp.ne.s32.totalorder %s33, %s36
    %p42 = scmp.eq.s32.totalorder %s23, 0
    %p43 = por %p41, %p42
    %p44 = scmp.ne.s32.totalorder %s33, %s36
    %p45 = scmp.eq.s32.totalorder %s28, 1
    %p46 = por %p44, %p45
    %p47 = scmp.ne.s32.totalorder %s36, %s37
    %p48 = scmp.eq.s32.totalorder %s28, 0
    %p49 = por %p47, %p48
    %p50 = scmp.ne.s32.totalorder %s36, %s37
    %p51 = scmp.eq.s32.totalorder %s29, 1
    %p52 = por %p50, %p51
    %p54 = scmp.ne.s32.totalorder %s37, %s53
    %p55 = scmp.eq.s32.totalorder %s29, 0
    %p56 = por %p54, %p55
    %s58 = sadd.s32 %s57, 1
    %p61 = scmp.eq.s32.totalorder %s23, 1
    %p62 = scmp.ne.s32.totalorder %s57, %s59
    %p63 = scmp.eq.s32.totalorder %s23, 0
    %p64 = por %p62, %p63
    %p65 = scmp.ne.s32.totalorder %s57, %s59
    %p66 = scmp.eq.s32.totalorder %s28, 1
    %p67 = por %p65, %p66
    %p68 = scmp.ne.s32.totalorder %s59, %s60
    %p69 = scmp.eq.s32.totalorder %s28, 0
    %p70 = por %p68, %p69
    %p71 = scmp.ne.s32.totalorder %s59, %s60
    %p72 = scmp.eq.s32.totalorder %s29, 1
    %p73 = por %p71, %p72
    %p75 = scmp.ne.s32.totalorder %s60, %s74
    %p76 = scmp.eq.s32.totalorder %s29, 0
    %p77 = por %p75, %p76
    %s79 = sadd.s32 %s78, 1
    %p82 = scmp.eq.s32.totalorder %s23, 1
    %p83 = scmp.ne.s32.totalorder %s78, %s80
    %p84 = scmp.eq.s32.totalorder %s23, 0
    %p85 = por %p83, %p84
    %p86 = scmp.ne.s32.totalorder %s78, %s80
    %p87 = scmp.eq.s32.totalorder %s28, 1
    %p88 = por %p86, %p87
    %p89 = scmp.ne.s32.totalorder %s80, %s81
    %p90 = scmp.eq.s32.totalorder %s28, 0
    %p91 = por %p89, %p90
    %p92 = scmp.ne.s32.totalorder %s80, %s81
    %p93 = scmp.eq.s32.totalorder %s29, 1
    %p94 = por %p92, %p93
    %p96 = scmp.ne.s32.totalorder %s81, %s95
    %p97 = scmp.eq.s32.totalorder %s29, 0
    %p98 = por %p96, %p97
    %s100 = sadd.s32 %s99, 1
    %p103 = scmp.eq.s32.totalorder %s23, 1
    %p104 = scmp.ne.s32.totalorder %s99, %s101
    %p105 = scmp.eq.s32.totalorder %s23, 0
    %p106 = por %p104, %p105
    %p107 = scmp.ne.s32.totalorder %s99, %s101
    %p108 = scmp.eq.s32.totalorder %s28, 1
    %p109 = por %p107, %p108
    %p110 = scmp.ne.s32.totalorder %s101, %s102
    %p111 = scmp.eq.s32.totalorder %s28, 0
    %p112 = por %p110, %p111
    %p113 = scmp.ne.s32.totalorder %s101, %s102
    %p114 = scmp.eq.s32.totalorder %s29, 1
    %p115 = por %p113, %p114
    %p117 = scmp.ne.s32.totalorder %s102, %s116
    %p118 = scmp.eq.s32.totalorder %s29, 0
    %p119 = por %p117, %p118
    %s121 = sadd.s32 %s120, 1
    %p124 = scmp.eq.s32.totalorder %s23, 1
    %p125 = scmp.ne.s32.totalorder %s120, %s122
    %p126 = scmp.eq.s32.totalorder %s23, 0
    %p127 = por %p125, %p126
    %p128 = scmp.ne.s32.totalorder %s120, %s122
    %p129 = scmp.eq.s32.totalorder %s28, 1
    %p130 = por %p128, %p129
    %p131 = scmp.ne.s32.totalorder %s122, %s123
    %p132 = scmp.eq.s32.totalorder %s28, 0
    %p133 = por %p131, %p132
    %p134 = scmp.ne.s32.totalorder %s122, %s123
    %p135 = scmp.eq.s32.totalorder %s29, 1
    %p136 = por %p134, %p135
    %p138 = scmp.ne.s32.totalorder %s123, %s137
    %p139 = scmp.eq.s32.totalorder %s29, 0
    %p140 = por %p138, %p139
    %s142 = sadd.s32 %s141, 1
    %p145 = scmp.eq.s32.totalorder %s23, 1
    %p146 = scmp.ne.s32.totalorder %s141, %s143
    %p147 = scmp.eq.s32.totalorder %s23, 0
    %p148 = por %p146, %p147
    %p149 = scmp.ne.s32.totalorder %s141, %s143
    %p150 = scmp.eq.s32.totalorder %s28, 1
    %p151 = por %p149, %p150
    %p152 = scmp.ne.s32.totalorder %s143, %s144
    %p153 = scmp.eq.s32.totalorder %s28, 0
    %p154 = por %p152, %p153
    %p155 = scmp.ne.s32.totalorder %s143, %s144
    %p156 = scmp.eq.s32.totalorder %s29, 1
    %p157 = por %p155, %p156
    %p159 = scmp.ne.s32.totalorder %s144, %s158
    %p160 = scmp.eq.s32.totalorder %s29, 0
    %p161 = por %p159, %p160
    %s163 = sadd.s32 %s162, 1
    %p166 = scmp.eq.s32.totalorder %s23, 1
    %p167 = scmp.ne.s32.totalorder %s162, %s164
    %p168 = scmp.eq.s32.totalorder %s23, 0
    %p169 = por %p167, %p168
    %p170 = scmp.ne.s32.totalorder %s162, %s164
    %p171 = scmp.eq.s32.totalorder %s28, 1
    %p172 = por %p170, %p171
    %p173 = scmp.ne.s32.totalorder %s164, %s165
    %p174 = scmp.eq.s32.totalorder %s28, 0
    %p175 = por %p173, %p174
    %p176 = scmp.ne.s32.totalorder %s164, %s165
    %p177 = scmp.eq.s32.totalorder %s29, 1
    %p178 = por %p176, %p177
    %p180 = scmp.ne.s32.totalorder %s165, %s179
    %p181 = scmp.eq.s32.totalorder %s29, 0
    %p182 = por %p180, %p181
    %s184 = sadd.s32 %s183, 1
    %p187 = scmp.eq.s32.totalorder %s23, 1
    %p188 = scmp.ne.s32.totalorder %s183, %s185
    %p189 = scmp.eq.s32.totalorder %s23, 0
    %p190 = por %p188, %p189
    %p191 = scmp.ne.s32.totalorder %s183, %s185
    %p192 = scmp.eq.s32.totalorder %s28, 1
    %p193 = por %p191, %p192
    %p194 = scmp.ne.s32.totalorder %s185, %s186
    %p195 = scmp.eq.s32.totalorder %s28, 0
    %p196 = por %p194, %p195
    %p197 = scmp.ne.s32.totalorder %s185, %s186
    %p198 = scmp.eq.s32.totalorder %s29, 1
    %p199 = por %p197, %p198
    %p201 = scmp.ne.s32.totalorder %s186, %s200
    %p202 = scmp.eq.s32.totalorder %s29, 0
    %p203 = por %p201, %p202
    %s205 = sadd.s32 %s204, 1
    %p208 = scmp.eq.s32.totalorder %s23, 1
    %p209 = scmp.ne.s32.totalorder %s204, %s206
    %p210 = scmp.eq.s32.totalorder %s23, 0
    %p211 = por %p209, %p210
    %p212 = scmp.ne.s32.totalorder %s204, %s206
    %p213 = scmp.eq.s32.totalorder %s28, 1
    %p214 = por %p212, %p213
    %p215 = scmp.ne.s32.totalorder %s206, %s207
    %p216 = scmp.eq.s32.totalorder %s28, 0
    %p217 = por %p215, %p216
    %p218 = scmp.ne.s32.totalorder %s206, %s207
    %p219 = scmp.eq.s32.totalorder %s29, 1
    %p220 = por %p218, %p219
    %p222 = scmp.ne.s32.totalorder %s207, %s221
    %p223 = scmp.eq.s32.totalorder %s29, 0
    %p224 = por %p222, %p223
    %s226 = sadd.s32 %s225, 1
    %p229 = scmp.eq.s32.totalorder %s23, 1
    %p230 = scmp.ne.s32.totalorder %s225, %s227
    %p231 = scmp.eq.s32.totalorder %s23, 0
    %p232 = por %p230, %p231
    %p233 = scmp.ne.s32.totalorder %s225, %s227
    %p234 = scmp.eq.s32.totalorder %s28, 1
    %p235 = por %p233, %p234
    %p236 = scmp.ne.s32.totalorder %s227, %s228
    %p237 = scmp.eq.s32.totalorder %s28, 0
    %p238 = por %p236, %p237
    %p239 = scmp.ne.s32.totalorder %s227, %s228
    %p240 = scmp.eq.s32.totalorder %s29, 1
    %p241 = por %p239, %p240
    %p243 = scmp.ne.s32.totalorder %s228, %s242
    %p244 = scmp.eq.s32.totalorder %s29, 0
    %p245 = por %p243, %p244
    %s247 = sadd.s32 %s246, 1
    %p250 = scmp.eq.s32.totalorder %s23, 1
    %p251 = scmp.ne.s32.totalorder %s246, %s248
    %p252 = scmp.eq.s32.totalorder %s23, 0
    %p253 = por %p251, %p252
    %p254 = scmp.ne.s32.totalorder %s246, %s248
    %p255 = scmp.eq.s32.totalorder %s28, 1
    %p256 = por %p254, %p255
    %p257 = scmp.ne.s32.totalorder %s248, %s249
    %p258 = scmp.eq.s32.totalorder %s28, 0
    %p259 = por %p257, %p258
    %p260 = scmp.ne.s32.totalorder %s248, %s249
    %p261 = scmp.eq.s32.totalorder %s29, 1
    %p262 = por %p260, %p261
    %p264 = scmp.ne.s32.totalorder %s249, %s263
    %p265 = scmp.eq.s32.totalorder %s29, 0
    %p266 = por %p264, %p265
    %s268 = sadd.s32 %s267, 1
    %p271 = scmp.eq.s32.totalorder %s23, 1
    %p272 = scmp.ne.s32.totalorder %s267, %s269
    %p273 = scmp.eq.s32.totalorder %s23, 0
    %p274 = por %p272, %p273
    %p275 = scmp.ne.s32.totalorder %s267, %s269
    %p276 = scmp.eq.s32.totalorder %s28, 1
    %p277 = por %p275, %p276
    %p278 = scmp.ne.s32.totalorder %s269, %s270
    %p279 = scmp.eq.s32.totalorder %s28, 0
    %p280 = por %p278, %p279
    %p281 = scmp.ne.s32.totalorder %s269, %s270
    %p282 = scmp.eq.s32.totalorder %s29, 1
    %p283 = por %p281, %p282
    %p285 = scmp.ne.s32.totalorder %s270, %s284
    %p286 = scmp.eq.s32.totalorder %s29, 0
    %p287 = por %p285, %p286
    %s289 = sadd.s32 %s288, 1
    %p292 = scmp.eq.s32.totalorder %s23, 1
    %p293 = scmp.ne.s32.totalorder %s288, %s290
    %p294 = scmp.eq.s32.totalorder %s23, 0
    %p295 = por %p293, %p294
    %p296 = scmp.ne.s32.totalorder %s288, %s290
    %p297 = scmp.eq.s32.totalorder %s28, 1
    %p298 = por %p296, %p297
    %p299 = scmp.ne.s32.totalorder %s290, %s291
    %p300 = scmp.eq.s32.totalorder %s28, 0
    %p301 = por %p299, %p300
    %p302 = scmp.ne.s32.totalorder %s290, %s291
    %p303 = scmp.eq.s32.totalorder %s29, 1
    %p304 = por %p302, %p303
    %p306 = scmp.ne.s32.totalorder %s291, %s305
    %p307 = scmp.eq.s32.totalorder %s29, 0
    %p308 = por %p306, %p307
    %s310 = sadd.s32 %s309, 1
    %p313 = scmp.eq.s32.totalorder %s23, 1
    %p314 = scmp.ne.s32.totalorder %s309, %s311
    %p315 = scmp.eq.s32.totalorder %s23, 0
    %p316 = por %p314, %p315
    %p317 = scmp.ne.s32.totalorder %s309, %s311
    %p318 = scmp.eq.s32.totalorder %s28, 1
    %p319 = por %p317, %p318
    %p320 = scmp.ne.s32.totalorder %s311, %s312
    %p321 = scmp.eq.s32.totalorder %s28, 0
    %p322 = por %p320, %p321
    %p323 = scmp.ne.s32.totalorder %s311, %s312
    %p324 = scmp.eq.s32.totalorder %s29, 1
    %p325 = por %p323, %p324
    %p327 = scmp.ne.s32.totalorder %s312, %s326
    %p328 = scmp.eq.s32.totalorder %s29, 0
    %p329 = por %p327, %p328
    %s331 = sadd.s32 %s330, 1
    %p334 = scmp.eq.s32.totalorder %s23, 1
    %p335 = scmp.ne.s32.totalorder %s330, %s332
    %p336 = scmp.eq.s32.totalorder %s23, 0
    %p337 = por %p335, %p336
    %p338 = scmp.ne.s32.totalorder %s330, %s332
    %p339 = scmp.eq.s32.totalorder %s28, 1
    %p340 = por %p338, %p339
    %p341 = scmp.ne.s32.totalorder %s332, %s333
    %p342 = scmp.eq.s32.totalorder %s28, 0
    %p343 = por %p341, %p342
    %p344 = scmp.ne.s32.totalorder %s332, %s333
    %p345 = scmp.eq.s32.totalorder %s29, 1
    %p346 = por %p344, %p345
    %p348 = scmp.ne.s32.totalorder %s333, %s347
    %p349 = scmp.eq.s32.totalorder %s29, 0
    %p350 = por %p348, %p349
    %s352 = sadd.s32 %s351, 1
    %p355 = scmp.eq.s32.totalorder %s23, 1
    %p356 = scmp.ne.s32.totalorder %s351, %s353
    %p357 = scmp.eq.s32.totalorder %s23, 0
    %p358 = por %p356, %p357
    %p359 = scmp.ne.s32.totalorder %s351, %s353
    %p360 = scmp.eq.s32.totalorder %s28, 1
    %p361 = por %p359, %p360
    %p362 = scmp.ne.s32.totalorder %s353, %s354
    %p363 = scmp.eq.s32.totalorder %s28, 0
    %p364 = por %p362, %p363
    %p365 = scmp.ne.s32.totalorder %s353, %s354
    %p366 = scmp.eq.s32.totalorder %s29, 1
    %p367 = por %p365, %p366
    %p369 = scmp.ne.s32.totalorder %s354, %s368
    %p370 = scmp.eq.s32.totalorder %s29, 0
    %p371 = por %p369, %p370
    %s373 = sadd.s32 %s372, 1
    %p376 = scmp.eq.s32.totalorder %s23, 1
    %p377 = scmp.ne.s32.totalorder %s372, %s374
    %p378 = scmp.eq.s32.totalorder %s23, 0
    %p379 = por %p377, %p378
    %p380 = scmp.ne.s32.totalorder %s372, %s374
    %p381 = scmp.eq.s32.totalorder %s28, 1
    %p382 = por %p380, %p381
    %p383 = scmp.ne.s32.totalorder %s374, %s375
    %p384 = scmp.eq.s32.totalorder %s28, 0
    %p385 = por %p383, %p384
    %p386 = scmp.ne.s32.totalorder %s374, %s375
    %p387 = scmp.eq.s32.totalorder %s29, 1
    %p388 = por %p386, %p387
    %p390 = scmp.ne.s32.totalorder %s375, %s389
    %p391 = scmp.eq.s32.totalorder %s29, 0
    %p392 = por %p390, %p391
    %s393 = ssub.s32 %s23, %s30
    %p394 = scmp.eq.s32.totalorder %s393, 0
    %s396 = sadd.s32 %s395, 1
    %s397 = scalar_select %p394, %s395, %s396
    %p400 = pneg %p394
    %p401 = scmp.eq.s32.totalorder %s23, 1
    %p402 = por %p400, %p401
    %p403 = scmp.ne.s32.totalorder %s395, %s398
    %p404 = scmp.eq.s32.totalorder %s23, 0
    %p405 = por %p403, %p404
    %p406 = scmp.ne.s32.totalorder %s395, %s398
    %p407 = scmp.eq.s32.totalorder %s28, 1
    %p408 = por %p406, %p407
    %p409 = scmp.ne.s32.totalorder %s398, %s399
    %p410 = scmp.eq.s32.totalorder %s28, 0
    %p411 = por %p409, %p410
    %p412 = scmp.ne.s32.totalorder %s398, %s399
    %p413 = scmp.eq.s32.totalorder %s29, 1
    %p414 = por %p412, %p413
    %p416 = scmp.ne.s32.totalorder %s399, %s415
    %p417 = scmp.eq.s32.totalorder %s29, 0
    %p418 = por %p416, %p417
    %p419 = scmp.le.s32.totalorder 1, %s23
    %p420 = scmp.lt.s32.totalorder %s23, 3
    %p421 = pnand %p419, %p420
    %p422 = pneg %p421
    // Predicated region
    $region9: #{decap_forward.5} parent=5 // pred_check
      _
    $region10: #{decap_forward.5} parent=5 // pred_check_branch
      %424 = sbr.rel (%p421) target = $region12
    $region11: #{decap_forward.5} parent=5 // pred_region
      %s425 = ssub.s32 %s23, 1
      // Predicated region
      $region13: #{decap_forward.5} parent=11 // pred_check
        %p426 = pneg %p70
      $region14: #{decap_forward.5} parent=11 // pred_check_branch
        %428 = sbr.rel (%p426) target = $region16
      $region15: #{decap_forward.5} parent=11 // pred_region
        _
      $region16: #{decap_forward.5} parent=11 // pred_fallthru
        _
      // Predicated region
      $region17: #{decap_forward.5} parent=11 // pred_check
        %p429 = pneg %p91
      $region18: #{decap_forward.5} parent=11 // pred_check_branch
        %431 = sbr.rel (%p429) target = $region20
      $region19: #{decap_forward.5} parent=11 // pred_region
        _
      $region20: #{decap_forward.5} parent=11 // pred_fallthru
        _
      // Predicated region
      $region21: #{decap_forward.5} parent=11 // pred_check
        %p432 = pneg %p112
      $region22: #{decap_forward.5} parent=11 // pred_check_branch
        %434 = sbr.rel (%p432) target = $region24
      $region23: #{decap_forward.5} parent=11 // pred_region
        _
      $region24: #{decap_forward.5} parent=11 // pred_fallthru
        _
      // Predicated region
      $region25: #{decap_forward.5} parent=11 // pred_check
        %p435 = pneg %p133
      $region26: #{decap_forward.5} parent=11 // pred_check_branch
        %437 = sbr.rel (%p435) target = $region28
      $region27: #{decap_forward.5} parent=11 // pred_region
        _
      $region28: #{decap_forward.5} parent=11 // pred_fallthru
        _
      // Predicated region
      $region29: #{decap_forward.5} parent=11 // pred_check
        %p438 = pneg %p154
      $region30: #{decap_forward.5} parent=11 // pred_check_branch
        %440 = sbr.rel (%p438) target = $region32
      $region31: #{decap_forward.5} parent=11 // pred_region
        _
      $region32: #{decap_forward.5} parent=11 // pred_fallthru
        _
      // Predicated region
      $region33: #{decap_forward.5} parent=11 // pred_check
        %p441 = pneg %p175
      $region34: #{decap_forward.5} parent=11 // pred_check_branch
        %443 = sbr.rel (%p441) target = $region36
      $region35: #{decap_forward.5} parent=11 // pred_region
        _
      $region36: #{decap_forward.5} parent=11 // pred_fallthru
        _
      // Predicated region
      $region37: #{decap_forward.5} parent=11 // pred_check
        %p444 = pneg %p196
      $region38: #{decap_forward.5} parent=11 // pred_check_branch
        %446 = sbr.rel (%p444) target = $region40
      $region39: #{decap_forward.5} parent=11 // pred_region
        _
      $region40: #{decap_forward.5} parent=11 // pred_fallthru
        _
      // Predicated region
      $region41: #{decap_forward.5} parent=11 // pred_check
        %p447 = pneg %p217
      $region42: #{decap_forward.5} parent=11 // pred_check_branch
        %449 = sbr.rel (%p447) target = $region44
      $region43: #{decap_forward.5} parent=11 // pred_region
        _
      $region44: #{decap_forward.5} parent=11 // pred_fallthru
        _
      // Predicated region
      $region45: #{decap_forward.5} parent=11 // pred_check
        %p450 = pneg %p238
      $region46: #{decap_forward.5} parent=11 // pred_check_branch
        %452 = sbr.rel (%p450) target = $region48
      $region47: #{decap_forward.5} parent=11 // pred_region
        _
      $region48: #{decap_forward.5} parent=11 // pred_fallthru
        _
      // Predicated region
      $region49: #{decap_forward.5} parent=11 // pred_check
        %p453 = pneg %p259
      $region50: #{decap_forward.5} parent=11 // pred_check_branch
        %455 = sbr.rel (%p453) target = $region52
      $region51: #{decap_forward.5} parent=11 // pred_region
        _
      $region52: #{decap_forward.5} parent=11 // pred_fallthru
        _
      // Predicated region
      $region53: #{decap_forward.5} parent=11 // pred_check
        %p456 = pneg %p280
      $region54: #{decap_forward.5} parent=11 // pred_check_branch
        %458 = sbr.rel (%p456) target = $region56
      $region55: #{decap_forward.5} parent=11 // pred_region
        _
      $region56: #{decap_forward.5} parent=11 // pred_fallthru
        _
      // Predicated region
      $region57: #{decap_forward.5} parent=11 // pred_check
        %p459 = pneg %p301
      $region58: #{decap_forward.5} parent=11 // pred_check_branch
        %461 = sbr.rel (%p459) target = $region60
      $region59: #{decap_forward.5} parent=11 // pred_region
        _
      $region60: #{decap_forward.5} parent=11 // pred_fallthru
        _
      // Predicated region
      $region61: #{decap_forward.5} parent=11 // pred_check
        %p462 = pneg %p322
      $region62: #{decap_forward.5} parent=11 // pred_check_branch
        %464 = sbr.rel (%p462) target = $region64
      $region63: #{decap_forward.5} parent=11 // pred_region
        _
      $region64: #{decap_forward.5} parent=11 // pred_fallthru
        _
      // Predicated region
      $region65: #{decap_forward.5} parent=11 // pred_check
        %p465 = pneg %p343
      $region66: #{decap_forward.5} parent=11 // pred_check_branch
        %467 = sbr.rel (%p465) target = $region68
      $region67: #{decap_forward.5} parent=11 // pred_region
        _
      $region68: #{decap_forward.5} parent=11 // pred_fallthru
        _
      // Predicated region
      $region69: #{decap_forward.5} parent=11 // pred_check
        %p468 = pneg %p364
      $region70: #{decap_forward.5} parent=11 // pred_check_branch
        %470 = sbr.rel (%p468) target = $region72
      $region71: #{decap_forward.5} parent=11 // pred_region
        _
      $region72: #{decap_forward.5} parent=11 // pred_fallthru
        _
      // Predicated region
      $region73: #{decap_forward.5} parent=11 // pred_check
        %p471 = pneg %p385
      $region74: #{decap_forward.5} parent=11 // pred_check_branch
        %473 = sbr.rel (%p471) target = $region76
      $region75: #{decap_forward.5} parent=11 // pred_region
        _
      $region76: #{decap_forward.5} parent=11 // pred_fallthru
        _
    $region12: #{decap_forward.5} parent=5 // pred_fallthru
      _
    %p474 = scmp.lt.s32.totalorder %s23, 2
    // Predicated region
    $region77: #{decap_forward.5} parent=5 // pred_check
      %p475 = pneg %p474
    $region78: #{decap_forward.5} parent=5 // pred_check_branch
      %477 = sbr.rel (%p475) target = $region80
    $region79: #{decap_forward.5} parent=5 // pred_region
      // Predicated region
      $region81: #{decap_forward.5} parent=79 // pred_check
        %p478 = pneg %p43
      $region82: #{decap_forward.5} parent=79 // pred_check_branch
        %480 = sbr.rel (%p478) target = $region84
      $region83: #{decap_forward.5} parent=79 // pred_region
        %p481 = scmp.lt.s32.totalorder %s23, 1
        %s482 = scalar_select %p481, %s23, 1
        %s483 = smul.addr %s482, 2
        %s484 = smul.addr %s483, 8
        %s485 = scalar_lea.vmem %s0, %s484
      $region84: #{decap_forward.5} parent=79 // pred_fallthru
        _
    $region80: #{decap_forward.5} parent=5 // pred_fallthru
      _
    %p486 = scmp.le.s32.totalorder 1, %s23
    %p487 = scmp.lt.s32.totalorder %s23, 3
    %p488 = pnand %p486, %p487
    %p489 = pneg %p488
    // Predicated region
    $region85: #{decap_forward.5} parent=5 // pred_check
      _
    $region86: #{decap_forward.5} parent=5 // pred_check_branch
      %491 = sbr.rel (%p488) target = $region88
    $region87: #{decap_forward.5} parent=5 // pred_region
      %s492 = ssub.s32 %s23, 1
      %p493 = scmp.lt.s32.totalorder %s28, 1
      %s494 = scalar_select %p493, %s28, 1
      %s495 = smul.addr %s494, 2
      %s496 = smul.addr %s495, 8
      %s497 = scalar_lea.vmem %s0, %s496
      %p498 = pneg %p49
      %p499 = pneg %p46
      %p500 = pneg %p70
      %p501 = pneg %p67
      %p502 = pneg %p91
      %p503 = pneg %p88
      %p504 = pneg %p112
      %p505 = pneg %p109
      %p506 = pneg %p133
      %p507 = pneg %p130
      %p508 = pneg %p154
      %p509 = pneg %p151
      %p510 = pneg %p175
      %p511 = pneg %p172
      %p512 = pneg %p196
      %p513 = pneg %p193
      %p514 = pneg %p217
      %p515 = pneg %p214
      %p516 = pneg %p238
      %p517 = pneg %p235
      %p518 = pneg %p259
      %p519 = pneg %p256
      %p520 = pneg %p280
      %p521 = pneg %p277
      %p522 = pneg %p301
      %p523 = pneg %p298
      %p524 = pneg %p322
      %p525 = pneg %p319
      %p526 = pneg %p343
      %p527 = pneg %p340
      %p528 = pneg %p364
      %p529 = pneg %p361
      %p530 = pneg %p385
      %p531 = pneg %p382
      %p532 = pneg %p411
      %p533 = pneg %p408
      %p534 = scmp.lt.s32.totalorder %s28, 1
      %s535 = scalar_select %p534, %s28, 1
      %s536 = smul.addr %s535, 2
      %s537 = smul.addr %s536, 8
      %s538 = scalar_lea.vmem %s17, %s537
      %p539 = scmp.lt.s32.totalorder %s28, 1
      %s540 = scalar_select %p539, %s28, 1
      %s541 = smul.addr %s540, 2
      %s542 = smul.addr %s541, 8
      %s543 = scalar_lea.vmem %s0, %s542
      %p544 = scmp.lt.s32.totalorder %s28, 1
      %s545 = scalar_select %p544, %s28, 1
      %s546 = smul.addr %s545, 2
      %s547 = smul.addr %s546, 8
      %s548 = scalar_lea.vmem %s17, %s547
      %v550 = vld [vmem:[%s543] sm:$0xff]
      %v551 = vld [vmem:[%s543 + $0x8] sm:$0xff]
      %v552 = vld [vmem:[%s1] sm:$0x1]
      %v553 = vld [vmem:[%s2] sm:$0x1]
      %vm554 = vcmask 261120
      %v555 = vsel %vm554, %v550, 0.0
      %556 = vadd.xlane.f32.xlu0 %v555
      %v557 = vpop.xlane.xlu0 %556
      %v558 = vsel %vm554, %v551, 0.0
      %559 = vadd.xlane.f32.xlu0 %v558
      %v560 = vpop.xlane.xlu0 %559
      %v561 = vrcp.pop 32.0
      %v562 = vmul.f32 %v557, %v561
      %v563 = vmul.f32 %v560, %v561
      %v564 = vsub.f32 %v550, %v562
      %v565 = vsub.f32 %v551, %v563
      %v566 = vmul.f32 %v564, %v564
      %v567 = vmul.f32 %v565, %v565
      %v568 = vsel %vm554, %v566, 0.0
      %569 = vadd.xlane.f32.xlu0 %v568
      %v570 = vpop.xlane.xlu0 %569
      %v571 = vsel %vm554, %v567, 0.0
      %572 = vadd.xlane.f32.xlu0 %v571
      %v573 = vpop.xlane.xlu0 %572
      %v574 = vmul.f32 %v570, %v561
      %v575 = vmul.f32 %v573, %v561
      %v576 = vadd.f32 %v574, 1e-05
      %v577 = vadd.f32 %v575, 1e-05
      %v578 = vrsqrt.pop %v576
      %v579 = vrsqrt.pop %v577
      %v580 = vmul.f32 %v564, %v578
      %v581 = vmul.f32 %v565, %v579
      %v583 = vlaneseq
      %v584 = vshrl.u32 %v583, 7
      %v585 = vsub.s32 0, %v584
      %v586 = vrot.slane %v552, %v585
      %v588 = vmul.f32 %v580, %v586
      %v589 = vmul.f32 %v581, %v586
      %v591 = vlaneseq
      %v592 = vshrl.u32 %v591, 7
      %v593 = vsub.s32 0, %v592
      %v594 = vrot.slane %v553, %v593
      %v596 = vadd.f32 %v588, %v594
      %v597 = vadd.f32 %v589, %v594
      %v598 = vpack.c.bf16 %v597, %v596
      %v599 = vlaneseq
      %v600 = vshrl.u32 %v599, 7
      %v601 = vadd.s32 %v600, 8
      %v602 = vlaneseq
      %v603 = vand.u32 %v602, 127
      %vm604 = vcmp.le.s32.totalorder %v603, %v600
      %vm605 = vcmp.le.s32.totalorder %v603, %v601
      %v606 = vld [vmem:[%s3] sm:$0xff]
      %v607 = vld [vmem:[%s3 + $0x8] sm:$0xff]
      %v608 = vld [vmem:[%s3 + $0x10] sm:$0xff]
      %v609 = vld [vmem:[%s3 + $0x18] sm:$0xff]
      %v610 = vpack.c.bf16 %v607, %v606
      %v611 = vpack.c.bf16 %v609, %v608
      %v612 = vld [vmem:[%s6] sm:$0x1]
      %v614 = vlaneseq
      %v615 = vshrl.u32 %v614, 7
      %v616 = vsub.s32 0, %v615
      %v617 = vrot.slane %v612, %v616
      %v620 = vsel %vm554, %v598, 0
      %622 = vmatprep.subr.bf16.mxu0 0
      %623 = vmatpush1.bf16.msra.mxu0 %v610
      %624 = vmatprep.subr.bf16.mxu0 0
      %625 = vmatpush1.bf16.msra.mxu0 %v611
      %626 = vmatprep.subr.bf16.mxu0 0
      %627 = vmatpush1.bf16.msra.mxu0 0
      %628 = vmatprep.subr.bf16.mxu0 0
      %629 = vmatpush1.bf16.msra.mxu0 0
      %630 = vmatprep.subr.bf16.mxu0 0
      %631 = vmatpush1.bf16.msra.mxu0 0
      %632 = vmatprep.subr.bf16.mxu0 0
      %633 = vmatpush1.bf16.msra.mxu0 0
      %634 = vmatprep.subr.bf16.mxu0 0
      %635 = vmatpush1.bf16.msra.mxu0 0
      %636 = vmatprep.subr.bf16.mxu0 0
      %637 = vmatpush1.bf16.msra.mxu0 0
      %638 = vmatprep.subr.bf16.mxu0 0
      %639 = vmatpush1.bf16.msra.mxu0 0
      %640 = vmatprep.subr.bf16.mxu0 0
      %641 = vmatpush1.bf16.msra.mxu0 0
      %642 = vmatprep.subr.bf16.mxu0 0
      %643 = vmatpush1.bf16.msra.mxu0 0
      %644 = vmatprep.subr.bf16.mxu0 0
      %645 = vmatpush1.bf16.msra.mxu0 0
      %646 = vmatprep.subr.bf16.mxu0 0
      %647 = vmatpush1.bf16.msra.mxu0 0
      %648 = vmatprep.subr.bf16.mxu0 0
      %649 = vmatpush1.bf16.msra.mxu0 0
      %650 = vmatprep.subr.bf16.mxu0 0
      %651 = vmatpush1.bf16.msra.mxu0 0
      %652 = vmatprep.subr.bf16.mxu0 0
      %653 = vmatpush1.bf16.msra.mxu0 0
      %654 = vmatprep.mubr.bf16.mxu0 0
      %655 = vmatmul.mubr.bf16.gmra.mrb[0].mxu0 %v620
      %v656 = vpop.f32.mrb[0].mxu0
      %v657 = vadd.f32 %v617, %v656
      %v658 = vpop.f32.mrb[0].mxu0
      %v659 = vpop.f32.mrb[0].mxu0
      %v660 = vadd.f32 %v617, %v659
      %v661 = vpop.f32.mrb[0].mxu0
      %662 = vdwg.mxu0
      %v663 = vmul.f32 %v657, 0.35355338
      %v664 = vmul.f32 %v660, 0.35355338
      %v665 = vld [vmem:[%s4] sm:$0xff]
      %v666 = vld [vmem:[%s4 + $0x8] sm:$0xff]
      %v667 = vld [vmem:[%s4 + $0x10] sm:$0xff]
      %v668 = vld [vmem:[%s4 + $0x18] sm:$0xff]
      %v669 = vpack.c.bf16 %v666, %v665
      %v670 = vpack.c.bf16 %v668, %v667
      %v671 = vld [vmem:[%s7] sm:$0x1]
      %v673 = vlaneseq
      %v674 = vshrl.u32 %v673, 7
      %v675 = vsub.s32 0, %v674
      %v676 = vrot.slane %v671, %v675
      %678 = vmatprep.subr.bf16.mxu0 0
      %679 = vmatpush1.bf16.msra.mxu0 %v669
      %680 = vmatprep.subr.bf16.mxu0 0
      %681 = vmatpush1.bf16.msra.mxu0 %v670
      %682 = vmatprep.subr.bf16.mxu0 0
      %683 = vmatpush1.bf16.msra.mxu0 0
      %684 = vmatprep.subr.bf16.mxu0 0
      %685 = vmatpush1.bf16.msra.mxu0 0
      %686 = vmatprep.subr.bf16.mxu0 0
      %687 = vmatpush1.bf16.msra.mxu0 0
      %688 = vmatprep.subr.bf16.mxu0 0
      %689 = vmatpush1.bf16.msra.mxu0 0
      %690 = vmatprep.subr.bf16.mxu0 0
      %691 = vmatpush1.bf16.msra.mxu0 0
      %692 = vmatprep.subr.bf16.mxu0 0
      %693 = vmatpush1.bf16.msra.mxu0 0
      %694 = vmatprep.subr.bf16.mxu0 0
      %695 = vmatpush1.bf16.msra.mxu0 0
      %696 = vmatprep.subr.bf16.mxu0 0
      %697 = vmatpush1.bf16.msra.mxu0 0
      %698 = vmatprep.subr.bf16.mxu0 0
      %699 = vmatpush1.bf16.msra.mxu0 0
      %700 = vmatprep.subr.bf16.mxu0 0
      %701 = vmatpush1.bf16.msra.mxu0 0
      %702 = vmatprep.subr.bf16.mxu0 0
      %703 = vmatpush1.bf16.msra.mxu0 0
      %704 = vmatprep.subr.bf16.mxu0 0
      %705 = vmatpush1.bf16.msra.mxu0 0
      %706 = vmatprep.subr.bf16.mxu0 0
      %707 = vmatpush1.bf16.msra.mxu0 0
      %708 = vmatprep.subr.bf16.mxu0 0
      %709 = vmatpush1.bf16.msra.mxu0 0
      %710 = vmatprep.mubr.bf16.mxu0 0
      %711 = vmatmul.mubr.bf16.gmra.mrb[0].mxu0 %v620
      %v712 = vpop.f32.mrb[0].mxu0
      %v713 = vadd.f32 %v676, %v712
      %v714 = vpop.f32.mrb[0].mxu0
      %v715 = vpop.f32.mrb[0].mxu0
      %v716 = vadd.f32 %v676, %v715
      %v717 = vpop.f32.mrb[0].mxu0
      %718 = vdwg.mxu0
      %v719 = vld [vmem:[%s5] sm:$0xff]
      %v720 = vld [vmem:[%s5 + $0x8] sm:$0xff]
      %v721 = vld [vmem:[%s5 + $0x10] sm:$0xff]
      %v722 = vld [vmem:[%s5 + $0x18] sm:$0xff]
      %v723 = vpack.c.bf16 %v720, %v719
      %v724 = vpack.c.bf16 %v722, %v721
      %v725 = vld [vmem:[%s8] sm:$0x1]
      %v727 = vlaneseq
      %v728 = vshrl.u32 %v727, 7
      %v729 = vsub.s32 0, %v728
      %v730 = vrot.slane %v725, %v729
      %732 = vmatprep.subr.bf16.mxu0 0
      %733 = vmatpush1.bf16.msra.mxu0 %v723
      %734 = vmatprep.subr.bf16.mxu0 0
      %735 = vmatpush1.bf16.msra.mxu0 %v724
      %736 = vmatprep.subr.bf16.mxu0 0
      %737 = vmatpush1.bf16.msra.mxu0 0
      %738 = vmatprep.subr.bf16.mxu0 0
      %739 = vmatpush1.bf16.msra.mxu0 0
      %740 = vmatprep.subr.bf16.mxu0 0
      %741 = vmatpush1.bf16.msra.mxu0 0
      %742 = vmatprep.subr.bf16.mxu0 0
      %743 = vmatpush1.bf16.msra.mxu0 0
      %744 = vmatprep.subr.bf16.mxu0 0
      %745 = vmatpush1.bf16.msra.mxu0 0
      %746 = vmatprep.subr.bf16.mxu0 0
      %747 = vmatpush1.bf16.msra.mxu0 0
      %748 = vmatprep.subr.bf16.mxu0 0
      %749 = vmatpush1.bf16.msra.mxu0 0
      %750 = vmatprep.subr.bf16.mxu0 0
      %751 = vmatpush1.bf16.msra.mxu0 0
      %752 = vmatprep.subr.bf16.mxu0 0
      %753 = vmatpush1.bf16.msra.mxu0 0
      %754 = vmatprep.subr.bf16.mxu0 0
      %755 = vmatpush1.bf16.msra.mxu0 0
      %756 = vmatprep.subr.bf16.mxu0 0
      %757 = vmatpush1.bf16.msra.mxu0 0
      %758 = vmatprep.subr.bf16.mxu0 0
      %759 = vmatpush1.bf16.msra.mxu0 0
      %760 = vmatprep.subr.bf16.mxu0 0
      %761 = vmatpush1.bf16.msra.mxu0 0
      %762 = vmatprep.subr.bf16.mxu0 0
      %763 = vmatpush1.bf16.msra.mxu0 0
      %764 = vmatprep.mubr.bf16.mxu0 0
      %765 = vmatmul.mubr.bf16.gmra.mrb[0].mxu0 %v620
      %v766 = vpop.f32.mrb[0].mxu0
      %v767 = vadd.f32 %v730, %v766
      %v768 = vpop.f32.mrb[0].mxu0
      %v769 = vpop.f32.mrb[0].mxu0
      %v770 = vadd.f32 %v730, %v769
      %v771 = vpop.f32.mrb[0].mxu0
      %772 = vdwg.mxu0
      %v773 = vpack.c.bf16 %v664, %v663
      %v774 = vpack.c.bf16 %v716, %v713
      %vm775 = vcmask 64512
      %v777 = vsel %vm775, %v773, 0
      %v780 = vsel %vm775, %v774, 0
      %782 = vmatprep.subr.bf16.mxu0 0
      %783 = vmatpush1.bf16.xpose.msra.mxu0 %v780
      %784 = vmatprep.subr.bf16.mxu0 0
      %785 = vmatpush1.bf16.xpose.msra.mxu0 0
      %786 = vmatprep.subr.bf16.mxu0 0
      %787 = vmatpush1.bf16.xpose.msra.mxu0 0
      %788 = vmatprep.subr.bf16.mxu0 0
      %789 = vmatpush1.bf16.xpose.msra.mxu0 0
      %790 = vmatprep.subr.bf16.mxu0 0
      %791 = vmatpush1.bf16.xpose.msra.mxu0 0
      %792 = vmatprep.subr.bf16.mxu0 0
      %793 = vmatpush1.bf16.xpose.msra.mxu0 0
      %794 = vmatprep.subr.bf16.mxu0 0
      %795 = vmatpush1.bf16.xpose.msra.mxu0 0
      %796 = vmatprep.subr.bf16.mxu0 0
      %797 = vmatpush1.bf16.xpose.msra.mxu0 0
      %798 = vmatprep.subr.bf16.mxu0 0
      %799 = vmatpush1.bf16.xpose.msra.mxu0 0
      %800 = vmatprep.subr.bf16.mxu0 0
      %801 = vmatpush1.bf16.xpose.msra.mxu0 0
      %802 = vmatprep.subr.bf16.mxu0 0
      %803 = vmatpush1.bf16.xpose.msra.mxu0 0
      %804 = vmatprep.subr.bf16.mxu0 0
      %805 = vmatpush1.bf16.xpose.msra.mxu0 0
      %806 = vmatprep.subr.bf16.mxu0 0
      %807 = vmatpush1.bf16.xpose.msra.mxu0 0
      %808 = vmatprep.subr.bf16.mxu0 0
      %809 = vmatpush1.bf16.xpose.msra.mxu0 0
      %810 = vmatprep.subr.bf16.mxu0 0
      %811 = vmatpush1.bf16.xpose.msra.mxu0 0
      %812 = vmatprep.subr.bf16.mxu0 0
      %813 = vmatpush1.bf16.xpose.msra.mxu0 0
      %814 = vmatprep.mubr.bf16.mxu0 0
      %815 = vmatmul.mubr.bf16.gmra.mrb[0].mxu0 %v777
      %v816 = vpop.f32.mrb[0].mxu0
      %v817 = vadd.f32 0.0, %v816
      %v818 = vpop.f32.mrb[0].mxu0
      %v819 = vpop.f32.mrb[0].mxu0
      %v820 = vadd.f32 0.0, %v819
      %v821 = vpop.f32.mrb[0].mxu0
      %822 = vdwg.mxu0
      %v823 = vsel %vm604, %v817, -1e+30
      %v824 = vsel %vm605, %v820, -1e+30
      %vm825 = vcmask 130048
      %v826 = vsel %vm825, %v823, -inf
      %827 = vmax.xlane.f32.xlu0 %v826
      %v828 = vpop.xlane.xlu0 %827
      %v829 = vsel %vm825, %v824, -inf
      %830 = vmax.xlane.f32.xlu0 %v829
      %v831 = vpop.xlane.xlu0 %830
      %v832 = vsub.f32 %v823, %v828
      %v833 = vsub.f32 %v824, %v831
      %v834 = vmul.f32 %v832, 1.442695
      %v835 = vpow.pop %v834
      %v836 = vmul.f32 %v833, 1.442695
      %v837 = vpow.pop %v836
      %v838 = vsel %vm825, %v835, 0.0
      %839 = vadd.xlane.f32.xlu0 %v838
      %v840 = vpop.xlane.xlu0 %839
      %v841 = vsel %vm825, %v837, 0.0
      %842 = vadd.xlane.f32.xlu0 %v841
      %v843 = vpop.xlane.xlu0 %842
      %v844 = vrcp.pop %v840
      %v845 = vrcp.pop %v843
      %v846 = vmul.f32 %v835, %v844
      %v847 = vmul.f32 %v837, %v845
      %v848 = vpack.c.bf16 %v847, %v846
      %v849 = vpack.c.bf16 %v770, %v767
      %v851 = vsel %vm825, %v848, 0
      %853 = vmatprep.subr.bf16.mxu0 0
      %854 = vmatpush1.bf16.msra.mxu0 %v849
      %855 = vmatprep.subr.bf16.mxu0 0
      %856 = vmatpush1.bf16.msra.mxu0 0
      %857 = vmatprep.subr.bf16.mxu0 0
      %858 = vmatpush1.bf16.msra.mxu0 0
      %859 = vmatprep.subr.bf16.mxu0 0
      %860 = vmatpush1.bf16.msra.mxu0 0
      %861 = vmatprep.subr.bf16.mxu0 0
      %862 = vmatpush1.bf16.msra.mxu0 0
      %863 = vmatprep.subr.bf16.mxu0 0
      %864 = vmatpush1.bf16.msra.mxu0 0
      %865 = vmatprep.subr.bf16.mxu0 0
      %866 = vmatpush1.bf16.msra.mxu0 0
      %867 = vmatprep.subr.bf16.mxu0 0
      %868 = vmatpush1.bf16.msra.mxu0 0
      %869 = vmatprep.subr.bf16.mxu0 0
      %870 = vmatpush1.bf16.msra.mxu0 0
      %871 = vmatprep.subr.bf16.mxu0 0
      %872 = vmatpush1.bf16.msra.mxu0 0
      %873 = vmatprep.subr.bf16.mxu0 0
      %874 = vmatpush1.bf16.msra.mxu0 0
      %875 = vmatprep.subr.bf16.mxu0 0
      %876 = vmatpush1.bf16.msra.mxu0 0
      %877 = vmatprep.subr.bf16.mxu0 0
      %878 = vmatpush1.bf16.msra.mxu0 0
      %879 = vmatprep.subr.bf16.mxu0 0
      %880 = vmatpush1.bf16.msra.mxu0 0
      %881 = vmatprep.subr.bf16.mxu0 0
      %882 = vmatpush1.bf16.msra.mxu0 0
      %883 = vmatprep.subr.bf16.mxu0 0
      %884 = vmatpush1.bf16.msra.mxu0 0
      %885 = vmatprep.mubr.bf16.mxu0 0
      %886 = vmatmul.mubr.bf16.gmra.mrb[0].mxu0 %v851
      %v887 = vpop.f32.mrb[0].mxu0
      %v888 = vadd.f32 0.0, %v887
      %v889 = vpop.f32.mrb[0].mxu0
      %v890 = vpop.f32.mrb[0].mxu0
      %v891 = vadd.f32 0.0, %v890
      %v892 = vpop.f32.mrb[0].mxu0
      %893 = vdwg.mxu0
      %v894 = vld [vmem:[%s9] sm:$0xff]
      %v895 = vpack.c.bf16 %v891, %v888
      %v896 = vpack.c.bf16 %v894, %v894
      %s897 = scalar_lea.vmem %s3, 32
      %v898 = vld [vmem:[%s897] sm:$0xff]
      %v899 = vld [vmem:[%s897 + $0x8] sm:$0xff]
      %v900 = vld [vmem:[%s897 + $0x10] sm:$0xff]
      %v901 = vld [vmem:[%s897 + $0x18] sm:$0xff]
      %v902 = vpack.c.bf16 %v899, %v898
      %v903 = vpack.c.bf16 %v901, %v900
      %s904 = scalar_lea.vmem %s6, 1
      %v905 = vld [vmem:[%s904] sm:$0x1]
      %v907 = vlaneseq
      %v908 = vshrl.u32 %v907, 7
      %v909 = vsub.s32 0, %v908
      %v910 = vrot.slane %v905, %v909
      %912 = vmatprep.subr.bf16.mxu0 0
      %913 = vmatpush1.bf16.msra.mxu0 %v902
      %914 = vmatprep.subr.bf16.mxu0 0
      %915 = vmatpush1.bf16.msra.mxu0 %v903
      %916 = vmatprep.subr.bf16.mxu0 0
      %917 = vmatpush1.bf16.msra.mxu0 0
      %918 = vmatprep.subr.bf16.mxu0 0
      %919 = vmatpush1.bf16.msra.mxu0 0
      %920 = vmatprep.subr.bf16.mxu0 0
      %921 = vmatpush1.bf16.msra.mxu0 0
      %922 = vmatprep.subr.bf16.mxu0 0
      %923 = vmatpush1.bf16.msra.mxu0 0
      %924 = vmatprep.subr.bf16.mxu0 0
      %925 = vmatpush1.bf16.msra.mxu0 0
      %926 = vmatprep.subr.bf16.mxu0 0
      %927 = vmatpush1.bf16.msra.mxu0 0
      %928 = vmatprep.subr.bf16.mxu0 0
      %929 = vmatpush1.bf16.msra.mxu0 0
      %930 = vmatprep.subr.bf16.mxu0 0
      %931 = vmatpush1.bf16.msra.mxu0 0
      %932 = vmatprep.subr.bf16.mxu0 0
      %933 = vmatpush1.bf16.msra.mxu0 0
      %934 = vmatprep.subr.bf16.mxu0 0
      %935 = vmatpush1.bf16.msra.mxu0 0
      %936 = vmatprep.subr.bf16.mxu0 0
      %937 = vmatpush1.bf16.msra.mxu0 0
      %938 = vmatprep.subr.bf16.mxu0 0
      %939 = vmatpush1.bf16.msra.mxu0 0
      %940 = vmatprep.subr.bf16.mxu0 0
      %941 = vmatpush1.bf16.msra.mxu0 0
      %942 = vmatprep.subr.bf16.mxu0 0
      %943 = vmatpush1.bf16.msra.mxu0 0
      %944 = vmatprep.mubr.bf16.mxu0 0
      %945 = vmatmul.mubr.bf16.gmra.mrb[0].mxu0 %v620
      %v946 = vpop.f32.mrb[0].mxu0
      %v947 = vadd.f32 %v910, %v946
      %v948 = vpop.f32.mrb[0].mxu0
      %v949 = vpop.f32.mrb[0].mxu0
      %v950 = vadd.f32 %v910, %v949
      %v951 = vpop.f32.mrb[0].mxu0
      %952 = vdwg.mxu0
      %v953 = vmul.f32 %v947, 0.35355338
      %v954 = vmul.f32 %v950, 0.35355338
      %s955 = scalar_lea.vmem %s4, 32
      %v956 = vld [vmem:[%s955] sm:$0xff]
      %v957 = vld [vmem:[%s955 + $0x8] sm:$0xff]
      %v958 = vld [vmem:[%s955 + $0x10] sm:$0xff]
      %v959 = vld [vmem:[%s955 + $0x18] sm:$0xff]
      %v960 = vpack.c.bf16 %v957, %v956
      %v961 = vpack.c.bf16 %v959, %v958
      %s962 = scalar_lea.vmem %s7, 1
      %v963 = vld [vmem:[%s962] sm:$0x1]
      %v965 = vlaneseq
      %v966 = vshrl.u32 %v965, 7
      %v967 = vsub.s32 0, %v966
      %v968 = vrot.slane %v963, %v967
      %970 = vmatprep.subr.bf16.mxu0 0
      %971 = vmatpush1.bf16.msra.mxu0 %v960
      %972 = vmatprep.subr.bf16.mxu0 0
      %973 = vmatpush1.bf16.msra.mxu0 %v961
      %974 = vmatprep.subr.bf16.mxu0 0
      %975 = vmatpush1.bf16.msra.mxu0 0
      %976 = vmatprep.subr.bf16.mxu0 0
      %977 = vmatpush1.bf16.msra.mxu0 0
      %978 = vmatprep.subr.bf16.mxu0 0
      %979 = vmatpush1.bf16.msra.mxu0 0
      %980 = vmatprep.subr.bf16.mxu0 0
      %981 = vmatpush1.bf16.msra.mxu0 0
      %982 = vmatprep.subr.bf16.mxu0 0
      %983 = vmatpush1.bf16.msra.mxu0 0
      %984 = vmatprep.subr.bf16.mxu0 0
      %985 = vmatpush1.bf16.msra.mxu0 0
      %986 = vmatprep.subr.bf16.mxu0 0
      %987 = vmatpush1.bf16.msra.mxu0 0
      %988 = vmatprep.subr.bf16.mxu0 0
      %989 = vmatpush1.bf16.msra.mxu0 0
      %990 = vmatprep.subr.bf16.mxu0 0
      %991 = vmatpush1.bf16.msra.mxu0 0
      %992 = vmatprep.subr.bf16.mxu0 0
      %993 = vmatpush1.bf16.msra.mxu0 0
      %994 = vmatprep.subr.bf16.mxu0 0
      %995 = vmatpush1.bf16.msra.mxu0 0
      %996 = vmatprep.subr.bf16.mxu0 0
      %997 = vmatpush1.bf16.msra.mxu0 0
      %998 = vmatprep.subr.bf16.mxu0 0
      %999 = vmatpush1.bf16.msra.mxu0 0
      %1000 = vmatprep.subr.bf16.mxu0 0
      %1001 = vmatpush1.bf16.msra.mxu0 0
      %1002 = vmatprep.mubr.bf16.mxu0 0
      %1003 = vmatmul.mubr.bf16.gmra.mrb[0].mxu0 %v620
      %v1004 = vpop.f32.mrb[0].mxu0
      %v1005 = vadd.f32 %v968, %v1004
      %v1006 = vpop.f32.mrb[0].mxu0
      %v1007 = vpop.f32.mrb[0].mxu0
      %v1008 = vadd.f32 %v968, %v1007
      %v1009 = vpop.f32.mrb[0].mxu0
      %1010 = vdwg.mxu0
      %s1011 = scalar_lea.vmem %s5, 32
      %v1012 = vld [vmem:[%s1011] sm:$0xff]
      %v1013 = vld [vmem:[%s1011 + $0x8] sm:$0xff]
      %v1014 = vld [vmem:[%s1011 + $0x10] sm:$0xff]
      %v1015 = vld [vmem:[%s1011 + $0x18] sm:$0xff]
      %v1016 = vpack.c.bf16 %v1013, %v1012
      %v1017 = vpack.c.bf16 %v1015, %v1014
      %s1018 = scalar_lea.vmem %s8, 1
      %v1019 = vld [vmem:[%s1018] sm:$0x1]
      %v1021 = vlaneseq
      %v1022 = vshrl.u32 %v1021, 7
      %v1023 = vsub.s32 0, %v1022
      %v1024 = vrot.slane %v1019, %v1023
      %1026 = vmatprep.subr.bf16.mxu0 0
      %1027 = vmatpush1.bf16.msra.mxu0 %v1016
      %1028 = vmatprep.subr.bf16.mxu0 0
      %1029 = vmatpush1.bf16.msra.mxu0 %v1017
      %1030 = vmatprep.subr.bf16.mxu0 0
      %1031 = vmatpush1.bf16.msra.mxu0 0
      %1032 = vmatprep.subr.bf16.mxu0 0
      %1033 = vmatpush1.bf16.msra.mxu0 0
      %1034 = vmatprep.subr.bf16.mxu0 0
      %1035 = vmatpush1.bf16.msra.mxu0 0
      %1036 = vmatprep.subr.bf16.mxu0 0
      %1037 = vmatpush1.bf16.msra.mxu0 0
      %1038 = vmatprep.subr.bf16.mxu0 0
      %1039 = vmatpush1.bf16.msra.mxu0 0
      %1040 = vmatprep.subr.bf16.mxu0 0
      %1041 = vmatpush1.bf16.msra.mxu0 0
      %1042 = vmatprep.subr.bf16.mxu0 0
      %1043 = vmatpush1.bf16.msra.mxu0 0
      %1044 = vmatprep.subr.bf16.mxu0 0
      %1045 = vmatpush1.bf16.msra.mxu0 0
      %1046 = vmatprep.subr.bf16.mxu0 0
      %1047 = vmatpush1.bf16.msra.mxu0 0
      %1048 = vmatprep.subr.bf16.mxu0 0
      %1049 = vmatpush1.bf16.msra.mxu0 0
      %1050 = vmatprep.subr.bf16.mxu0 0
      %1051 = vmatpush1.bf16.msra.mxu0 0
      %1052 = vmatprep.subr.bf16.mxu0 0
      %1053 = vmatpush1.bf16.msra.mxu0 0
      %1054 = vmatprep.subr.bf16.mxu0 0
      %1055 = vmatpush1.bf16.msra.mxu0 0
      %1056 = vmatprep.subr.bf16.mxu0 0
      %1057 = vmatpush1.bf16.msra.mxu0 0
      %1058 = vmatprep.mubr.bf16.mxu0 0
      %1059 = vmatmul.mubr.bf16.gmra.mrb[0].mxu0 %v620
      %v1060 = vpop.f32.mrb[0].mxu0
      %v1061 = vadd.f32 %v1024, %v1060
      %v1062 = vpop.f32.mrb[0].mxu0
      %v1063 = vpop.f32.mrb[0].mxu0
      %v1064 = vadd.f32 %v1024, %v1063
      %v1065 = vpop.f32.mrb[0].mxu0
      %1066 = vdwg.mxu0
      %v1067 = vpack.c.bf16 %v954, %v953
      %v1068 = vpack.c.bf16 %v1008, %v1005
      %v1070 = vsel %vm775, %v1067, 0
      %v1073 = vsel %vm775, %v1068, 0
      %1075 = vmatprep.subr.bf16.mxu0 0
      %1076 = vmatpush1.bf16.xpose.msra.mxu0 %v1073
      %1077 = vmatprep.subr.bf16.mxu0 0
      %1078 = vmatpush1.bf16.xpose.msra.mxu0 0
      %1079 = vmatprep.subr.bf16.mxu0 0
      %1080 = vmatpush1.bf16.xpose.msra.mxu0 0
      %1081 = vmatprep.subr.bf16.mxu0 0
      %1082 = vmatpush1.bf16.xpose.msra.mxu0 0
      %1083 = vmatprep.subr.bf16.mxu0 0
      %1084 = vmatpush1.bf16.xpose.msra.mxu0 0
      %1085 = vmatprep.subr.bf16.mxu0 0
      %1086 = vmatpush1.bf16.xpose.msra.mxu0 0
      %1087 = vmatprep.subr.bf16.mxu0 0
      %1088 = vmatpush1.bf16.xpose.msra.mxu0 0
      %1089 = vmatprep.subr.bf16.mxu0 0
      %1090 = vmatpush1.bf16.xpose.msra.mxu0 0
      %1091 = vmatprep.subr.bf16.mxu0 0
      %1092 = vmatpush1.bf16.xpose.msra.mxu0 0
      %1093 = vmatprep.subr.bf16.mxu0 0
      %1094 = vmatpush1.bf16.xpose.msra.mxu0 0
      %1095 = vmatprep.subr.bf16.mxu0 0
      %1096 = vmatpush1.bf16.xpose.msra.mxu0 0
      %1097 = vmatprep.subr.bf16.mxu0 0
      %1098 = vmatpush1.bf16.xpose.msra.mxu0 0
      %1099 = vmatprep.subr.bf16.mxu0 0
      %1100 = vmatpush1.bf16.xpose.msra.mxu0 0
      %1101 = vmatprep.subr.bf16.mxu0 0
      %1102 = vmatpush1.bf16.xpose.msra.mxu0 0
      %1103 = vmatprep.subr.bf16.mxu0 0
      %1104 = vmatpush1.bf16.xpose.msra.mxu0 0
      %1105 = vmatprep.subr.bf16.mxu0 0
      %1106 = vmatpush1.bf16.xpose.msra.mxu0 0
      %1107 = vmatprep.mubr.bf16.mxu0 0
      %1108 = vmatmul.mubr.bf16.gmra.mrb[0].mxu0 %v1070
      %v1109 = vpop.f32.mrb[0].mxu0
      %v1110 = vadd.f32 0.0, %v1109
      %v1111 = vpop.f32.mrb[0].mxu0
      %v1112 = vpop.f32.mrb[0].mxu0
      %v1113 = vadd.f32 0.0, %v1112
      %v1114 = vpop.f32.mrb[0].mxu0
      %1115 = vdwg.mxu0
      %v1116 = vsel %vm604, %v1110, -1e+30
      %v1117 = vsel %vm605, %v1113, -1e+30
      %v1118 = vsel %vm825, %v1116, -inf
      %1119 = vmax.xlane.f32.xlu0 %v1118
      %v1120 = vpop.xlane.xlu0 %1119
      %v1121 = vsel %vm825, %v1117, -inf
      %1122 = vmax.xlane.f32.xlu0 %v1121
      %v1123 = vpop.xlane.xlu0 %1122
      %v1124 = vsub.f32 %v1116, %v1120
      %v1125 = vsub.f32 %v1117, %v1123
      %v1126 = vmul.f32 %v1124, 1.442695
      %v1127 = vpow.pop %v1126
      %v1128 = vmul.f32 %v1125, 1.442695
      %v1129 = vpow.pop %v1128
      %v1130 = vsel %vm825, %v1127, 0.0
      %1131 = vadd.xlane.f32.xlu0 %v1130
      %v1132 = vpop.xlane.xlu0 %1131
      %v1133 = vsel %vm825, %v1129, 0.0
      %1134 = vadd.xlane.f32.xlu0 %v1133
      %v1135 = vpop.xlane.xlu0 %1134
      %v1136 = vrcp.pop %v1132
      %v1137 = vrcp.pop %v1135
      %v1138 = vmul.f32 %v1127, %v1136
      %v1139 = vmul.f32 %v1129, %v1137
      %v1140 = vpack.c.bf16 %v1139, %v1138
      %v1141 = vpack.c.bf16 %v1064, %v1061
      %v1143 = vsel %vm825, %v1140, 0
      %1145 = vmatprep.subr.bf16.mxu0 0
      %1146 = vmatpush1.bf16.msra.mxu0 %v1141
      %1147 = vmatprep.subr.bf16.mxu0 0
      %1148 = vmatpush1.bf16.msra.mxu0 0
      %1149 = vmatprep.subr.bf16.mxu0 0
      %1150 = vmatpush1.bf16.msra.mxu0 0
      %1151 = vmatprep.subr.bf16.mxu0 0
      %1152 = vmatpush1.bf16.msra.mxu0 0
      %1153 = vmatprep.subr.bf16.mxu0 0
      %1154 = vmatpush1.bf16.msra.mxu0 0
      %1155 = vmatprep.subr.bf16.mxu0 0
      %1156 = vmatpush1.bf16.msra.mxu0 0
      %1157 = vmatprep.subr.bf16.mxu0 0
      %1158 = vmatpush1.bf16.msra.mxu0 0
      %1159 = vmatprep.subr.bf16.mxu0 0
      %1160 = vmatpush1.bf16.msra.mxu0 0
      %1161 = vmatprep.subr.bf16.mxu0 0
      %1162 = vmatpush1.bf16.msra.mxu0 0
      %1163 = vmatprep.subr.bf16.mxu0 0
      %1164 = vmatpush1.bf16.msra.mxu0 0
      %1165 = vmatprep.subr.bf16.mxu0 0
      %1166 = vmatpush1.bf16.msra.mxu0 0
      %1167 = vmatprep.subr.bf16.mxu0 0
      %1168 = vmatpush1.bf16.msra.mxu0 0
      %1169 = vmatprep.subr.bf16.mxu0 0
      %1170 = vmatpush1.bf16.msra.mxu0 0
      %1171 = vmatprep.subr.bf16.mxu0 0
      %1172 = vmatpush1.bf16.msra.mxu0 0
      %1173 = vmatprep.subr.bf16.mxu0 0
      %1174 = vmatpush1.bf16.msra.mxu0 0
      %1175 = vmatprep.subr.bf16.mxu0 0
      %1176 = vmatpush1.bf16.msra.mxu0 0
      %1177 = vmatprep.mubr.bf16.mxu0 0
      %1178 = vmatmul.mubr.bf16.gmra.mrb[0].mxu0 %v1143
      %v1179 = vpop.f32.mrb[0].mxu0
      %v1180 = vadd.f32 0.0, %v1179
      %v1181 = vpop.f32.mrb[0].mxu0
      %v1182 = vpop.f32.mrb[0].mxu0
      %v1183 = vadd.f32 0.0, %v1182
      %v1184 = vpop.f32.mrb[0].mxu0
      %1185 = vdwg.mxu0
      %s1186 = scalar_lea.vmem %s9, 8
      %v1187 = vld [vmem:[%s1186] sm:$0xff]
      %v1188 = vpack.c.bf16 %v1183, %v1180
      %v1189 = vpack.c.bf16 %v1187, %v1187
      %v1191 = vsel %vm775, %v1188, 0
      %vm1193 = vcmask 1043456
      %v1195 = vsel %vm1193, %v1189, 0
      %1197 = vmatprep.subr.bf16.mxu0 0
      %1198 = vmatpush1.bf16.msra.mxu0 %v1195
      %1199 = vmatprep.subr.bf16.mxu0 0
      %1200 = vmatpush1.bf16.msra.mxu0 0
      %1201 = vmatprep.subr.bf16.mxu0 0
      %1202 = vmatpush1.bf16.msra.mxu0 0
      %1203 = vmatprep.subr.bf16.mxu0 0
      %1204 = vmatpush1.bf16.msra.mxu0 0
      %1205 = vmatprep.subr.bf16.mxu0 0
      %1206 = vmatpush1.bf16.msra.mxu0 0
      %1207 = vmatprep.subr.bf16.mxu0 0
      %1208 = vmatpush1.bf16.msra.mxu0 0
      %1209 = vmatprep.subr.bf16.mxu0 0
      %1210 = vmatpush1.bf16.msra.mxu0 0
      %1211 = vmatprep.subr.bf16.mxu0 0
      %1212 = vmatpush1.bf16.msra.mxu0 0
      %1213 = vmatprep.subr.bf16.mxu0 0
      %1214 = vmatpush1.bf16.msra.mxu0 0
      %1215 = vmatprep.subr.bf16.mxu0 0
      %1216 = vmatpush1.bf16.msra.mxu0 0
      %1217 = vmatprep.subr.bf16.mxu0 0
      %1218 = vmatpush1.bf16.msra.mxu0 0
      %1219 = vmatprep.subr.bf16.mxu0 0
      %1220 = vmatpush1.bf16.msra.mxu0 0
      %1221 = vmatprep.subr.bf16.mxu0 0
      %1222 = vmatpush1.bf16.msra.mxu0 0
      %1223 = vmatprep.subr.bf16.mxu0 0
      %1224 = vmatpush1.bf16.msra.mxu0 0
      %1225 = vmatprep.subr.bf16.mxu0 0
      %1226 = vmatpush1.bf16.msra.mxu0 0
      %1227 = vmatprep.subr.bf16.mxu0 0
      %1228 = vmatpush1.bf16.msra.mxu0 0
      %1229 = vmatprep.mubr.bf16.mxu0 0
      %1230 = vmatmul.mubr.bf16.gmra.mrb[0].mxu0 %v1191
      %v1231 = vpop.f32.mrb[0].mxu0
      %v1232 = vadd.f32 0.0, %v1231
      %v1233 = vpop.f32.mrb[0].mxu0
      %v1234 = vpop.f32.mrb[0].mxu0
      %v1235 = vadd.f32 0.0, %v1234
      %v1236 = vpop.f32.mrb[0].mxu0
      %1237 = vdwg.mxu0
      %v1239 = vsel %vm775, %v895, 0
      %v1242 = vsel %vm1193, %v896, 0
      %1244 = vmatprep.subr.bf16.mxu0 0
      %1245 = vmatpush1.bf16.msra.mxu0 %v1242
      %1246 = vmatprep.subr.bf16.mxu0 0
      %1247 = vmatpush1.bf16.msra.mxu0 0
      %1248 = vmatprep.subr.bf16.mxu0 0
      %1249 = vmatpush1.bf16.msra.mxu0 0
      %1250 = vmatprep.subr.bf16.mxu0 0
      %1251 = vmatpush1.bf16.msra.mxu0 0
      %1252 = vmatprep.subr.bf16.mxu0 0
      %1253 = vmatpush1.bf16.msra.mxu0 0
      %1254 = vmatprep.subr.bf16.mxu0 0
      %1255 = vmatpush1.bf16.msra.mxu0 0
      %1256 = vmatprep.subr.bf16.mxu0 0
      %1257 = vmatpush1.bf16.msra.mxu0 0
      %1258 = vmatprep.subr.bf16.mxu0 0
      %1259 = vmatpush1.bf16.msra.mxu0 0
      %1260 = vmatprep.subr.bf16.mxu0 0
      %1261 = vmatpush1.bf16.msra.mxu0 0
      %1262 = vmatprep.subr.bf16.mxu0 0
      %1263 = vmatpush1.bf16.msra.mxu0 0
      %1264 = vmatprep.subr.bf16.mxu0 0
      %1265 = vmatpush1.bf16.msra.mxu0 0
      %1266 = vmatprep.subr.bf16.mxu0 0
      %1267 = vmatpush1.bf16.msra.mxu0 0
      %1268 = vmatprep.subr.bf16.mxu0 0
      %1269 = vmatpush1.bf16.msra.mxu0 0
      %1270 = vmatprep.subr.bf16.mxu0 0
      %1271 = vmatpush1.bf16.msra.mxu0 0
      %1272 = vmatprep.subr.bf16.mxu0 0
      %1273 = vmatpush1.bf16.msra.mxu0 0
      %1274 = vmatprep.subr.bf16.mxu0 0
      %1275 = vmatpush1.bf16.msra.mxu0 0
      %1276 = vmatprep.mubr.bf16.mxu0 0
      %1277 = vmatmul.mubr.bf16.gmra.mrb[0].mxu0 %v1239
      %v1278 = vpop.f32.mrb[0].mxu0
      %v1279 = vadd.f32 %v1232, %v1278
      %v1280 = vpop.f32.mrb[0].mxu0
      %v1281 = vpop.f32.mrb[0].mxu0
      %v1282 = vadd.f32 %v1235, %v1281
      %v1283 = vpop.f32.mrb[0].mxu0
      %1284 = vdwg.mxu0
      %s1285 = scalar_lea.vmem %s3, 64
      %v1286 = vld [vmem:[%s1285] sm:$0xff]
      %v1287 = vld [vmem:[%s1285 + $0x8] sm:$0xff]
      %v1288 = vld [vmem:[%s1285 + $0x10] sm:$0xff]
      %v1289 = vld [vmem:[%s1285 + $0x18] sm:$0xff]
      %v1290 = vpack.c.bf16 %v1287, %v1286
      %v1291 = vpack.c.bf16 %v1289, %v1288
      %s1292 = scalar_lea.vmem %s6, 2
      %v1293 = vld [vmem:[%s1292] sm:$0x1]
      %v1295 = vlaneseq
      %v1296 = vshrl.u32 %v1295, 7
      %v1297 = vsub.s32 0, %v1296
      %v1298 = vrot.slane %v1293, %v1297
      %1300 = vmatprep.subr.bf16.mxu0 0
      %1301 = vmatpush1.bf16.msra.mxu0 %v1290
      %1302 = vmatprep.subr.bf16.mxu0 0
      %1303 = vmatpush1.bf16.msra.mxu0 %v1291
      %1304 = vmatprep.subr.bf16.mxu0 0
      %1305 = vmatpush1.bf16.msra.mxu0 0
      %1306 = vmatprep.subr.bf16.mxu0 0
      %1307 = vmatpush1.bf16.msra.mxu0 0
      %1308 = vmatprep.subr.bf16.mxu0 0
      %1309 = vmatpush1.bf16.msra.mxu0 0
      %1310 = vmatprep.subr.bf16.mxu0 0
      %1311 = vmatpush1.bf16.msra.mxu0 0
      %1312 = vmatprep.subr.bf16.mxu0 0
      %1313 = vmatpush1.bf16.msra.mxu0 0
      %1314 = vmatprep.subr.bf16.mxu0 0
      %1315 = vmatpush1.bf16.msra.mxu0 0
      %1316 = vmatprep.subr.bf16.mxu0 0
      %1317 = vmatpush1.bf16.msra.mxu0 0
      %1318 = vmatprep.subr.bf16.mxu0 0
      %1319 = vmatpush1.bf16.msra.mxu0 0
      %1320 = vmatprep.subr.bf16.mxu0 0
      %1321 = vmatpush1.bf16.msra.mxu0 0
      %1322 = vmatprep.subr.bf16.mxu0 0
      %1323 = vmatpush1.bf16.msra.mxu0 0
      %1324 = vmatprep.subr.bf16.mxu0 0
      %1325 = vmatpush1.bf16.msra.mxu0 0
      %1326 = vmatprep.subr.bf16.mxu0 0
      %1327 = vmatpush1.bf16.msra.mxu0 0
      %1328 = vmatprep.subr.bf16.mxu0 0
      %1329 = vmatpush1.bf16.msra.mxu0 0
      %1330 = vmatprep.subr.bf16.mxu0 0
      %1331 = vmatpush1.bf16.msra.mxu0 0
      %1332 = vmatprep.mubr.bf16.mxu0 0
      %1333 = vmatmul.mubr.bf16.gmra.mrb[0].mxu0 %v620
      %v1334 = vpop.f32.mrb[0].mxu0
      %v1335 = vadd.f32 %v1298, %v1334
      %v1336 = vpop.f32.mrb[0].mxu0
      %v1337 = vpop.f32.mrb[0].mxu0
      %v1338 = vadd.f32 %v1298, %v1337
      %v1339 = vpop.f32.mrb[0].mxu0
      %1340 = vdwg.mxu0
      %v1341 = vmul.f32 %v1335, 0.35355338
      %v1342 = vmul.f32 %v1338, 0.35355338
      %s1343 = scalar_lea.vmem %s4, 64
      %v1344 = vld [vmem:[%s1343] sm:$0xff]
      %v1345 = vld [vmem:[%s1343 + $0x8] sm:$0xff]
      %v1346 = vld [vmem:[%s1343 + $0x10] sm:$0xff]
      %v1347 = vld [vmem:[%s1343 + $0x18] sm:$0xff]
      %v1348 = vpack.c.bf16 %v1345, %v1344
      %v1349 = vpack.c.bf16 %v1347, %v1346
      %s1350 = scalar_lea.vmem %s7, 2
      %v1351 = vld [vmem:[%s1350] sm:$0x1]
      %v1353 = vlaneseq
      %v1354 = vshrl.u32 %v1353, 7
      %v1355 = vsub.s32 0, %v1354
      %v1356 = vrot.slane %v1351, %v1355
      %1358 = vmatprep.subr.bf16.mxu0 0
      %1359 = vmatpush1.bf16.msra.mxu0 %v1348
      %1360 = vmatprep.subr.bf16.mxu0 0
      %1361 = vmatpush1.bf16.msra.mxu0 %v1349
      %1362 = vmatprep.subr.bf16.mxu0 0
      %1363 = vmatpush1.bf16.msra.mxu0 0
      %1364 = vmatprep.subr.bf16.mxu0 0
      %1365 = vmatpush1.bf16.msra.mxu0 0
      %1366 = vmatprep.subr.bf16.mxu0 0
      %1367 = vmatpush1.bf16.msra.mxu0 0
      %1368 = vmatprep.subr.bf16.mxu0 0
      %1369 = vmatpush1.bf16.msra.mxu0 0
      %1370 = vmatprep.subr.bf16.mxu0 0
      %1371 = vmatpush1.bf16.msra.mxu0 0
      %1372 = vmatprep.subr.bf16.mxu0 0
      %1373 = vmatpush1.bf16.msra.mxu0 0
      %1374 = vmatprep.subr.bf16.mxu0 0
      %1375 = vmatpush1.bf16.msra.mxu0 0
      %1376 = vmatprep.subr.bf16.mxu0 0
      %1377 = vmatpush1.bf16.msra.mxu0 0
      %1378 = vmatprep.subr.bf16.mxu0 0
      %1379 = vmatpush1.bf16.msra.mxu0 0
      %1380 = vmatprep.subr.bf16.mxu0 0
      %1381 = vmatpush1.bf16.msra.mxu0 0
      %1382 = vmatprep.subr.bf16.mxu0 0
      %1383 = vmatpush1.bf16.msra.mxu0 0
      %1384 = vmatprep.subr.bf16.mxu0 0
      %1385 = vmatpush1.bf16.msra.mxu0 0
      %1386 = vmatprep.subr.bf16.mxu0 0
      %1387 = vmatpush1.bf16.msra.mxu0 0
      %1388 = vmatprep.subr.bf16.mxu0 0
      %1389 = vmatpush1.bf16.msra.mxu0 0
      %1390 = vmatprep.mubr.bf16.mxu0 0
      %1391 = vmatmul.mubr.bf16.gmra.mrb[0].mxu0 %v620
      %v1392 = vpop.f32.mrb[0].mxu0
      %v1393 = vadd.f32 %v1356, %v1392
      %v1394 = vpop.f32.mrb[0].mxu0
      %v1395 = vpop.f32.mrb[0].mxu0
      %v1396 = vadd.f32 %v1356, %v1395
      %v1397 = vpop.f32.mrb[0].mxu0
      %1398 = vdwg.mxu0
      %s1399 = scalar_lea.vmem %s5, 64
      %v1400 = vld [vmem:[%s1399] sm:$0xff]
      %v1401 = vld [vmem:[%s1399 + $0x8] sm:$0xff]
      %v1402 = vld [vmem:[%s1399 + $0x10] sm:$0xff]
      %v1403 = vld [vmem:[%s1399 + $0x18] sm:$0xff]
      %v1404 = vpack.c.bf16 %v1401, %v1400
      %v1405 = vpack.c.bf16 %v1403, %v1402
      %s1406 = scalar_lea.vmem %s8, 2
      %v1407 = vld [vmem:[%s1406] sm:$0x1]
      %v1409 = vlaneseq
      %v1410 = vshrl.u32 %v1409, 7
      %v1411 = vsub.s32 0, %v1410
      %v1412 = vrot.slane %v1407, %v1411
      %1414 = vmatprep.subr.bf16.mxu0 0
      %1415 = vmatpush1.bf16.msra.mxu0 %v1404
      %1416 = vmatprep.subr.bf16.mxu0 0
      %1417 = vmatpush1.bf16.msra.mxu0 %v1405
      %1418 = vmatprep.subr.bf16.mxu0 0
      %1419 = vmatpush1.bf16.msra.mxu0 0
      %1420 = vmatprep.subr.bf16.mxu0 0
      %1421 = vmatpush1.bf16.msra.mxu0 0
      %1422 = vmatprep.subr.bf16.mxu0 0
      %1423 = vmatpush1.bf16.msra.mxu0 0
      %1424 = vmatprep.subr.bf16.mxu0 0
      %1425 = vmatpush1.bf16.msra.mxu0 0
      %1426 = vmatprep.subr.bf16.mxu0 0
      %1427 = vmatpush1.bf16.msra.mxu0 0
      %1428 = vmatprep.subr.bf16.mxu0 0
      %1429 = vmatpush1.bf16.msra.mxu0 0
      %1430 = vmatprep.subr.bf16.mxu0 0
      %1431 = vmatpush1.bf16.msra.mxu0 0
      %1432 = vmatprep.subr.bf16.mxu0 0
      %1433 = vmatpush1.bf16.msra.mxu0 0
      %1434 = vmatprep.subr.bf16.mxu0 0
      %1435 = vmatpush1.bf16.msra.mxu0 0
      %1436 = vmatprep.subr.bf16.mxu0 0
      %1437 = vmatpush1.bf16.msra.mxu0 0
      %1438 = vmatprep.subr.bf16.mxu0 0
      %1439 = vmatpush1.bf16.msra.mxu0 0
      %1440 = vmatprep.subr.bf16.mxu0 0
      %1441 = vmatpush1.bf16.msra.mxu0 0
      %1442 = vmatprep.subr.bf16.mxu0 0
      %1443 = vmatpush1.bf16.msra.mxu0 0
      %1444 = vmatprep.subr.bf16.mxu0 0
      %1445 = vmatpush1.bf16.msra.mxu0 0
      %1446 = vmatprep.mubr.bf16.mxu0 0
      %1447 = vmatmul.mubr.bf16.gmra.mrb[0].mxu0 %v620
      %v1448 = vpop.f32.mrb[0].mxu0
      %v1449 = vadd.f32 %v1412, %v1448
      %v1450 = vpop.f32.mrb[0].mxu0
      %v1451 = vpop.f32.mrb[0].mxu0
      %v1452 = vadd.f32 %v1412, %v1451
      %v1453 = vpop.f32.mrb[0].mxu0
      %1454 = vdwg.mxu0
      %v1455 = vpack.c.bf16 %v1342, %v1341
      %v1456 = vpack.c.bf16 %v1396, %v1393
      %v1458 = vsel %vm775, %v1455, 0
      %v1461 = vsel %vm775, %v1456, 0
      %1463 = vmatprep.subr.bf16.mxu0 0
      %1464 = vmatpush1.bf16.xpose.msra.mxu0 %v1461
      %1465 = vmatprep.subr.bf16.mxu0 0
      %1466 = vmatpush1.bf16.xpose.msra.mxu0 0
      %1467 = vmatprep.subr.bf16.mxu0 0
      %1468 = vmatpush1.bf16.xpose.msra.mxu0 0
      %1469 = vmatprep.subr.bf16.mxu0 0
      %1470 = vmatpush1.bf16.xpose.msra.mxu0 0
      %1471 = vmatprep.subr.bf16.mxu0 0
      %1472 = vmatpush1.bf16.xpose.msra.mxu0 0
      %1473 = vmatprep.subr.bf16.mxu0 0
      %1474 = vmatpush1.bf16.xpose.msra.mxu0 0
      %1475 = vmatprep.subr.bf16.mxu0 0
      %1476 = vmatpush1.bf16.xpose.msra.mxu0 0
      %1477 = vmatprep.subr.bf16.mxu0 0
      %1478 = vmatpush1.bf16.xpose.msra.mxu0 0
      %1479 = vmatprep.subr.bf16.mxu0 0
      %1480 = vmatpush1.bf16.xpose.msra.mxu0 0
      %1481 = vmatprep.subr.bf16.mxu0 0
      %1482 = vmatpush1.bf16.xpose.msra.mxu0 0
      %1483 = vmatprep.subr.bf16.mxu0 0
      %1484 = vmatpush1.bf16.xpose.msra.mxu0 0
      %1485 = vmatprep.subr.bf16.mxu0 0
      %1486 = vmatpush1.bf16.xpose.msra.mxu0 0
      %1487 = vmatprep.subr.bf16.mxu0 0
      %1488 = vmatpush1.bf16.xpose.msra.mxu0 0
      %1489 = vmatprep.subr.bf16.mxu0 0
      %1490 = vmatpush1.bf16.xpose.msra.mxu0 0
      %1491 = vmatprep.subr.bf16.mxu0 0
      %1492 = vmatpush1.bf16.xpose.msra.mxu0 0
      %1493 = vmatprep.subr.bf16.mxu0 0
      %1494 = vmatpush1.bf16.xpose.msra.mxu0 0
      %1495 = vmatprep.mubr.bf16.mxu0 0
      %1496 = vmatmul.mubr.bf16.gmra.mrb[0].mxu0 %v1458
      %v1497 = vpop.f32.mrb[0].mxu0
      %v1498 = vadd.f32 0.0, %v1497
      %v1499 = vpop.f32.mrb[0].mxu0
      %v1500 = vpop.f32.mrb[0].mxu0
      %v1501 = vadd.f32 0.0, %v1500
      %v1502 = vpop.f32.mrb[0].mxu0
      %1503 = vdwg.mxu0
      %v1504 = vsel %vm604, %v1498, -1e+30
      %v1505 = vsel %vm605, %v1501, -1e+30
      %v1506 = vsel %vm825, %v1504, -inf
      %1507 = vmax.xlane.f32.xlu0 %v1506
      %v1508 = vpop.xlane.xlu0 %1507
      %v1509 = vsel %vm825, %v1505, -inf
      %1510 = vmax.xlane.f32.xlu0 %v1509
      %v1511 = vpop.xlane.xlu0 %1510
      %v1512 = vsub.f32 %v1504, %v1508
      %v1513 = vsub.f32 %v1505, %v1511
      %v1514 = vmul.f32 %v1512, 1.442695
      %v1515 = vpow.pop %v1514
      %v1516 = vmul.f32 %v1513, 1.442695
      %v1517 = vpow.pop %v1516
      %v1518 = vsel %vm825, %v1515, 0.0
      %1519 = vadd.xlane.f32.xlu0 %v1518
      %v1520 = vpop.xlane.xlu0 %1519
      %v1521 = vsel %vm825, %v1517, 0.0
      %1522 = vadd.xlane.f32.xlu0 %v1521
      %v1523 = vpop.xlane.xlu0 %1522
      %v1524 = vrcp.pop %v1520
      %v1525 = vrcp.pop %v1523
      %v1526 = vmul.f32 %v1515, %v1524
      %v1527 = vmul.f32 %v1517, %v1525
      %v1528 = vpack.c.bf16 %v1527, %v1526
      %v1529 = vpack.c.bf16 %v1452, %v1449
      %v1531 = vsel %vm825, %v1528, 0
      %1533 = vmatprep.subr.bf16.mxu0 0
      %1534 = vmatpush1.bf16.msra.mxu0 %v1529
      %1535 = vmatprep.subr.bf16.mxu0 0
      %1536 = vmatpush1.bf16.msra.mxu0 0
      %1537 = vmatprep.subr.bf16.mxu0 0
      %1538 = vmatpush1.bf16.msra.mxu0 0
      %1539 = vmatprep.subr.bf16.mxu0 0
      %1540 = vmatpush1.bf16.msra.mxu0 0
      %1541 = vmatprep.subr.bf16.mxu0 0
      %1542 = vmatpush1.bf16.msra.mxu0 0
      %1543 = vmatprep.subr.bf16.mxu0 0
      %1544 = vmatpush1.bf16.msra.mxu0 0
      %1545 = vmatprep.subr.bf16.mxu0 0
      %1546 = vmatpush1.bf16.msra.mxu0 0
      %1547 = vmatprep.subr.bf16.mxu0 0
      %1548 = vmatpush1.bf16.msra.mxu0 0
      %1549 = vmatprep.subr.bf16.mxu0 0
      %1550 = vmatpush1.bf16.msra.mxu0 0
      %1551 = vmatprep.subr.bf16.mxu0 0
      %1552 = vmatpush1.bf16.msra.mxu0 0
      %1553 = vmatprep.subr.bf16.mxu0 0
      %1554 = vmatpush1.bf16.msra.mxu0 0
      %1555 = vmatprep.subr.bf16.mxu0 0
      %1556 = vmatpush1.bf16.msra.mxu0 0
      %1557 = vmatprep.subr.bf16.mxu0 0
      %1558 = vmatpush1.bf16.msra.mxu0 0
      %1559 = vmatprep.subr.bf16.mxu0 0
      %1560 = vmatpush1.bf16.msra.mxu0 0
      %1561 = vmatprep.subr.bf16.mxu0 0
      %1562 = vmatpush1.bf16.msra.mxu0 0
      %1563 = vmatprep.subr.bf16.mxu0 0
      %1564 = vmatpush1.bf16.msra.mxu0 0
      %1565 = vmatprep.mubr.bf16.mxu0 0
      %1566 = vmatmul.mubr.bf16.gmra.mrb[0].mxu0 %v1531
      %v1567 = vpop.f32.mrb[0].mxu0
      %v1568 = vadd.f32 0.0, %v1567
      %v1569 = vpop.f32.mrb[0].mxu0
      %v1570 = vpop.f32.mrb[0].mxu0
      %v1571 = vadd.f32 0.0, %v1570
      %v1572 = vpop.f32.mrb[0].mxu0
      %1573 = vdwg.mxu0
      %s1574 = scalar_lea.vmem %s9, 16
      %v1575 = vld [vmem:[%s1574] sm:$0xff]
      %v1576 = vpack.c.bf16 %v1571, %v1568
      %v1577 = vpack.c.bf16 %v1575, %v1575
      %v1579 = vsel %vm775, %v1576, 0
      %v1582 = vsel %vm1193, %v1577, 0
      %1584 = vmatprep.subr.bf16.mxu0 0
      %1585 = vmatpush1.bf16.msra.mxu0 %v1582
      %1586 = vmatprep.subr.bf16.mxu0 0
      %1587 = vmatpush1.bf16.msra.mxu0 0
      %1588 = vmatprep.subr.bf16.mxu0 0
      %1589 = vmatpush1.bf16.msra.mxu0 0
      %1590 = vmatprep.subr.bf16.mxu0 0
      %1591 = vmatpush1.bf16.msra.mxu0 0
      %1592 = vmatprep.subr.bf16.mxu0 0
      %1593 = vmatpush1.bf16.msra.mxu0 0
      %1594 = vmatprep.subr.bf16.mxu0 0
      %1595 = vmatpush1.bf16.msra.mxu0 0
      %1596 = vmatprep.subr.bf16.mxu0 0
      %1597 = vmatpush1.bf16.msra.mxu0 0
      %1598 = vmatprep.subr.bf16.mxu0 0
      %1599 = vmatpush1.bf16.msra.mxu0 0
      %1600 = vmatprep.subr.bf16.mxu0 0
      %1601 = vmatpush1.bf16.msra.mxu0 0
      %1602 = vmatprep.subr.bf16.mxu0 0
      %1603 = vmatpush1.bf16.msra.mxu0 0
      %1604 = vmatprep.subr.bf16.mxu0 0
      %1605 = vmatpush1.bf16.msra.mxu0 0
      %1606 = vmatprep.subr.bf16.mxu0 0
      %1607 = vmatpush1.bf16.msra.mxu0 0
      %1608 = vmatprep.subr.bf16.mxu0 0
      %1609 = vmatpush1.bf16.msra.mxu0 0
      %1610 = vmatprep.subr.bf16.mxu0 0
      %1611 = vmatpush1.bf16.msra.mxu0 0
      %1612 = vmatprep.subr.bf16.mxu0 0
      %1613 = vmatpush1.bf16.msra.mxu0 0
      %1614 = vmatprep.subr.bf16.mxu0 0
      %1615 = vmatpush1.bf16.msra.mxu0 0
      %1616 = vmatprep.mubr.bf16.mxu0 0
      %1617 = vmatmul.mubr.bf16.gmra.mrb[0].mxu0 %v1579
      %v1618 = vpop.f32.mrb[0].mxu0
      %v1619 = vadd.f32 0.0, %v1618
      %v1620 = vpop.f32.mrb[0].mxu0
      %v1621 = vpop.f32.mrb[0].mxu0
      %v1622 = vadd.f32 0.0, %v1621
      %v1623 = vpop.f32.mrb[0].mxu0
      %1624 = vdwg.mxu0
      %v1625 = vadd.f32 %v1279, %v1619
      %v1626 = vadd.f32 %v1282, %v1622
      %s1627 = scalar_lea.vmem %s3, 96
      %v1628 = vld [vmem:[%s1627] sm:$0xff]
      %v1629 = vld [vmem:[%s1627 + $0x8] sm:$0xff]
      %v1630 = vld [vmem:[%s1627 + $0x10] sm:$0xff]
      %v1631 = vld [vmem:[%s1627 + $0x18] sm:$0xff]
      %v1632 = vpack.c.bf16 %v1629, %v1628
      %v1633 = vpack.c.bf16 %v1631, %v1630
      %s1634 = scalar_lea.vmem %s6, 3
      %v1635 = vld [vmem:[%s1634] sm:$0x1]
      %v1637 = vlaneseq
      %v1638 = vshrl.u32 %v1637, 7
      %v1639 = vsub.s32 0, %v1638
      %v1640 = vrot.slane %v1635, %v1639
      %1642 = vmatprep.subr.bf16.mxu0 0
      %1643 = vmatpush1.bf16.msra.mxu0 %v1632
      %1644 = vmatprep.subr.bf16.mxu0 0
      %1645 = vmatpush1.bf16.msra.mxu0 %v1633
      %1646 = vmatprep.subr.bf16.mxu0 0
      %1647 = vmatpush1.bf16.msra.mxu0 0
      %1648 = vmatprep.subr.bf16.mxu0 0
      %1649 = vmatpush1.bf16.msra.mxu0 0
      %1650 = vmatprep.subr.bf16.mxu0 0
      %1651 = vmatpush1.bf16.msra.mxu0 0
      %1652 = vmatprep.subr.bf16.mxu0 0
      %1653 = vmatpush1.bf16.msra.mxu0 0
      %1654 = vmatprep.subr.bf16.mxu0 0
      %1655 = vmatpush1.bf16.msra.mxu0 0
      %1656 = vmatprep.subr.bf16.mxu0 0
      %1657 = vmatpush1.bf16.msra.mxu0 0
      %1658 = vmatprep.subr.bf16.mxu0 0
      %1659 = vmatpush1.bf16.msra.mxu0 0
      %1660 = vmatprep.subr.bf16.mxu0 0
      %1661 = vmatpush1.bf16.msra.mxu0 0
      %1662 = vmatprep.subr.bf16.mxu0 0
      %1663 = vmatpush1.bf16.msra.mxu0 0
      %1664 = vmatprep.subr.bf16.mxu0 0
      %1665 = vmatpush1.bf16.msra.mxu0 0
      %1666 = vmatprep.subr.bf16.mxu0 0
      %1667 = vmatpush1.bf16.msra.mxu0 0
      %1668 = vmatprep.subr.bf16.mxu0 0
      %1669 = vmatpush1.bf16.msra.mxu0 0
      %1670 = vmatprep.subr.bf16.mxu0 0
      %1671 = vmatpush1.bf16.msra.mxu0 0
      %1672 = vmatprep.subr.bf16.mxu0 0
      %1673 = vmatpush1.bf16.msra.mxu0 0
      %1674 = vmatprep.mubr.bf16.mxu0 0
      %1675 = vmatmul.mubr.bf16.gmra.mrb[0].mxu0 %v620
      %v1676 = vpop.f32.mrb[0].mxu0
      %v1677 = vadd.f32 %v1640, %v1676
      %v1678 = vpop.f32.mrb[0].mxu0
      %v1679 = vpop.f32.mrb[0].mxu0
      %v1680 = vadd.f32 %v1640, %v1679
      %v1681 = vpop.f32.mrb[0].mxu0
      %1682 = vdwg.mxu0
      %v1683 = vmul.f32 %v1677, 0.35355338
      %v1684 = vmul.f32 %v1680, 0.35355338
      %s1685 = scalar_lea.vmem %s4, 96
      %v1686 = vld [vmem:[%s1685] sm:$0xff]
      %v1687 = vld [vmem:[%s1685 + $0x8] sm:$0xff]
      %v1688 = vld [vmem:[%s1685 + $0x10] sm:$0xff]
      %v1689 = vld [vmem:[%s1685 + $0x18] sm:$0xff]
      %v1690 = vpack.c.bf16 %v1687, %v1686
      %v1691 = vpack.c.bf16 %v1689, %v1688
      %s1692 = scalar_lea.vmem %s7, 3
      %v1693 = vld [vmem:[%s1692] sm:$0x1]
      %v1695 = vlaneseq
      %v1696 = vshrl.u32 %v1695, 7
      %v1697 = vsub.s32 0, %v1696
      %v1698 = vrot.slane %v1693, %v1697
      %1700 = vmatprep.subr.bf16.mxu0 0
      %1701 = vmatpush1.bf16.msra.mxu0 %v1690
      %1702 = vmatprep.subr.bf16.mxu0 0
      %1703 = vmatpush1.bf16.msra.mxu0 %v1691
      %1704 = vmatprep.subr.bf16.mxu0 0
      %1705 = vmatpush1.bf16.msra.mxu0 0
      %1706 = vmatprep.subr.bf16.mxu0 0
      %1707 = vmatpush1.bf16.msra.mxu0 0
      %1708 = vmatprep.subr.bf16.mxu0 0
      %1709 = vmatpush1.bf16.msra.mxu0 0
      %1710 = vmatprep.subr.bf16.mxu0 0
      %1711 = vmatpush1.bf16.msra.mxu0 0
      %1712 = vmatprep.subr.bf16.mxu0 0
      %1713 = vmatpush1.bf16.msra.mxu0 0
      %1714 = vmatprep.subr.bf16.mxu0 0
      %1715 = vmatpush1.bf16.msra.mxu0 0
      %1716 = vmatprep.subr.bf16.mxu0 0
      %1717 = vmatpush1.bf16.msra.mxu0 0
      %1718 = vmatprep.subr.bf16.mxu0 0
      %1719 = vmatpush1.bf16.msra.mxu0 0
      %1720 = vmatprep.subr.bf16.mxu0 0
      %1721 = vmatpush1.bf16.msra.mxu0 0
      %1722 = vmatprep.subr.bf16.mxu0 0
      %1723 = vmatpush1.bf16.msra.mxu0 0
      %1724 = vmatprep.subr.bf16.mxu0 0
      %1725 = vmatpush1.bf16.msra.mxu0 0
      %1726 = vmatprep.subr.bf16.mxu0 0
      %1727 = vmatpush1.bf16.msra.mxu0 0
      %1728 = vmatprep.subr.bf16.mxu0 0
      %1729 = vmatpush1.bf16.msra.mxu0 0
      %1730 = vmatprep.subr.bf16.mxu0 0
      %1731 = vmatpush1.bf16.msra.mxu0 0
      %1732 = vmatprep.mubr.bf16.mxu0 0
      %1733 = vmatmul.mubr.bf16.gmra.mrb[0].mxu0 %v620
      %v1734 = vpop.f32.mrb[0].mxu0
      %v1735 = vadd.f32 %v1698, %v1734
      %v1736 = vpop.f32.mrb[0].mxu0
      %v1737 = vpop.f32.mrb[0].mxu0
      %v1738 = vadd.f32 %v1698, %v1737
      %v1739 = vpop.f32.mrb[0].mxu0
      %1740 = vdwg.mxu0
      %s1741 = scalar_lea.vmem %s5, 96
      %v1742 = vld [vmem:[%s1741] sm:$0xff]
      %v1743 = vld [vmem:[%s1741 + $0x8] sm:$0xff]
      %v1744 = vld [vmem:[%s1741 + $0x10] sm:$0xff]
      %v1745 = vld [vmem:[%s1741 + $0x18] sm:$0xff]
      %v1746 = vpack.c.bf16 %v1743, %v1742
      %v1747 = vpack.c.bf16 %v1745, %v1744
      %s1748 = scalar_lea.vmem %s8, 3
      %v1749 = vld [vmem:[%s1748] sm:$0x1]
      %v1751 = vlaneseq
      %v1752 = vshrl.u32 %v1751, 7
      %v1753 = vsub.s32 0, %v1752
      %v1754 = vrot.slane %v1749, %v1753
      %1756 = vmatprep.subr.bf16.mxu0 0
      %1757 = vmatpush1.bf16.msra.mxu0 %v1746
      %1758 = vmatprep.subr.bf16.mxu0 0
      %1759 = vmatpush1.bf16.msra.mxu0 %v1747
      %1760 = vmatprep.subr.bf16.mxu0 0
      %1761 = vmatpush1.bf16.msra.mxu0 0
      %1762 = vmatprep.subr.bf16.mxu0 0
      %1763 = vmatpush1.bf16.msra.mxu0 0
      %1764 = vmatprep.subr.bf16.mxu0 0
      %1765 = vmatpush1.bf16.msra.mxu0 0
      %1766 = vmatprep.subr.bf16.mxu0 0
      %1767 = vmatpush1.bf16.msra.mxu0 0
      %1768 = vmatprep.subr.bf16.mxu0 0
      %1769 = vmatpush1.bf16.msra.mxu0 0
      %1770 = vmatprep.subr.bf16.mxu0 0
      %1771 = vmatpush1.bf16.msra.mxu0 0
      %1772 = vmatprep.subr.bf16.mxu0 0
      %1773 = vmatpush1.bf16.msra.mxu0 0
      %1774 = vmatprep.subr.bf16.mxu0 0
      %1775 = vmatpush1.bf16.msra.mxu0 0
      %1776 = vmatprep.subr.bf16.mxu0 0
      %1777 = vmatpush1.bf16.msra.mxu0 0
      %1778 = vmatprep.subr.bf16.mxu0 0
      %1779 = vmatpush1.bf16.msra.mxu0 0
      %1780 = vmatprep.subr.bf16.mxu0 0
      %1781 = vmatpush1.bf16.msra.mxu0 0
      %1782 = vmatprep.subr.bf16.mxu0 0
      %1783 = vmatpush1.bf16.msra.mxu0 0
      %1784 = vmatprep.subr.bf16.mxu0 0
      %1785 = vmatpush1.bf16.msra.mxu0 0
      %1786 = vmatprep.subr.bf16.mxu0 0
      %1787 = vmatpush1.bf16.msra.mxu0 0
      %1788 = vmatprep.mubr.bf16.mxu0 0
      %1789 = vmatmul.mubr.bf16.gmra.mrb[0].mxu0 %v620
      %v1790 = vpop.f32.mrb[0].mxu0
      %v1791 = vadd.f32 %v1754, %v1790
      %v1792 = vpop.f32.mrb[0].mxu0
      %v1793 = vpop.f32.mrb[0].mxu0
      %v1794 = vadd.f32 %v1754, %v1793
      %v1795 = vpop.f32.mrb[0].mxu0
      %1796 = vdwg.mxu0
      %v1797 = vpack.c.bf16 %v1684, %v1683
      %v1798 = vpack.c.bf16 %v1738, %v1735
      %v1800 = vsel %vm775, %v1797, 0
      %v1803 = vsel %vm775, %v1798, 0
      %1805 = vmatprep.subr.bf16.mxu0 0
      %1806 = vmatpush1.bf16.xpose.msra.mxu0 %v1803
      %1807 = vmatprep.subr.bf16.mxu0 0
      %1808 = vmatpush1.bf16.xpose.msra.mxu0 0
      %1809 = vmatprep.subr.bf16.mxu0 0
      %1810 = vmatpush1.bf16.xpose.msra.mxu0 0
      %1811 = vmatprep.subr.bf16.mxu0 0
      %1812 = vmatpush1.bf16.xpose.msra.mxu0 0
      %1813 = vmatprep.subr.bf16.mxu0 0
      %1814 = vmatpush1.bf16.xpose.msra.mxu0 0
      %1815 = vmatprep.subr.bf16.mxu0 0
      %1816 = vmatpush1.bf16.xpose.msra.mxu0 0
      %1817 = vmatprep.subr.bf16.mxu0 0
      %1818 = vmatpush1.bf16.xpose.msra.mxu0 0
      %1819 = vmatprep.subr.bf16.mxu0 0
      %1820 = vmatpush1.bf16.xpose.msra.mxu0 0
      %1821 = vmatprep.subr.bf16.mxu0 0
      %1822 = vmatpush1.bf16.xpose.msra.mxu0 0
      %1823 = vmatprep.subr.bf16.mxu0 0
      %1824 = vmatpush1.bf16.xpose.msra.mxu0 0
      %1825 = vmatprep.subr.bf16.mxu0 0
      %1826 = vmatpush1.bf16.xpose.msra.mxu0 0
      %1827 = vmatprep.subr.bf16.mxu0 0
      %1828 = vmatpush1.bf16.xpose.msra.mxu0 0
      %1829 = vmatprep.subr.bf16.mxu0 0
      %1830 = vmatpush1.bf16.xpose.msra.mxu0 0
      %1831 = vmatprep.subr.bf16.mxu0 0
      %1832 = vmatpush1.bf16.xpose.msra.mxu0 0
      %1833 = vmatprep.subr.bf16.mxu0 0
      %1834 = vmatpush1.bf16.xpose.msra.mxu0 0
      %1835 = vmatprep.subr.bf16.mxu0 0
      %1836 = vmatpush1.bf16.xpose.msra.mxu0 0
      %1837 = vmatprep.mubr.bf16.mxu0 0
      %1838 = vmatmul.mubr.bf16.gmra.mrb[0].mxu0 %v1800
      %v1839 = vpop.f32.mrb[0].mxu0
      %v1840 = vadd.f32 0.0, %v1839
      %v1841 = vpop.f32.mrb[0].mxu0
      %v1842 = vpop.f32.mrb[0].mxu0
      %v1843 = vadd.f32 0.0, %v1842
      %v1844 = vpop.f32.mrb[0].mxu0
      %1845 = vdwg.mxu0
      %v1846 = vsel %vm604, %v1840, -1e+30
      %v1847 = vsel %vm605, %v1843, -1e+30
      %v1848 = vsel %vm825, %v1846, -inf
      %1849 = vmax.xlane.f32.xlu0 %v1848
      %v1850 = vpop.xlane.xlu0 %1849
      %v1851 = vsel %vm825, %v1847, -inf
      %1852 = vmax.xlane.f32.xlu0 %v1851
      %v1853 = vpop.xlane.xlu0 %1852
      %v1854 = vsub.f32 %v1846, %v1850
      %v1855 = vsub.f32 %v1847, %v1853
      %v1856 = vmul.f32 %v1854, 1.442695
      %v1857 = vpow.pop %v1856
      %v1858 = vmul.f32 %v1855, 1.442695
      %v1859 = vpow.pop %v1858
      %v1860 = vsel %vm825, %v1857, 0.0
      %1861 = vadd.xlane.f32.xlu0 %v1860
      %v1862 = vpop.xlane.xlu0 %1861
      %v1863 = vsel %vm825, %v1859, 0.0
      %1864 = vadd.xlane.f32.xlu0 %v1863
      %v1865 = vpop.xlane.xlu0 %1864
      %v1866 = vrcp.pop %v1862
      %v1867 = vrcp.pop %v1865
      %v1868 = vmul.f32 %v1857, %v1866
      %v1869 = vmul.f32 %v1859, %v1867
      %v1870 = vpack.c.bf16 %v1869, %v1868
      %v1871 = vpack.c.bf16 %v1794, %v1791
      %v1873 = vsel %vm825, %v1870, 0
      %1875 = vmatprep.subr.bf16.mxu0 0
      %1876 = vmatpush1.bf16.msra.mxu0 %v1871
      %1877 = vmatprep.subr.bf16.mxu0 0
      %1878 = vmatpush1.bf16.msra.mxu0 0
      %1879 = vmatprep.subr.bf16.mxu0 0
      %1880 = vmatpush1.bf16.msra.mxu0 0
      %1881 = vmatprep.subr.bf16.mxu0 0
      %1882 = vmatpush1.bf16.msra.mxu0 0
      %1883 = vmatprep.subr.bf16.mxu0 0
      %1884 = vmatpush1.bf16.msra.mxu0 0
      %1885 = vmatprep.subr.bf16.mxu0 0
      %1886 = vmatpush1.bf16.msra.mxu0 0
      %1887 = vmatprep.subr.bf16.mxu0 0
      %1888 = vmatpush1.bf16.msra.mxu0 0
      %1889 = vmatprep.subr.bf16.mxu0 0
      %1890 = vmatpush1.bf16.msra.mxu0 0
      %1891 = vmatprep.subr.bf16.mxu0 0
      %1892 = vmatpush1.bf16.msra.mxu0 0
      %1893 = vmatprep.subr.bf16.mxu0 0
      %1894 = vmatpush1.bf16.msra.mxu0 0
      %1895 = vmatprep.subr.bf16.mxu0 0
      %1896 = vmatpush1.bf16.msra.mxu0 0
      %1897 = vmatprep.subr.bf16.mxu0 0
      %1898 = vmatpush1.bf16.msra.mxu0 0
      %1899 = vmatprep.subr.bf16.mxu0 0
      %1900 = vmatpush1.bf16.msra.mxu0 0
      %1901 = vmatprep.subr.bf16.mxu0 0
      %1902 = vmatpush1.bf16.msra.mxu0 0
      %1903 = vmatprep.subr.bf16.mxu0 0
      %1904 = vmatpush1.bf16.msra.mxu0 0
      %1905 = vmatprep.subr.bf16.mxu0 0
      %1906 = vmatpush1.bf16.msra.mxu0 0
      %1907 = vmatprep.mubr.bf16.mxu0 0
      %1908 = vmatmul.mubr.bf16.gmra.mrb[0].mxu0 %v1873
      %v1909 = vpop.f32.mrb[0].mxu0
      %v1910 = vadd.f32 0.0, %v1909
      %v1911 = vpop.f32.mrb[0].mxu0
      %v1912 = vpop.f32.mrb[0].mxu0
      %v1913 = vadd.f32 0.0, %v1912
      %v1914 = vpop.f32.mrb[0].mxu0
      %1915 = vdwg.mxu0
      %s1916 = scalar_lea.vmem %s9, 24
      %v1917 = vld [vmem:[%s1916] sm:$0xff]
      %v1918 = vpack.c.bf16 %v1913, %v1910
      %v1919 = vpack.c.bf16 %v1917, %v1917
      %v1921 = vsel %vm775, %v1918, 0
      %v1924 = vsel %vm1193, %v1919, 0
      %1926 = vmatprep.subr.bf16.mxu0 0
      %1927 = vmatpush1.bf16.msra.mxu0 %v1924
      %1928 = vmatprep.subr.bf16.mxu0 0
      %1929 = vmatpush1.bf16.msra.mxu0 0
      %1930 = vmatprep.subr.bf16.mxu0 0
      %1931 = vmatpush1.bf16.msra.mxu0 0
      %1932 = vmatprep.subr.bf16.mxu0 0
      %1933 = vmatpush1.bf16.msra.mxu0 0
      %1934 = vmatprep.subr.bf16.mxu0 0
      %1935 = vmatpush1.bf16.msra.mxu0 0
      %1936 = vmatprep.subr.bf16.mxu0 0
      %1937 = vmatpush1.bf16.msra.mxu0 0
      %1938 = vmatprep.subr.bf16.mxu0 0
      %1939 = vmatpush1.bf16.msra.mxu0 0
      %1940 = vmatprep.subr.bf16.mxu0 0
      %1941 = vmatpush1.bf16.msra.mxu0 0
      %1942 = vmatprep.subr.bf16.mxu0 0
      %1943 = vmatpush1.bf16.msra.mxu0 0
      %1944 = vmatprep.subr.bf16.mxu0 0
      %1945 = vmatpush1.bf16.msra.mxu0 0
      %1946 = vmatprep.subr.bf16.mxu0 0
      %1947 = vmatpush1.bf16.msra.mxu0 0
      %1948 = vmatprep.subr.bf16.mxu0 0
      %1949 = vmatpush1.bf16.msra.mxu0 0
      %1950 = vmatprep.subr.bf16.mxu0 0
      %1951 = vmatpush1.bf16.msra.mxu0 0
      %1952 = vmatprep.subr.bf16.mxu0 0
      %1953 = vmatpush1.bf16.msra.mxu0 0
      %1954 = vmatprep.subr.bf16.mxu0 0
      %1955 = vmatpush1.bf16.msra.mxu0 0
      %1956 = vmatprep.subr.bf16.mxu0 0
      %1957 = vmatpush1.bf16.msra.mxu0 0
      %1958 = vmatprep.mubr.bf16.mxu0 0
      %1959 = vmatmul.mubr.bf16.gmra.mrb[0].mxu0 %v1921
      %v1960 = vpop.f32.mrb[0].mxu0
      %v1961 = vadd.f32 0.0, %v1960
      %v1962 = vpop.f32.mrb[0].mxu0
      %v1963 = vpop.f32.mrb[0].mxu0
      %v1964 = vadd.f32 0.0, %v1963
      %v1965 = vpop.f32.mrb[0].mxu0
      %1966 = vdwg.mxu0
      %v1967 = vadd.f32 %v1625, %v1961
      %v1968 = vadd.f32 %v1626, %v1964
      %v1969 = vadd.f32 %v550, %v1967
      %v1970 = vadd.f32 %v551, %v1968
      %v1971 = vld [vmem:[%s10] sm:$0x1]
      %v1973 = vlaneseq
      %v1974 = vshrl.u32 %v1973, 7
      %v1975 = vsub.s32 0, %v1974
      %v1976 = vrot.slane %v1971, %v1975
      %v1978 = vadd.f32 %v1969, %v1976
      %v1979 = vadd.f32 %v1970, %v1976
      %v1980 = vld [vmem:[%s11] sm:$0x1]
      %v1981 = vld [vmem:[%s12] sm:$0x1]
      %v1982 = vsel %vm554, %v1978, 0.0
      %1983 = vadd.xlane.f32.xlu0 %v1982
      %v1984 = vpop.xlane.xlu0 %1983
      %v1985 = vsel %vm554, %v1979, 0.0
      %1986 = vadd.xlane.f32.xlu0 %v1985
      %v1987 = vpop.xlane.xlu0 %1986
      %v1988 = vmul.f32 %v1984, %v561
      %v1989 = vmul.f32 %v1987, %v561
      %v1990 = vsub.f32 %v1978, %v1988
      %v1991 = vsub.f32 %v1979, %v1989
      %v1992 = vmul.f32 %v1990, %v1990
      %v1993 = vmul.f32 %v1991, %v1991
      %v1994 = vsel %vm554, %v1992, 0.0
      %1995 = vadd.xlane.f32.xlu0 %v1994
      %v1996 = vpop.xlane.xlu0 %1995
      %v1997 = vsel %vm554, %v1993, 0.0
      %1998 = vadd.xlane.f32.xlu0 %v1997
      %v1999 = vpop.xlane.xlu0 %1998
      %v2000 = vmul.f32 %v1996, %v561
      %v2001 = vmul.f32 %v1999, %v561
      %v2002 = vadd.f32 %v2000, 1e-05
      %v2003 = vadd.f32 %v2001, 1e-05
      %v2004 = vrsqrt.pop %v2002
      %v2005 = vrsqrt.pop %v2003
      %v2006 = vmul.f32 %v1990, %v2004
      %v2007 = vmul.f32 %v1991, %v2005
      %v2009 = vlaneseq
      %v2010 = vshrl.u32 %v2009, 7
      %v2011 = vsub.s32 0, %v2010
      %v2012 = vrot.slane %v1980, %v2011
      %v2014 = vmul.f32 %v2006, %v2012
      %v2015 = vmul.f32 %v2007, %v2012
      %v2017 = vlaneseq
      %v2018 = vshrl.u32 %v2017, 7
      %v2019 = vsub.s32 0, %v2018
      %v2020 = vrot.slane %v1981, %v2019
      %v2022 = vadd.f32 %v2014, %v2020
      %v2023 = vadd.f32 %v2015, %v2020
      %v2024 = vld [vmem:[%s13] sm:$0xff]
      %v2025 = vld [vmem:[%s13 + $0x8] sm:$0xff]
      %v2026 = vld [vmem:[%s13 + $0x10] sm:$0xff]
      %v2027 = vld [vmem:[%s13 + $0x18] sm:$0xff]
      %v2028 = vpack.c.bf16 %v2023, %v2022
      %v2029 = vpack.c.bf16 %v2025, %v2024
      %v2030 = vpack.c.bf16 %v2027, %v2026
      %v2031 = vld [vmem:[%s14] sm:$0x1]
      %v2033 = vlaneseq
      %v2034 = vshrl.u32 %v2033, 7
      %v2035 = vsub.s32 0, %v2034
      %v2036 = vrot.slane %v2031, %v2035
      %v2039 = vsel %vm554, %v2028, 0
      %2041 = vmatprep.subr.bf16.mxu0 0
      %2042 = vmatpush1.bf16.msra.mxu0 %v2029
      %2043 = vmatprep.subr.bf16.mxu0 0
      %2044 = vmatpush1.bf16.msra.mxu0 %v2030
      %2045 = vmatprep.subr.bf16.mxu0 0
      %2046 = vmatpush1.bf16.msra.mxu0 0
      %2047 = vmatprep.subr.bf16.mxu0 0
      %2048 = vmatpush1.bf16.msra.mxu0 0
      %2049 = vmatprep.subr.bf16.mxu0 0
      %2050 = vmatpush1.bf16.msra.mxu0 0
      %2051 = vmatprep.subr.bf16.mxu0 0
      %2052 = vmatpush1.bf16.msra.mxu0 0
      %2053 = vmatprep.subr.bf16.mxu0 0
      %2054 = vmatpush1.bf16.msra.mxu0 0
      %2055 = vmatprep.subr.bf16.mxu0 0
      %2056 = vmatpush1.bf16.msra.mxu0 0
      %2057 = vmatprep.subr.bf16.mxu0 0
      %2058 = vmatpush1.bf16.msra.mxu0 0
      %2059 = vmatprep.subr.bf16.mxu0 0
      %2060 = vmatpush1.bf16.msra.mxu0 0
      %2061 = vmatprep.subr.bf16.mxu0 0
      %2062 = vmatpush1.bf16.msra.mxu0 0
      %2063 = vmatprep.subr.bf16.mxu0 0
      %2064 = vmatpush1.bf16.msra.mxu0 0
      %2065 = vmatprep.subr.bf16.mxu0 0
      %2066 = vmatpush1.bf16.msra.mxu0 0
      %2067 = vmatprep.subr.bf16.mxu0 0
      %2068 = vmatpush1.bf16.msra.mxu0 0
      %2069 = vmatprep.subr.bf16.mxu0 0
      %2070 = vmatpush1.bf16.msra.mxu0 0
      %2071 = vmatprep.subr.bf16.mxu0 0
      %2072 = vmatpush1.bf16.msra.mxu0 0
      %2073 = vmatprep.mubr.bf16.mxu0 0
      %2074 = vmatmul.mubr.bf16.gmra.mrb[0].mxu0 %v2039
      %v2075 = vpop.f32.mrb[0].mxu0
      %v2076 = vadd.f32 %v2036, %v2075
      %v2077 = vpop.f32.mrb[0].mxu0
      %v2078 = vpop.f32.mrb[0].mxu0
      %v2079 = vadd.f32 %v2036, %v2078
      %v2080 = vpop.f32.mrb[0].mxu0
      %2081 = vdwg.mxu0
      %v2082 = vmul.f32 %v2076, 0.5
      %v2083 = vmul.f32 %v2079, 0.5
      %v2084 = vmul.f32 %v2076, 0.044715
      %v2085 = vmul.f32 %v2079, 0.044715
      %v2086 = vmul.f32 %v2084, %v2076
      %v2087 = vmul.f32 %v2085, %v2079
      %v2088 = vmul.f32 %v2086, %v2076
      %v2089 = vmul.f32 %v2087, %v2079
      %v2090 = vadd.f32 %v2076, %v2088
      %v2091 = vadd.f32 %v2079, %v2089
      %v2092 = vmul.f32 %v2090, 0.7978846
      %v2093 = vmul.f32 %v2091, 0.7978846
      %v2094 = vtanh.pop %v2092
      %v2095 = vtanh.pop %v2093
      %v2096 = vadd.f32 %v2094, 1.0
      %v2097 = vadd.f32 %v2095, 1.0
      %v2098 = vmul.f32 %v2082, %v2096
      %v2099 = vmul.f32 %v2083, %v2097
      %v2100 = vld [vmem:[%s15] sm:$0xff]
      %v2101 = vld [vmem:[%s15 + $0x8] sm:$0xff]
      %v2102 = vld [vmem:[%s15 + $0x10] sm:$0xff]
      %v2103 = vld [vmem:[%s15 + $0x18] sm:$0xff]
      %v2104 = vld [vmem:[%s15 + $0x20] sm:$0xff]
      %v2105 = vld [vmem:[%s15 + $0x28] sm:$0xff]
      %v2106 = vld [vmem:[%s15 + $0x30] sm:$0xff]
      %v2107 = vld [vmem:[%s15 + $0x38] sm:$0xff]
      %v2108 = vld [vmem:[%s15 + $0x40] sm:$0xff]
      %v2109 = vld [vmem:[%s15 + $0x48] sm:$0xff]
      %v2110 = vld [vmem:[%s15 + $0x50] sm:$0xff]
      %v2111 = vld [vmem:[%s15 + $0x58] sm:$0xff]
      %v2112 = vld [vmem:[%s15 + $0x60] sm:$0xff]
      %v2113 = vld [vmem:[%s15 + $0x68] sm:$0xff]
      %v2114 = vld [vmem:[%s15 + $0x70] sm:$0xff]
      %v2115 = vld [vmem:[%s15 + $0x78] sm:$0xff]
      %v2116 = vpack.c.bf16 %v2099, %v2098
      %v2117 = vpack.c.bf16 %v2101, %v2100
      %v2118 = vpack.c.bf16 %v2103, %v2102
      %v2119 = vpack.c.bf16 %v2105, %v2104
      %v2120 = vpack.c.bf16 %v2107, %v2106
      %v2121 = vpack.c.bf16 %v2109, %v2108
      %v2122 = vpack.c.bf16 %v2111, %v2110
      %v2123 = vpack.c.bf16 %v2113, %v2112
      %v2124 = vpack.c.bf16 %v2115, %v2114
      %v2125 = vld [vmem:[%s16] sm:$0x1]
      %v2127 = vlaneseq
      %v2128 = vshrl.u32 %v2127, 7
      %v2129 = vsub.s32 0, %v2128
      %v2130 = vrot.slane %v2125, %v2129
      %2132 = vmatprep.subr.bf16.mxu0 0
      %2133 = vmatpush1.bf16.msra.mxu0 %v2117
      %2134 = vmatprep.subr.bf16.mxu0 0
      %2135 = vmatpush1.bf16.msra.mxu0 %v2118
      %2136 = vmatprep.subr.bf16.mxu0 0
      %2137 = vmatpush1.bf16.msra.mxu0 %v2119
      %2138 = vmatprep.subr.bf16.mxu0 0
      %2139 = vmatpush1.bf16.msra.mxu0 %v2120
      %2140 = vmatprep.subr.bf16.mxu0 0
      %2141 = vmatpush1.bf16.msra.mxu0 %v2121
      %2142 = vmatprep.subr.bf16.mxu0 0
      %2143 = vmatpush1.bf16.msra.mxu0 %v2122
      %2144 = vmatprep.subr.bf16.mxu0 0
      %2145 = vmatpush1.bf16.msra.mxu0 %v2123
      %2146 = vmatprep.subr.bf16.mxu0 0
      %2147 = vmatpush1.bf16.msra.mxu0 %v2124
      %2148 = vmatprep.subr.bf16.mxu0 0
      %2149 = vmatpush1.bf16.msra.mxu0 0
      %2150 = vmatprep.subr.bf16.mxu0 0
      %2151 = vmatpush1.bf16.msra.mxu0 0
      %2152 = vmatprep.subr.bf16.mxu0 0
      %2153 = vmatpush1.bf16.msra.mxu0 0
      %2154 = vmatprep.subr.bf16.mxu0 0
      %2155 = vmatpush1.bf16.msra.mxu0 0
      %2156 = vmatprep.subr.bf16.mxu0 0
      %2157 = vmatpush1.bf16.msra.mxu0 0
      %2158 = vmatprep.subr.bf16.mxu0 0
      %2159 = vmatpush1.bf16.msra.mxu0 0
      %2160 = vmatprep.subr.bf16.mxu0 0
      %2161 = vmatpush1.bf16.msra.mxu0 0
      %2162 = vmatprep.subr.bf16.mxu0 0
      %2163 = vmatpush1.bf16.msra.mxu0 0
      %2164 = vmatprep.mubr.bf16.mxu0 0
      %2165 = vmatmul.mubr.bf16.gmra.mrb[0].mxu0 %v2116
      %v2166 = vpop.f32.mrb[0].mxu0
      %v2167 = vadd.f32 %v2130, %v2166
      %v2168 = vpop.f32.mrb[0].mxu0
      %v2169 = vpop.f32.mrb[0].mxu0
      %v2170 = vadd.f32 %v2130, %v2169
      %v2171 = vpop.f32.mrb[0].mxu0
      %2172 = vdwg.mxu0
      %v2173 = vadd.f32 %v1978, %v2167
      %v2174 = vadd.f32 %v1979, %v2170
      %2175 = vst.msk [vmem:[%s548] sm:$0xff] %vm554, %v2173
      %2176 = vst.msk [vmem:[%s548 + $0x8] sm:$0xff] %vm554, %v2174
      %p2177 = scmp.lt.s32.totalorder %s28, 1
      %s2178 = scalar_select %p2177, %s28, 1
      %s2179 = smul.addr %s2178, 2
      %s2180 = smul.addr %s2179, 8
      %s2181 = scalar_lea.vmem %s17, %s2180
      // Predicated region
      $region89: #{decap_forward.5} parent=87 // pred_check
        %p2182 = pneg %p408
      $region90: #{decap_forward.5} parent=87 // pred_check_branch
        %2184 = sbr.rel (%p2182) target = $region92
      $region91: #{decap_forward.5} parent=87 // pred_region
        _
      $region92: #{decap_forward.5} parent=87 // pred_fallthru
        _
    $region88: #{decap_forward.5} parent=5 // pred_fallthru
      _
    %p2185 = scmp.le.s32.totalorder 2, %s23
    // Predicated region
    $region93: #{decap_forward.5} parent=5 // pred_check
      %p2186 = pneg %p2185
    $region94: #{decap_forward.5} parent=5 // pred_check_branch
      %2188 = sbr.rel (%p2186) target = $region96
    $region95: #{decap_forward.5} parent=5 // pred_region
      %s2189 = ssub.s32 %s23, 2
      // Predicated region
      $region97: #{decap_forward.5} parent=95 // pred_check
        %p2190 = pneg %p414
      $region98: #{decap_forward.5} parent=95 // pred_check_branch
        %2192 = sbr.rel (%p2190) target = $region100
      $region99: #{decap_forward.5} parent=95 // pred_region
        %p2193 = scmp.lt.s32.totalorder %s29, 1
        %s2194 = scalar_select %p2193, %s29, 1
        %s2195 = smul.addr %s2194, 2
        %s2196 = smul.addr %s2195, 8
        %s2197 = scalar_lea.vmem %s17, %s2196
      $region100: #{decap_forward.5} parent=95 // pred_fallthru
        _
    $region96: #{decap_forward.5} parent=5 // pred_fallthru
      _
  $region6: #{decap_forward.5} parent=0 // loop_footer
    %s27 = sadd.s32 1, %s23
  $region7: #{decap_forward.5} parent=0 // loop_footer_branch
    %22 = sbr.rel target = $region3
  $region8: #{decap_forward.5} parent=0 // loop_exit
    _

</llo_original>
